<compile_context>
chip_gen: v7x
topology: tpu7x:2x2x1
jax: 0.10.0
libtpu: 0.0.40
codegen_flags: <defaults>
</compile_context>

<pallas_src>
import functools
import math

import jax
import jax.numpy as jnp
from jax.experimental import pallas as pl
from jax.experimental.pallas import tpu as pltpu

GINE_EPS = 0.0   # GINEConv default eps
BN_EPS = 1e-5    # BatchNorm1d default eps

LANE = 128
SUBLANE = 8


def _round_up(v, m):
    return (v + m - 1) // m * m


# ---------------------------------------------------------------------------
# Phase 1: edge tiles.  grid = (n_splits, edge_tiles_per_split)
#   e_proj = edge_attr @ We + be           (bf16 MXU, f32 acc)
#   x_src  = one_hot(src) @ x              (gather; bool->bf16 one-hot in VMEM)
#   msg    = ReLU(x_src + e_proj)
#   aggr[split] += one_hot(dst)^T @ msg    (scatter-add, per-split partial)
def _edge_kernel(src_ref, dst_ref, ea_ref, x_ref, we_ref, be_ref, aggr_ref):
    @pl.when(pl.program_id(1) == 0)
    def _():
        aggr_ref[...] = jnp.zeros_like(aggr_ref)

    te = src_ref.shape[0]
    n_pad = x_ref.shape[0]

    src = src_ref[...]                        # [TE, 1] int32
    dst = dst_ref[...]                        # [1, TE] int32 (padded edges -> n_pad)

    # bool -> bf16 one-hots (no f32 intermediate); entries exact in bf16.
    col_ids = jax.lax.broadcasted_iota(jnp.int32, (te, n_pad), 1)
    src_oh = (col_ids == src).astype(jnp.bfloat16)            # [TE, N]
    row_ids = jax.lax.broadcasted_iota(jnp.int32, (n_pad, te), 0)
    dst_oh_t = (row_ids == dst).astype(jnp.bfloat16)          # [N, TE]
    # TODO(synk): beyond ~30K nodes (64 MiB VMEM budget, te=256) replace this
    # O(E*N*D) one-hot gather/scatter with a scalar-prefetched, dst-sorted
    # index gather/scatter (PrefetchScalarGridSpec) + node-tiled aggr; on v7x
    # the scatter accumulation could also stay in the MRB via matmul_push/acc/pop.

    # GINEConv internal edge Linear(edge_dim -> node_dim).
    e_proj = jnp.dot(ea_ref[...], we_ref[...],
                     preferred_element_type=jnp.float32) + be_ref[...]

    # Gather x[src] on the MXU.
    x_src = jnp.dot(src_oh, x_ref[...], preferred_element_type=jnp.float32)

    msg = jnp.maximum(x_src + e_proj, 0.0)                     # [TE, D]

    # Scatter-add into this split's f32 partial accumulator.
    aggr_ref[0] += jnp.dot(dst_oh_t, msg.astype(jnp.bfloat16),
                           preferred_element_type=jnp.float32)


# ---------------------------------------------------------------------------
# Phase 2: node tiles, fully parallel.  grid = (n_tiles,)
#   z = ((1+eps)*x + sum(aggr partials)) @ W + b   (x kept f32 on the add path)
#   Per-tile BN partials (masked): sum_t and M2_t (around the tile mean).
def _node_kernel(x_ref, aggr_ref, w_ref, b_ref, z_ref, zsum_ref, zm2_ref,
                 *, n_nodes, tn):
    t = pl.program_id(0)
    d_pad = zsum_ref.shape[2]

    aggr = jnp.sum(aggr_ref[...], axis=0)                      # merge split partials
    h = (1.0 + GINE_EPS) * x_ref[...] + aggr                   # f32
    z = jnp.dot(h.astype(jnp.bfloat16), w_ref[...],
                preferred_element_type=jnp.float32) + b_ref[...]
    z_ref[...] = z.astype(z_ref.dtype)                         # bf16 store

    # Masked per-tile statistics (computed on the f32 z before the bf16 store).
    row = jax.lax.broadcasted_iota(jnp.int32, (tn, 1), 0) + t * tn
    valid = (row < n_nodes).astype(jnp.float32)                # [tn, 1]
    cnt = jnp.maximum(jnp.minimum(n_nodes - t * tn, tn), 1).astype(jnp.float32)

    zm = z * valid
    s = jnp.sum(zm, axis=0, keepdims=True)                     # [1, D]
    mean_t = s * (1.0 / cnt)
    dev = (z - mean_t) * valid
    m2 = jnp.sum(dev * dev, axis=0, keepdims=True)             # [1, D]

    # Partials written into sublane 0 of an (8, D)-aligned row (zeros elsewhere).
    sub = jax.lax.broadcasted_iota(jnp.int32, (SUBLANE, d_pad), 0)
    zsum_ref[0] = jnp.where(sub == 0, s, 0.0)
    zm2_ref[0] = jnp.where(sub == 0, m2, 0.0)


# ---------------------------------------------------------------------------
# Phase 2.5: merge per-tile BN partials (Chan's parallel variance) and
# precompute the affine scale/shift once (hoisted out of the per-tile Phase 3).
def _stats_kernel(zsum_ref, zm2_ref, gamma_ref, beta_ref, scale_ref, shift_ref,
                  *, n_nodes, tn):
    n_tiles = zsum_ref.shape[0]
    d_pad = zsum_ref.shape[2]

    s = jnp.sum(zsum_ref[...], axis=1)                         # [T, D]
    m2 = jnp.sum(zm2_ref[...], axis=1)                         # [T, D]
    tile_i = jax.lax.broadcasted_iota(jnp.int32, (n_tiles, d_pad), 0)
    cnt = jnp.clip(n_nodes - tile_i * tn, 0, tn).astype(jnp.float32)
    mean_t = s / jnp.maximum(cnt, 1.0)

    inv_n = 1.0 / float(n_nodes)
    mean = jnp.sum(s, axis=0, keepdims=True) * inv_n           # [1, D]
    dm = mean_t - mean
    var = (jnp.sum(m2, axis=0, keepdims=True)
           + jnp.sum(cnt * dm * dm, axis=0, keepdims=True)) * inv_n
    var = jnp.maximum(var, 0.0)

    scale = gamma_ref[...] * jax.lax.rsqrt(var + BN_EPS)
    shift = beta_ref[...] - mean * scale
    scale_ref[...] = scale
    shift_ref[...] = shift
    # TODO(synk): BatchNorm1d training also updates running_mean/running_var
    # buffers; that side effect is not produced here (forward output only).


# ---------------------------------------------------------------------------
# Phase 3: node tiles, fully parallel.  Pure FMA + ReLU; output aliases z.
def _bn_relu_kernel(z_ref, scale_ref, shift_ref, o_ref):
    z = z_ref[...].astype(jnp.float32)
    y = jnp.maximum(z * scale_ref[...] + shift_ref[...], 0.0)
    o_ref[...] = y.astype(o_ref.dtype)
    # TODO(synk): nn.Dropout(p) is stochastic in train mode (identity in eval);
    # left as identity since the PyTorch RNG stream cannot be reproduced.


def myconv_forward(x, edge_index, edge_attr, params, *, te=256, tn=256,
                   n_splits=2):
    """x: [N, D] f32, edge_index: [2, E] i32, edge_attr: [E, De] f32.

    te: edge-tile size (multiple of 128; 256 matches the v6e/v7x MXU, use 128
        on v5e).  tn: node-tile size (multiple of 8; 256 default).
    n_splits: number of partial-aggr shards over the edge grid (2 lets the
        "parallel" axis shard across the two v7x TensorCores; harmless on 1-TC).
    """
    assert te % LANE == 0 and tn % SUBLANE == 0 and n_splits >= 1
    we, be, w, b, gamma, beta = params
    n, d = x.shape
    e, de = edge_attr.shape
    edge_index = edge_index.astype(jnp.int32)

    # Lane-dense, MXU-aligned padded sizes.
    d_pad = _round_up(d, LANE)
    de_pad = _round_up(de, LANE)
    n_pad = _round_up(n, math.lcm(tn, LANE))
    e_pad = _round_up(e, te * n_splits)
    n_tiles = n_pad // tn
    tiles_per_split = e_pad // te // n_splits

    def pad2(a, r, c, dtype):
        return (jnp.zeros((r, c), jnp.float32)
                .at[:a.shape[0], :a.shape[1]].set(a).astype(dtype))

    # bf16 only for MXU operands; f32 x kept for the (1+eps)*x update path.
    x_bf = pad2(x, n_pad, d_pad, jnp.bfloat16)
    x_f32 = pad2(x, n_pad, d_pad, jnp.float32)
    ea_p = pad2(edge_attr, e_pad, de_pad, jnp.bfloat16)
    we_p = pad2(we, de_pad, d_pad, jnp.bfloat16)
    w_p = pad2(w, d_pad, d_pad, jnp.bfloat16)
    be_p = pad2(be.reshape(1, -1), 1, d_pad, jnp.float32)
    b_p = pad2(b.reshape(1, -1), 1, d_pad, jnp.float32)
    gamma_p = pad2(gamma.reshape(1, -1), 1, d_pad, jnp.float32)
    beta_p = pad2(beta.reshape(1, -1), 1, d_pad, jnp.float32)

    # Edge indices as tiny int32 arrays (no [E, N] one-hot ever touches HBM).
    # Padded edges get dst = n_pad so their messages scatter nowhere.
    src = jnp.zeros((e_pad, 1), jnp.int32).at[:e, 0].set(edge_index[0])
    dst = jnp.full((1, e_pad), n_pad, dtype=jnp.int32).at[0, :e].set(edge_index[1])

    # Explicit VMEM budget (sized for v7x's 64 MiB physical so one config works
    # on every generation).  Resident working set in Phase 1 is roughly
    # (2B x + 4B aggr + 2*te*2B one-hot cols)/node ~= 1.75 KiB/node at te=256,
    # i.e. a ~30K-node ceiling; beyond that tile aggr over nodes / use the
    # index-gather redesign (see TODO in _edge_kernel).
    vmem_limit = 64 * 1024 * 1024

    # --- Phase 1: message + scatter-add over edge tiles (split-parallel) -----
    aggr = pl.pallas_call(
        _edge_kernel,
        out_shape=jax.ShapeDtypeStruct((n_splits, n_pad, d_pad), jnp.float32),
        grid=(n_splits, tiles_per_split),
        in_specs=[
            pl.BlockSpec((te, 1), lambda c, t: (c * tiles_per_split + t, 0)),
            pl.BlockSpec((1, te), lambda c, t: (0, c * tiles_per_split + t)),
            pl.BlockSpec((te, de_pad), lambda c, t: (c * tiles_per_split + t, 0)),
            pl.BlockSpec((n_pad, d_pad), lambda c, t: (0, 0)),    # x (resident)
            pl.BlockSpec((de_pad, d_pad), lambda c, t: (0, 0)),   # We (resident)
            pl.BlockSpec((1, d_pad), lambda c, t: (0, 0)),        # be (resident)
        ],
        out_specs=pl.BlockSpec((1, n_pad, d_pad), lambda c, t: (c, 0, 0)),
        compiler_params=pltpu.CompilerParams(
            dimension_semantics=("parallel", "arbitrary"),
            vmem_limit_bytes=vmem_limit),
    )(src, dst, ea_p, x_bf, we_p, be_p)

    # --- Phase 2: GIN update + Linear + per-tile BN partials (parallel) ------
    z, zsum_p, zm2_p = pl.pallas_call(
        functools.partial(_node_kernel, n_nodes=n, tn=tn),
        out_shape=(jax.ShapeDtypeStruct((n_pad, d_pad), jnp.bfloat16),
                   jax.ShapeDtypeStruct((n_tiles, SUBLANE, d_pad), jnp.float32),
                   jax.ShapeDtypeStruct((n_tiles, SUBLANE, d_pad), jnp.float32)),
        grid=(n_tiles,),
        in_specs=[
            pl.BlockSpec((tn, d_pad), lambda t: (t, 0)),               # x (f32)
            pl.BlockSpec((n_splits, tn, d_pad), lambda t: (0, t, 0)),  # aggr partials
            pl.BlockSpec((d_pad, d_pad), lambda t: (0, 0)),            # W (resident)
            pl.BlockSpec((1, d_pad), lambda t: (0, 0)),                # b (resident)
        ],
        out_specs=(pl.BlockSpec((tn, d_pad), lambda t: (t, 0)),
                   pl.BlockSpec((1, SUBLANE, d_pad), lambda t: (t, 0, 0)),
                   pl.BlockSpec((1, SUBLANE, d_pad), lambda t: (t, 0, 0))),
        compiler_params=pltpu.CompilerParams(
            dimension_semantics=("parallel",),
            vmem_limit_bytes=vmem_limit),
    )(x_f32, aggr, w_p, b_p)

    # --- Phase 2.5: merge BN partials, precompute scale/shift (tiny) ---------
    scale, shift = pl.pallas_call(
        functools.partial(_stats_kernel, n_nodes=n, tn=tn),
        out_shape=(jax.ShapeDtypeStruct((1, d_pad), jnp.float32),
                   jax.ShapeDtypeStruct((1, d_pad), jnp.float32)),
    )(zsum_p, zm2_p, gamma_p, beta_p)

    # --- Phase 3: BN affine + ReLU (parallel, output aliases dead z buffer) --
    out = pl.pallas_call(
        _bn_relu_kernel,
        out_shape=jax.ShapeDtypeStruct((n_pad, d_pad), jnp.bfloat16),
        grid=(n_tiles,),
        in_specs=[
            pl.BlockSpec((tn, d_pad), lambda t: (t, 0)),     # z tile (bf16)
            pl.BlockSpec((1, d_pad), lambda t: (0, 0)),      # scale (resident)
            pl.BlockSpec((1, d_pad), lambda t: (0, 0)),      # shift (resident)
        ],
        out_specs=pl.BlockSpec((tn, d_pad), lambda t: (t, 0)),
        input_output_aliases={0: 0},
        compiler_params=pltpu.CompilerParams(
            dimension_semantics=("parallel",)),
    )(z, scale, shift)

    return out[:n, :d].astype(jnp.float32)


def myconv_reference(x, edge_index, edge_attr, params):
    """Pure-JAX f32 reference of the same forward (correctness check)."""
    we, be, w, b, gamma, beta = params
    e_proj = edge_attr @ we + be
    msg = jax.nn.relu(x[edge_index[0]] + e_proj)
    aggr = jax.ops.segment_sum(msg, edge_index[1], num_segments=x.shape[0])
    h = (1.0 + GINE_EPS) * x + aggr
    z = h @ w + b
    mean = jnp.mean(z, axis=0, keepdims=True)
    var = jnp.mean((z - mean) ** 2, axis=0, keepdims=True)
    y = (z - mean) * jax.lax.rsqrt(var + BN_EPS) * gamma + beta
    return jax.nn.relu(y)


if __name__ == "__main__":
    # Small synthetic graph: 20 nodes, 200 edges, node_dim=32, edge_dim=16.
    N, E, node_dim, edge_dim = 20, 200, 32, 16

    key = jax.random.PRNGKey(0)
    kx, kea, ksrc, kdst, kwe, kbe, kw, kb, kg, kbt = jax.random.split(key, 10)

    x = jax.random.normal(kx, (N, node_dim), dtype=jnp.float32)
    edge_attr = jax.random.normal(kea, (E, edge_dim), dtype=jnp.float32)
    edge_index = jnp.stack([
        jax.random.randint(ksrc, (E,), 0, N, dtype=jnp.int32),
        jax.random.randint(kdst, (E,), 0, N, dtype=jnp.int32),
    ])

    # Parameters: GINEConv edge Linear(edge_dim, node_dim), GIN MLP
    # Linear(node_dim, node_dim) (mlp_layers=1), BatchNorm1d(node_dim).
    we = jax.random.normal(kwe, (edge_dim, node_dim), dtype=jnp.float32) * 0.1
    be = jax.random.normal(kbe, (1, node_dim), dtype=jnp.float32) * 0.1
    w = jax.random.normal(kw, (node_dim, node_dim), dtype=jnp.float32) * 0.1
    b = jax.random.normal(kb, (1, node_dim), dtype=jnp.float32) * 0.1
    gamma = 1.0 + 0.1 * jax.random.normal(kg, (1, node_dim), dtype=jnp.float32)
    beta = 0.1 * jax.random.normal(kbt, (1, node_dim), dtype=jnp.float32)
    params = (we, be, w, b, gamma, beta)

    fwd = jax.jit(lambda xx, ei, ea: myconv_forward(xx, ei, ea, params))
    out = jax.block_until_ready(fwd(x, edge_index, edge_attr))

    ref = myconv_reference(x, edge_index, edge_attr, params)
    assert out.shape == (N, node_dim)
    # bf16 MXU operands + bf16 z round-trip (f32 accumulation) -> loosened tol.
    assert jnp.allclose(out, ref, atol=1e-1, rtol=1e-1), \
        float(jnp.max(jnp.abs(out - ref)))

    print("KERNEL_OK")
</pallas_src>

<mosaic_0001>
module attributes {stable_mosaic.version = 11 : i64} {
  func.func @_stats_kernel(%arg0: memref<1x8x128xf32, #tpu.memory_space<vmem>>, %arg1: memref<1x8x128xf32, #tpu.memory_space<vmem>>, %arg2: memref<1x128xf32, #tpu.memory_space<vmem>>, %arg3: memref<1x128xf32, #tpu.memory_space<vmem>>, %arg4: memref<1x128xf32, #tpu.memory_space<vmem>>, %arg5: memref<1x128xf32, #tpu.memory_space<vmem>>) attributes {dimension_semantics = [], scalar_prefetch = 0 : i64, scratch_operands = 0 : i64, tpu.core_type = #tpu.core_type<tc>} {
    %c0 = arith.constant 0 : index
    %c0_0 = arith.constant 0 : index
    %c0_1 = arith.constant 0 : index
    %0 = vector.load %arg0[%c0, %c0_0, %c0_1] : memref<1x8x128xf32, #tpu.memory_space<vmem>>, vector<1x8x128xf32>
    %cst = arith.constant dense<0.000000e+00> : vector<1x128xf32>
    %1 = vector.multi_reduction <add>, %0, %cst [1] : vector<1x8x128xf32> to vector<1x128xf32>
    %c0_2 = arith.constant 0 : index
    %c0_3 = arith.constant 0 : index
    %c0_4 = arith.constant 0 : index
    %2 = vector.load %arg1[%c0_2, %c0_3, %c0_4] : memref<1x8x128xf32, #tpu.memory_space<vmem>>, vector<1x8x128xf32>
    %cst_5 = arith.constant dense<0.000000e+00> : vector<1x128xf32>
    %3 = vector.multi_reduction <add>, %2, %cst_5 [1] : vector<1x8x128xf32> to vector<1x128xf32>
    %4 = tpu.iota {dimensions = array<i32: 0>} : vector<1x128xi32>
    %c256_i32 = arith.constant 256 : i32
    %5 = vector.broadcast %c256_i32 : i32 to vector<1x128xi32>
    %6 = arith.muli %4, %5 : vector<1x128xi32>
    %c20_i32 = arith.constant 20 : i32
    %7 = vector.broadcast %c20_i32 : i32 to vector<1x128xi32>
    %8 = arith.subi %7, %6 : vector<1x128xi32>
    %c0_i32 = arith.constant 0 : i32
    %c256_i32_6 = arith.constant 256 : i32
    %9 = vector.broadcast %c0_i32 : i32 to vector<1x128xi32>
    %10 = arith.maxsi %9, %8 : vector<1x128xi32>
    %11 = vector.broadcast %c256_i32_6 : i32 to vector<1x128xi32>
    %12 = arith.minsi %11, %10 : vector<1x128xi32>
    %13 = arith.sitofp %12 : vector<1x128xi32> to vector<1x128xf32>
    %cst_7 = arith.constant 1.000000e+00 : f32
    %14 = vector.broadcast %cst_7 : f32 to vector<1x128xf32>
    %15 = arith.maximumf %13, %14 : vector<1x128xf32>
    %16 = arith.divf %1, %15 : vector<1x128xf32>
    %cst_8 = arith.constant dense<0.000000e+00> : vector<128xf32>
    %17 = vector.multi_reduction <add>, %1, %cst_8 [0] : vector<1x128xf32> to vector<128xf32>
    %18 = vector.shape_cast %17 : vector<128xf32> to vector<1x128xf32>
    %cst_9 = arith.constant 5.000000e-02 : f32
    %19 = vector.broadcast %cst_9 : f32 to vector<1x128xf32>
    %20 = arith.mulf %18, %19 : vector<1x128xf32>
    %21 = arith.subf %16, %20 : vector<1x128xf32>
    %cst_10 = arith.constant dense<0.000000e+00> : vector<128xf32>
    %22 = vector.multi_reduction <add>, %3, %cst_10 [0] : vector<1x128xf32> to vector<128xf32>
    %23 = vector.shape_cast %22 : vector<128xf32> to vector<1x128xf32>
    %24 = arith.mulf %13, %21 : vector<1x128xf32>
    %25 = arith.mulf %24, %21 : vector<1x128xf32>
    %cst_11 = arith.constant dense<0.000000e+00> : vector<128xf32>
    %26 = vector.multi_reduction <add>, %25, %cst_11 [0] : vector<1x128xf32> to vector<128xf32>
    %27 = vector.shape_cast %26 : vector<128xf32> to vector<1x128xf32>
    %28 = arith.addf %23, %27 : vector<1x128xf32>
    %cst_12 = arith.constant 5.000000e-02 : f32
    %29 = vector.broadcast %cst_12 : f32 to vector<1x128xf32>
    %30 = arith.mulf %28, %29 : vector<1x128xf32>
    %cst_13 = arith.constant 0.000000e+00 : f32
    %31 = vector.broadcast %cst_13 : f32 to vector<1x128xf32>
    %32 = arith.maximumf %30, %31 : vector<1x128xf32>
    %c0_14 = arith.constant 0 : index
    %c0_15 = arith.constant 0 : index
    %33 = vector.load %arg2[%c0_14, %c0_15] : memref<1x128xf32, #tpu.memory_space<vmem>>, vector<1x128xf32>
    %cst_16 = arith.constant 9.99999974E-6 : f32
    %34 = vector.broadcast %cst_16 : f32 to vector<1x128xf32>
    %35 = arith.addf %32, %34 : vector<1x128xf32>
    %36 = math.rsqrt %35 : vector<1x128xf32>
    %37 = arith.mulf %33, %36 : vector<1x128xf32>
    %c0_17 = arith.constant 0 : index
    %c0_18 = arith.constant 0 : index
    %38 = vector.load %arg3[%c0_17, %c0_18] : memref<1x128xf32, #tpu.memory_space<vmem>>, vector<1x128xf32>
    %39 = arith.mulf %20, %37 : vector<1x128xf32>
    %40 = arith.subf %38, %39 : vector<1x128xf32>
    %c0_19 = arith.constant 0 : index
    %c0_20 = arith.constant 0 : index
    %41 = vector.load %arg4[%c0_19, %c0_20] : memref<1x128xf32, #tpu.memory_space<vmem>>, vector<1x128xf32>
    tpu.vector_store %arg4[%c0_19, %c0_20], %37 {strides = array<i32>} : memref<1x128xf32, #tpu.memory_space<vmem>>, vector<1x128xf32>,
    %c0_21 = arith.constant 0 : index
    %c0_22 = arith.constant 0 : index
    %42 = vector.load %arg5[%c0_21, %c0_22] : memref<1x128xf32, #tpu.memory_space<vmem>>, vector<1x128xf32>
    tpu.vector_store %arg5[%c0_21, %c0_22], %40 {strides = array<i32>} : memref<1x128xf32, #tpu.memory_space<vmem>>, vector<1x128xf32>,
    return
  }
}

module attributes {stable_mosaic.version = 11 : i64} {
  func.func @_edge_kernel(%arg0: i32, %arg1: i32, %arg2: memref<256x1xi32, #tpu.memory_space<vmem>>, %arg3: memref<1x256xi32, #tpu.memory_space<vmem>>, %arg4: memref<256x128xbf16, #tpu.memory_space<vmem>>, %arg5: memref<256x128xbf16, #tpu.memory_space<vmem>>, %arg6: memref<128x128xbf16, #tpu.memory_space<vmem>>, %arg7: memref<1x128xf32, #tpu.memory_space<vmem>>, %arg8: memref<1x256x128xf32, #tpu.memory_space<vmem>>) attributes {dimension_semantics = [#tpu.dimension_semantics<parallel>, #tpu.dimension_semantics<arbitrary>], iteration_bounds = array<i64: 2, 1>, scalar_prefetch = 0 : i64, scratch_operands = 0 : i64, tpu.core_type = #tpu.core_type<tc>, window_params = [{transform_indices = @transform_0, window_bounds = array<i64: 256, 1>}, {transform_indices = @transform_1, window_bounds = array<i64: 1, 256>}, {transform_indices = @transform_2, window_bounds = array<i64: 256, 128>}, {pipeline_mode = #tpu.pipeline_mode<synchronous>, transform_indices = @transform_3, window_bounds = array<i64: 256, 128>}, {pipeline_mode = #tpu.pipeline_mode<synchronous>, transform_indices = @transform_4, window_bounds = array<i64: 128, 128>}, {pipeline_mode = #tpu.pipeline_mode<synchronous>, transform_indices = @transform_5, window_bounds = array<i64: 1, 128>}, {transform_indices = @transform_6, window_bounds = array<i64: 1, 256, 128>}]} {
    %c0_i32 = arith.constant 0 : i32
    %0 = arith.cmpi eq, %arg1, %c0_i32 : i32
    %1 = arith.extui %0 : i1 to i32
    %c0_i32_0 = arith.constant 0 : i32
    %2 = arith.cmpi ne, %1, %c0_i32_0 : i32
    scf.if %2 {
      %cst_21 = arith.constant 0.000000e+00 : f32
      %36 = vector.broadcast %cst_21 : f32 to vector<1x256x128xf32>
      %c0_22 = arith.constant 0 : index
      %c0_23 = arith.constant 0 : index
      %c0_24 = arith.constant 0 : index
      %37 = vector.load %arg8[%c0_22, %c0_23, %c0_24] : memref<1x256x128xf32, #tpu.memory_space<vmem>>, vector<1x256x128xf32>
      tpu.vector_store %arg8[%c0_22, %c0_23, %c0_24], %36 {strides = array<i32>} : memref<1x256x128xf32, #tpu.memory_space<vmem>>, vector<1x256x128xf32>,
    } else {
    }
    %c0 = arith.constant 0 : index
    %c0_1 = arith.constant 0 : index
    %3 = vector.load %arg2[%c0, %c0_1] : memref<256x1xi32, #tpu.memory_space<vmem>>, vector<256x1xi32>
    %c0_2 = arith.constant 0 : index
    %c0_3 = arith.constant 0 : index
    %4 = vector.load %arg3[%c0_2, %c0_3] : memref<1x256xi32, #tpu.memory_space<vmem>>, vector<1x256xi32>
    %5 = tpu.iota {dimensions = array<i32: 1>} : vector<256x256xi32>
    %6 = vector.broadcast %3 : vector<256x1xi32> to vector<256x256xi32>
    %7 = arith.cmpi eq, %5, %6 : vector<256x256xi32>
    %8 = arith.extui %7 : vector<256x256xi1> to vector<256x256xi32>
    %9 = arith.sitofp %8 : vector<256x256xi32> to vector<256x256xf32>
    %10 = arith.truncf %9 : vector<256x256xf32> to vector<256x256xbf16>
    %11 = tpu.iota {dimensions = array<i32: 0>} : vector<256x256xi32>
    %12 = vector.broadcast %4 : vector<1x256xi32> to vector<256x256xi32>
    %13 = arith.cmpi eq, %11, %12 : vector<256x256xi32>
    %14 = arith.extui %13 : vector<256x256xi1> to vector<256x256xi32>
    %15 = arith.sitofp %14 : vector<256x256xi32> to vector<256x256xf32>
    %16 = arith.truncf %15 : vector<256x256xf32> to vector<256x256xbf16>
    %c0_4 = arith.constant 0 : index
    %c0_5 = arith.constant 0 : index
    %17 = vector.load %arg4[%c0_4, %c0_5] : memref<256x128xbf16, #tpu.memory_space<vmem>>, vector<256x128xbf16>
    %c0_6 = arith.constant 0 : index
    %c0_7 = arith.constant 0 : index
    %18 = vector.load %arg6[%c0_6, %c0_7] : memref<128x128xbf16, #tpu.memory_space<vmem>>, vector<128x128xbf16>
    %cst = arith.constant dense<0.000000e+00> : vector<256x128xf32>
    %19 = tpu.matmul %17, %18, %cst {dimension_numbers = #tpu.dot_dimension_numbers<[1], [0], [0], [1], [0, 0, 1, 1], [], []>} : vector<256x128xbf16>, vector<128x128xbf16>, vector<256x128xf32> -> vector<256x128xf32>
    %c0_8 = arith.constant 0 : index
    %c0_9 = arith.constant 0 : index
    %20 = vector.load %arg7[%c0_8, %c0_9] : memref<1x128xf32, #tpu.memory_space<vmem>>, vector<1x128xf32>
    %21 = vector.broadcast %20 : vector<1x128xf32> to vector<256x128xf32>
    %22 = arith.addf %19, %21 : vector<256x128xf32>
    %c0_10 = arith.constant 0 : index
    %c0_11 = arith.constant 0 : index
    %23 = vector.load %arg5[%c0_10, %c0_11] : memref<256x128xbf16, #tpu.memory_space<vmem>>, vector<256x128xbf16>
    %cst_12 = arith.constant dense<0.000000e+00> : vector<256x128xf32>
    %24 = tpu.matmul %10, %23, %cst_12 {dimension_numbers = #tpu.dot_dimension_numbers<[1], [0], [0], [1], [0, 0, 1, 1], [], []>} : vector<256x256xbf16>, vector<256x128xbf16>, vector<256x128xf32> -> vector<256x128xf32>
    %25 = arith.addf %24, %22 : vector<256x128xf32>
    %cst_13 = arith.constant 0.000000e+00 : f32
    %26 = vector.broadcast %cst_13 : f32 to vector<256x128xf32>
    %27 = arith.maximumf %25, %26 : vector<256x128xf32>
    %c0_14 = arith.constant 0 : index
    %c0_15 = arith.constant 0 : index
    %c0_16 = arith.constant 0 : index
    %28 = vector.load %arg8[%c0_14, %c0_15, %c0_16] : memref<1x256x128xf32, #tpu.memory_space<vmem>>, vector<1x256x128xf32>
    %29 = vector.shape_cast %28 : vector<1x256x128xf32> to vector<256x128xf32>
    %30 = arith.truncf %27 : vector<256x128xf32> to vector<256x128xbf16>
    %cst_17 = arith.constant dense<0.000000e+00> : vector<256x128xf32>
    %31 = tpu.matmul %16, %30, %cst_17 {dimension_numbers = #tpu.dot_dimension_numbers<[1], [0], [0], [1], [0, 0, 1, 1], [], []>} : vector<256x256xbf16>, vector<256x128xbf16>, vector<256x128xf32> -> vector<256x128xf32>
    %32 = arith.addf %29, %31 : vector<256x128xf32>
    %c0_18 = arith.constant 0 : index
    %c0_19 = arith.constant 0 : index
    %c0_20 = arith.constant 0 : index
    %33 = vector.load %arg8[%c0_18, %c0_19, %c0_20] : memref<1x256x128xf32, #tpu.memory_space<vmem>>, vector<1x256x128xf32>
    %34 = vector.shape_cast %33 : vector<1x256x128xf32> to vector<256x128xf32>
    %35 = vector.shape_cast %32 : vector<256x128xf32> to vector<1x256x128xf32>
    tpu.vector_store %arg8[%c0_18, %c0_19, %c0_20], %35 {strides = array<i32>} : memref<1x256x128xf32, #tpu.memory_space<vmem>>, vector<1x256x128xf32>,
    return
  }
  func.func @transform_0(%arg0: i32, %arg1: i32) -> (i32, i32) {
    %c1_i32 = arith.constant 1 : i32
    %0 = arith.muli %arg0, %c1_i32 : i32
    %1 = arith.addi %0, %arg1 : i32
    %c0_i32 = arith.constant 0 : i32
    %c0_i32_0 = arith.constant 0 : i32
    return %1, %c0_i32 : i32, i32
  }
  func.func @transform_1(%arg0: i32, %arg1: i32) -> (i32, i32) {
    %c1_i32 = arith.constant 1 : i32
    %0 = arith.muli %arg0, %c1_i32 : i32
    %1 = arith.addi %0, %arg1 : i32
    %c0_i32 = arith.constant 0 : i32
    %c0_i32_0 = arith.constant 0 : i32
    return %c0_i32, %1 : i32, i32
  }
  func.func @transform_2(%arg0: i32, %arg1: i32) -> (i32, i32) {
    %c1_i32 = arith.constant 1 : i32
    %0 = arith.muli %arg0, %c1_i32 : i32
    %1 = arith.addi %0, %arg1 : i32
    %c0_i32 = arith.constant 0 : i32
    %c0_i32_0 = arith.constant 0 : i32
    return %1, %c0_i32 : i32, i32
  }
  func.func @transform_3(%arg0: i32, %arg1: i32) -> (i32, i32) {
    %c0_i32 = arith.constant 0 : i32
    %c0_i32_0 = arith.constant 0 : i32
    %c0_i32_1 = arith.constant 0 : i32
    return %c0_i32, %c0_i32_0 : i32, i32
  }
  func.func @transform_4(%arg0: i32, %arg1: i32) -> (i32, i32) {
    %c0_i32 = arith.constant 0 : i32
    %c0_i32_0 = arith.constant 0 : i32
    %c0_i32_1 = arith.constant 0 : i32
    return %c0_i32, %c0_i32_0 : i32, i32
  }
  func.func @transform_5(%arg0: i32, %arg1: i32) -> (i32, i32) {
    %c0_i32 = arith.constant 0 : i32
    %c0_i32_0 = arith.constant 0 : i32
    %c0_i32_1 = arith.constant 0 : i32
    return %c0_i32, %c0_i32_0 : i32, i32
  }
  func.func @transform_6(%arg0: i32, %arg1: i32) -> (i32, i32, i32) {
    %c0_i32 = arith.constant 0 : i32
    %c0_i32_0 = arith.constant 0 : i32
    %c0_i32_1 = arith.constant 0 : i32
    return %arg0, %c0_i32, %c0_i32_0 : i32, i32, i32
  }
}

module attributes {stable_mosaic.version = 11 : i64} {
  func.func @_node_kernel(%arg0: i32, %arg1: memref<256x128xf32, #tpu.memory_space<vmem>>, %arg2: memref<2x256x128xf32, #tpu.memory_space<vmem>>, %arg3: memref<128x128xbf16, #tpu.memory_space<vmem>>, %arg4: memref<1x128xf32, #tpu.memory_space<vmem>>, %arg5: memref<256x128xbf16, #tpu.memory_space<vmem>>, %arg6: memref<1x8x128xf32, #tpu.memory_space<vmem>>, %arg7: memref<1x8x128xf32, #tpu.memory_space<vmem>>) attributes {dimension_semantics = [#tpu.dimension_semantics<parallel>], iteration_bounds = array<i64: 1>, scalar_prefetch = 0 : i64, scratch_operands = 0 : i64, tpu.core_type = #tpu.core_type<tc>, window_params = [{transform_indices = @transform_0, window_bounds = array<i64: 256, 128>}, {transform_indices = @transform_1, window_bounds = array<i64: 2, 256, 128>}, {pipeline_mode = #tpu.pipeline_mode<synchronous>, transform_indices = @transform_2, window_bounds = array<i64: 128, 128>}, {pipeline_mode = #tpu.pipeline_mode<synchronous>, transform_indices = @transform_3, window_bounds = array<i64: 1, 128>}, {transform_indices = @transform_4, window_bounds = array<i64: 256, 128>}, {transform_indices = @transform_5, window_bounds = array<i64: 1, 8, 128>}, {transform_indices = @transform_6, window_bounds = array<i64: 1, 8, 128>}]} {
    %c0 = arith.constant 0 : index
    %c0_0 = arith.constant 0 : index
    %c0_1 = arith.constant 0 : index
    %0 = vector.load %arg2[%c0, %c0_0, %c0_1] : memref<2x256x128xf32, #tpu.memory_space<vmem>>, vector<2x256x128xf32>
    %cst = arith.constant dense<0.000000e+00> : vector<256x128xf32>
    %1 = vector.multi_reduction <add>, %0, %cst [0] : vector<2x256x128xf32> to vector<256x128xf32>
    %c0_2 = arith.constant 0 : index
    %c0_3 = arith.constant 0 : index
    %2 = vector.load %arg1[%c0_2, %c0_3] : memref<256x128xf32, #tpu.memory_space<vmem>>, vector<256x128xf32>
    %cst_4 = arith.constant 1.000000e+00 : f32
    %3 = vector.broadcast %cst_4 : f32 to vector<256x128xf32>
    %4 = arith.mulf %3, %2 : vector<256x128xf32>
    %5 = arith.addf %4, %1 : vector<256x128xf32>
    %6 = arith.truncf %5 : vector<256x128xf32> to vector<256x128xbf16>
    %c0_5 = arith.constant 0 : index
    %c0_6 = arith.constant 0 : index
    %7 = vector.load %arg3[%c0_5, %c0_6] : memref<128x128xbf16, #tpu.memory_space<vmem>>, vector<128x128xbf16>
    %cst_7 = arith.constant dense<0.000000e+00> : vector<256x128xf32>
    %8 = tpu.matmul %6, %7, %cst_7 {dimension_numbers = #tpu.dot_dimension_numbers<[1], [0], [0], [1], [0, 0, 1, 1], [], []>} : vector<256x128xbf16>, vector<128x128xbf16>, vector<256x128xf32> -> vector<256x128xf32>
    %c0_8 = arith.constant 0 : index
    %c0_9 = arith.constant 0 : index
    %9 = vector.load %arg4[%c0_8, %c0_9] : memref<1x128xf32, #tpu.memory_space<vmem>>, vector<1x128xf32>
    %10 = vector.broadcast %9 : vector<1x128xf32> to vector<256x128xf32>
    %11 = arith.addf %8, %10 : vector<256x128xf32>
    %12 = arith.truncf %11 : vector<256x128xf32> to vector<256x128xbf16>
    %c0_10 = arith.constant 0 : index
    %c0_11 = arith.constant 0 : index
    %13 = vector.load %arg5[%c0_10, %c0_11] : memref<256x128xbf16, #tpu.memory_space<vmem>>, vector<256x128xbf16>
    tpu.vector_store %arg5[%c0_10, %c0_11], %12 {strides = array<i32>} : memref<256x128xbf16, #tpu.memory_space<vmem>>, vector<256x128xbf16>,
    %14 = tpu.iota {dimensions = array<i32: 0>} : vector<256x1xi32>
    %c256_i32 = arith.constant 256 : i32
    %15 = arith.muli %arg0, %c256_i32 : i32
    %16 = vector.broadcast %15 : i32 to vector<256x1xi32>
    %17 = arith.addi %14, %16 : vector<256x1xi32>
    %c20_i32 = arith.constant 20 : i32
    %18 = vector.broadcast %c20_i32 : i32 to vector<256x1xi32>
    %19 = arith.cmpi slt, %17, %18 : vector<256x1xi32>
    %20 = arith.extui %19 : vector<256x1xi1> to vector<256x1xi32>
    %21 = arith.sitofp %20 : vector<256x1xi32> to vector<256x1xf32>
    %c256_i32_12 = arith.constant 256 : i32
    %22 = arith.muli %arg0, %c256_i32_12 : i32
    %c20_i32_13 = arith.constant 20 : i32
    %23 = arith.subi %c20_i32_13, %22 : i32
    %c256_i32_14 = arith.constant 256 : i32
    %24 = arith.minsi %23, %c256_i32_14 : i32
    %c1_i32 = arith.constant 1 : i32
    %25 = arith.maxsi %24, %c1_i32 : i32
    %26 = arith.sitofp %25 : i32 to f32
    %27 = vector.broadcast %21 : vector<256x1xf32> to vector<256x128xf32>
    %28 = arith.mulf %11, %27 : vector<256x128xf32>
    %cst_15 = arith.constant dense<0.000000e+00> : vector<128xf32>
    %29 = vector.multi_reduction <add>, %28, %cst_15 [0] : vector<256x128xf32> to vector<128xf32>
    %30 = vector.shape_cast %29 : vector<128xf32> to vector<1x128xf32>
    %cst_16 = arith.constant 1.000000e+00 : f32
    %31 = arith.divf %cst_16, %26 : f32
    %32 = vector.broadcast %31 : f32 to vector<1x128xf32>
    %33 = arith.mulf %30, %32 : vector<1x128xf32>
    %34 = vector.broadcast %33 : vector<1x128xf32> to vector<256x128xf32>
    %35 = arith.subf %11, %34 : vector<256x128xf32>
    %36 = vector.broadcast %21 : vector<256x1xf32> to vector<256x128xf32>
    %37 = arith.mulf %35, %36 : vector<256x128xf32>
    %38 = arith.mulf %37, %37 : vector<256x128xf32>
    %cst_17 = arith.constant dense<0.000000e+00> : vector<128xf32>
    %39 = vector.multi_reduction <add>, %38, %cst_17 [0] : vector<256x128xf32> to vector<128xf32>
    %40 = vector.shape_cast %39 : vector<128xf32> to vector<1x128xf32>
    %41 = tpu.iota {dimensions = array<i32: 0>} : vector<8x128xi32>
    %c0_i32 = arith.constant 0 : i32
    %42 = vector.broadcast %c0_i32 : i32 to vector<8x128xi32>
    %43 = arith.cmpi eq, %41, %42 : vector<8x128xi32>
    %cst_18 = arith.constant 0.000000e+00 : f32
    %44 = vector.shape_cast %30 : vector<1x128xf32> to vector<1x128xf32>
    %45 = vector.broadcast %44 : vector<1x128xf32> to vector<8x128xf32>
    %46 = vector.broadcast %cst_18 : f32 to vector<8x128xf32>
    %47 = arith.select %43, %45, %46 : vector<8x128xi1>, vector<8x128xf32>
    %c0_19 = arith.constant 0 : index
    %c0_20 = arith.constant 0 : index
    %c0_21 = arith.constant 0 : index
    %48 = vector.load %arg6[%c0_19, %c0_20, %c0_21] : memref<1x8x128xf32, #tpu.memory_space<vmem>>, vector<1x8x128xf32>
    %49 = vector.shape_cast %48 : vector<1x8x128xf32> to vector<8x128xf32>
    %50 = vector.shape_cast %47 : vector<8x128xf32> to vector<1x8x128xf32>
    tpu.vector_store %arg6[%c0_19, %c0_20, %c0_21], %50 {strides = array<i32>} : memref<1x8x128xf32, #tpu.memory_space<vmem>>, vector<1x8x128xf32>,
    %c0_i32_22 = arith.constant 0 : i32
    %51 = vector.broadcast %c0_i32_22 : i32 to vector<8x128xi32>
    %52 = arith.cmpi eq, %41, %51 : vector<8x128xi32>
    %cst_23 = arith.constant 0.000000e+00 : f32
    %53 = vector.shape_cast %40 : vector<1x128xf32> to vector<1x128xf32>
    %54 = vector.broadcast %53 : vector<1x128xf32> to vector<8x128xf32>
    %55 = vector.broadcast %cst_23 : f32 to vector<8x128xf32>
    %56 = arith.select %52, %54, %55 : vector<8x128xi1>, vector<8x128xf32>
    %c0_24 = arith.constant 0 : index
    %c0_25 = arith.constant 0 : index
    %c0_26 = arith.constant 0 : index
    %57 = vector.load %arg7[%c0_24, %c0_25, %c0_26] : memref<1x8x128xf32, #tpu.memory_space<vmem>>, vector<1x8x128xf32>
    %58 = vector.shape_cast %57 : vector<1x8x128xf32> to vector<8x128xf32>
    %59 = vector.shape_cast %56 : vector<8x128xf32> to vector<1x8x128xf32>
    tpu.vector_store %arg7[%c0_24, %c0_25, %c0_26], %59 {strides = array<i32>} : memref<1x8x128xf32, #tpu.memory_space<vmem>>, vector<1x8x128xf32>,
    return
  }
  func.func @transform_0(%arg0: i32) -> (i32, i32) {
    %c0_i32 = arith.constant 0 : i32
    %c0_i32_0 = arith.constant 0 : i32
    return %arg0, %c0_i32 : i32, i32
  }
  func.func @transform_1(%arg0: i32) -> (i32, i32, i32) {
    %c0_i32 = arith.constant 0 : i32
    %c0_i32_0 = arith.constant 0 : i32
    %c0_i32_1 = arith.constant 0 : i32
    return %c0_i32, %arg0, %c0_i32_0 : i32, i32, i32
  }
  func.func @transform_2(%arg0: i32) -> (i32, i32) {
    %c0_i32 = arith.constant 0 : i32
    %c0_i32_0 = arith.constant 0 : i32
    %c0_i32_1 = arith.constant 0 : i32
    return %c0_i32, %c0_i32_0 : i32, i32
  }
  func.func @transform_3(%arg0: i32) -> (i32, i32) {
    %c0_i32 = arith.constant 0 : i32
    %c0_i32_0 = arith.constant 0 : i32
    %c0_i32_1 = arith.constant 0 : i32
    return %c0_i32, %c0_i32_0 : i32, i32
  }
  func.func @transform_4(%arg0: i32) -> (i32, i32) {
    %c0_i32 = arith.constant 0 : i32
    %c0_i32_0 = arith.constant 0 : i32
    return %arg0, %c0_i32 : i32, i32
  }
  func.func @transform_5(%arg0: i32) -> (i32, i32, i32) {
    %c0_i32 = arith.constant 0 : i32
    %c0_i32_0 = arith.constant 0 : i32
    %c0_i32_1 = arith.constant 0 : i32
    return %arg0, %c0_i32, %c0_i32_0 : i32, i32, i32
  }
  func.func @transform_6(%arg0: i32) -> (i32, i32, i32) {
    %c0_i32 = arith.constant 0 : i32
    %c0_i32_0 = arith.constant 0 : i32
    %c0_i32_1 = arith.constant 0 : i32
    return %arg0, %c0_i32, %c0_i32_0 : i32, i32, i32
  }
}

module attributes {stable_mosaic.version = 11 : i64} {
  func.func @_bn_relu_kernel(%arg0: i32, %arg1: memref<256x128xbf16, #tpu.memory_space<vmem>>, %arg2: memref<1x128xf32, #tpu.memory_space<vmem>>, %arg3: memref<1x128xf32, #tpu.memory_space<vmem>>, %arg4: memref<256x128xbf16, #tpu.memory_space<vmem>>) attributes {dimension_semantics = [#tpu.dimension_semantics<parallel>], iteration_bounds = array<i64: 1>, scalar_prefetch = 0 : i64, scratch_operands = 0 : i64, tpu.core_type = #tpu.core_type<tc>, window_params = [{transform_indices = @transform_0, window_bounds = array<i64: 256, 128>}, {pipeline_mode = #tpu.pipeline_mode<synchronous>, transform_indices = @transform_1, window_bounds = array<i64: 1, 128>}, {pipeline_mode = #tpu.pipeline_mode<synchronous>, transform_indices = @transform_2, window_bounds = array<i64: 1, 128>}, {transform_indices = @transform_3, window_bounds = array<i64: 256, 128>}]} {
    %c0 = arith.constant 0 : index
    %c0_0 = arith.constant 0 : index
    %0 = vector.load %arg1[%c0, %c0_0] : memref<256x128xbf16, #tpu.memory_space<vmem>>, vector<256x128xbf16>
    %1 = arith.extf %0 : vector<256x128xbf16> to vector<256x128xf32>
    %c0_1 = arith.constant 0 : index
    %c0_2 = arith.constant 0 : index
    %2 = vector.load %arg2[%c0_1, %c0_2] : memref<1x128xf32, #tpu.memory_space<vmem>>, vector<1x128xf32>
    %3 = vector.broadcast %2 : vector<1x128xf32> to vector<256x128xf32>
    %4 = arith.mulf %1, %3 : vector<256x128xf32>
    %c0_3 = arith.constant 0 : index
    %c0_4 = arith.constant 0 : index
    %5 = vector.load %arg3[%c0_3, %c0_4] : memref<1x128xf32, #tpu.memory_space<vmem>>, vector<1x128xf32>
    %6 = vector.broadcast %5 : vector<1x128xf32> to vector<256x128xf32>
    %7 = arith.addf %4, %6 : vector<256x128xf32>
    %cst = arith.constant 0.000000e+00 : f32
    %8 = vector.broadcast %cst : f32 to vector<256x128xf32>
    %9 = arith.maximumf %7, %8 : vector<256x128xf32>
    %10 = arith.truncf %9 : vector<256x128xf32> to vector<256x128xbf16>
    %c0_5 = arith.constant 0 : index
    %c0_6 = arith.constant 0 : index
    %11 = vector.load %arg4[%c0_5, %c0_6] : memref<256x128xbf16, #tpu.memory_space<vmem>>, vector<256x128xbf16>
    tpu.vector_store %arg4[%c0_5, %c0_6], %10 {strides = array<i32>} : memref<256x128xbf16, #tpu.memory_space<vmem>>, vector<256x128xbf16>,
    return
  }
  func.func @transform_0(%arg0: i32) -> (i32, i32) {
    %c0_i32 = arith.constant 0 : i32
    %c0_i32_0 = arith.constant 0 : i32
    return %arg0, %c0_i32 : i32, i32
  }
  func.func @transform_1(%arg0: i32) -> (i32, i32) {
    %c0_i32 = arith.constant 0 : i32
    %c0_i32_0 = arith.constant 0 : i32
    %c0_i32_1 = arith.constant 0 : i32
    return %c0_i32, %c0_i32_0 : i32, i32
  }
  func.func @transform_2(%arg0: i32) -> (i32, i32) {
    %c0_i32 = arith.constant 0 : i32
    %c0_i32_0 = arith.constant 0 : i32
    %c0_i32_1 = arith.constant 0 : i32
    return %c0_i32, %c0_i32_0 : i32, i32
  }
  func.func @transform_3(%arg0: i32) -> (i32, i32) {
    %c0_i32 = arith.constant 0 : i32
    %c0_i32_0 = arith.constant 0 : i32
    return %arg0, %c0_i32 : i32, i32
  }
}

</mosaic_0001>

<llo_original>
// kernel: _lambda_.6
$region0: #{_lambda_.6}
  #allocation0 [shape = 'u32[]', space=smem, size = 0x4, offset = 0x4, fixed_abs, tag = 'smem constant byte address 0x4 - core index']
  #allocation1 [shape = 'u32[144,128]{1,0:T(1,128)}', space=vmem, size = 0x12000, scoped, tag = 'internal scratch']
  %s0 = inlined_call_operand.vmem [shape: f32[1,8,128], index: 0, kind: input, shape index: {}]
  %s1 = inlined_call_operand.vmem [shape: f32[1,8,128], index: 1, kind: input, shape index: {}]
  %s2 = inlined_call_operand.vmem [shape: f32[1,128], index: 2, kind: input, shape index: {}]
  %s3 = inlined_call_operand.vmem [shape: f32[1,128], index: 3, kind: input, shape index: {}]
  %s4 = inlined_call_operand.vmem [shape: f32[1,128], index: 4, kind: output, shape index: {0}]
  %s5 = inlined_call_operand.vmem [shape: f32[1,128], index: 5, kind: output, shape index: {1}]
  %6 = xla_tuple %s4, %s5
  %s7 = sld [smem:[#allocation0]]
  $region34: #{_lambda_.6} parent=0
    _
  %s9 = ssub.s32 1, %s7
  %s10 = scalar_select 0, %s9, %s7
  // Predicated region
  $region2: #{_lambda_.6} parent=0 // pred_check
    _
  $region3: #{_lambda_.6} parent=0 // pred_check_branch
    %12 = sbr.rel (0) target = $region5
  $region4: #{_lambda_.6} parent=0 // pred_region
    _
  $region5: #{_lambda_.6} parent=0 // pred_fallthru
    _
  // Predicated region
  $region6: #{_lambda_.6} parent=0 // pred_check
    _
  $region7: #{_lambda_.6} parent=0 // pred_check_branch
    %14 = sbr.rel (0) target = $region9
  $region8: #{_lambda_.6} parent=0 // pred_region
    _
  $region9: #{_lambda_.6} parent=0 // pred_fallthru
    _
  // Predicated region
  $region10: #{_lambda_.6} parent=0 // pred_check
    _
  $region11: #{_lambda_.6} parent=0 // pred_check_branch
    %16 = sbr.rel (0) target = $region13
  $region12: #{_lambda_.6} parent=0 // pred_region
    _
  $region13: #{_lambda_.6} parent=0 // pred_fallthru
    _
  // Predicated region
  $region14: #{_lambda_.6} parent=0 // pred_check
    _
  $region15: #{_lambda_.6} parent=0 // pred_check_branch
    %18 = sbr.rel (0) target = $region17
  $region16: #{_lambda_.6} parent=0 // pred_region
    _
  $region17: #{_lambda_.6} parent=0 // pred_fallthru
    _
  %v19 = vld [vmem:[%s0] sm:$0xff]
  %v20 = vrot.slane %v19, 4
  %v21 = vadd.f32 %v19, %v20
  %v22 = vrot.slane %v21, 2
  %v23 = vadd.f32 %v21, %v22
  %v24 = vrot.slane %v23, 1
  %v25 = vadd.f32 %v23, %v24
  %v26 = vld [vmem:[%s1] sm:$0xff]
  %v27 = vrot.slane %v26, 4
  %v28 = vadd.f32 %v26, %v27
  %v29 = vrot.slane %v28, 2
  %v30 = vadd.f32 %v28, %v29
  %v31 = vrot.slane %v30, 1
  %v32 = vadd.f32 %v30, %v31
  %v33 = vlaneseq
  %v34 = vshrl.u32 %v33, 7
  %v35 = vmul.u32 %v34, 256
  %v36 = vsub.s32 20, %v35
  %vm37 = vcmp.gt.s32.totalorder %v36, 0
  %v38 = vsel %vm37, %v36, 0
  %vm39 = vcmp.lt.s32.totalorder %v38, 256
  %v40 = vsel %vm39, %v38, 256
  %v41 = vcvt.s32.f32 %v40
  %v42 = vmax.f32 %v41, 1.0
  %v43 = vrcp.pop %v42
  %v44 = vmul.f32 %v25, %v43
  %v45 = vadd.f32 %v25, 0.0
  %v46 = vmul.f32 %v45, 0.05
  %v47 = vsub.f32 %v44, %v46
  %v48 = vadd.f32 %v32, 0.0
  %v49 = vmul.f32 %v41, %v47
  %v50 = vmul.f32 %v49, %v47
  %v51 = vadd.f32 %v50, 0.0
  %v52 = vadd.f32 %v48, %v51
  %v53 = vmul.f32 %v52, 0.05
  %v54 = vmax.f32 %v53, 0.0
  %v55 = vld [vmem:[%s2] sm:$0x1]
  %v56 = vadd.f32 %v54, 1e-05
  %v57 = vrsqrt.pop %v56
  %v58 = vmul.f32 %v55, %v57
  %v59 = vld [vmem:[%s3] sm:$0x1]
  %v60 = vmul.f32 %v46, %v58
  %v61 = vsub.f32 %v59, %v60
  %62 = vst [vmem:[%s4] sm:$0x1] %v58
  %63 = vst [vmem:[%s5] sm:$0x1] %v61
  // Predicated region
  $region18: #{_lambda_.6} parent=0 // pred_check
    _
  $region19: #{_lambda_.6} parent=0 // pred_check_branch
    %65 = sbr.rel (0) target = $region21
  $region20: #{_lambda_.6} parent=0 // pred_region
    _
  $region21: #{_lambda_.6} parent=0 // pred_fallthru
    _
  // Predicated region
  $region22: #{_lambda_.6} parent=0 // pred_check
    _
  $region23: #{_lambda_.6} parent=0 // pred_check_branch
    %67 = sbr.rel (0) target = $region25
  $region24: #{_lambda_.6} parent=0 // pred_region
    _
  $region25: #{_lambda_.6} parent=0 // pred_fallthru
    _
  // Predicated region
  $region26: #{_lambda_.6} parent=0 // pred_check
    _
  $region27: #{_lambda_.6} parent=0 // pred_check_branch
    %69 = sbr.rel (0) target = $region29
  $region28: #{_lambda_.6} parent=0 // pred_region
    _
  $region29: #{_lambda_.6} parent=0 // pred_fallthru
    _
  // Predicated region
  $region30: #{_lambda_.6} parent=0 // pred_check
    _
  $region31: #{_lambda_.6} parent=0 // pred_check_branch
    %71 = sbr.rel (0) target = $region33
  $region32: #{_lambda_.6} parent=0 // pred_region
    _
  $region33: #{_lambda_.6} parent=0 // pred_fallthru
    _

// kernel: _lambda_.7
$region0: #{_lambda_.7}
  #allocation0 [shape = 'u32[]', space=smem, size = 0x4, offset = 0x4, fixed_abs, tag = 'smem constant byte address 0x4 - core index']
  #allocation1 [shape = 'u32[144,128]{1,0:T(1,128)}', space=vmem, size = 0x12000, scoped, tag = 'internal scratch']
  %s0 = inlined_call_operand.hbm [shape: bf16[256,128], index: 0, kind: input, shape index: {}, may-alias: {0,3}]
  %s1 = inlined_call_operand.vmem [shape: f32[1,128], index: 1, kind: input, shape index: {}]
  %s2 = inlined_call_operand.vmem [shape: f32[1,128], index: 2, kind: input, shape index: {}]
  %s3 = inlined_call_operand.hbm [shape: bf16[256,128], index: 3, kind: output, shape index: {}, may-alias: {0,3}]
  %s4 = sld [smem:[#allocation0]]
  $region26: #{_lambda_.7} parent=0
    _
  %s6 = ssub.s32 1, %s4
  %s7 = scalar_select 0, %s6, %s4
  $region1: #{_lambda_.7} parent=0
    #allocation2 [shape = 'u8[65536]{0}', space=vmem, size = 0x10000, scoped, tag = 'input window, operand 0, single buffered']
    #allocation3 [shape = 's32[1]{0}', space=sflag, size = 0x4, scoped, tag = 'scoped memory for _lambda_.7']
    #allocation4 [shape = 's32[1]{0}', space=sflag, size = 0x4, scoped, tag = 'scoped memory for _lambda_.7']
    #allocation5 [shape = 'u8[65536]{0}', space=vmem, size = 0x10000, scoped, tag = 'output window, operand 0, single buffered']
    %8 = vsyncpa [#allocation3], 0
    %9 = vsyncpa [#allocation4], 0
    // Predicated region
    $region2: #{_lambda_.7} parent=1 // pred_check
      _
    $region3: #{_lambda_.7} parent=1 // pred_check_branch
      %11 = sbr.rel (0) target = $region5
    $region4: #{_lambda_.7} parent=1 // pred_region
      %s13 = ssub.s32 2048, 2048
      %14 = vsyncadd [#allocation3], %s13
      %s15 = sshll.u32 [#allocation2], 4
      %s16 = int_to_ptr.vmem [resolvable:$true] %s15
      %21 = dma.hbm_to_vmem [thread:$0]  %s0, 2048, %s16, [#allocation3], 64, 64, 4
    $region5: #{_lambda_.7} parent=1 // pred_fallthru
      _
    // Predicated region
    $region6: #{_lambda_.7} parent=1 // pred_check
      _
    $region7: #{_lambda_.7} parent=1 // pred_check_branch
      %23 = sbr.rel (0) target = $region9
    $region8: #{_lambda_.7} parent=1 // pred_region
      _
    $region9: #{_lambda_.7} parent=1 // pred_fallthru
      _
    // Predicated region
    $region10: #{_lambda_.7} parent=1 // pred_check
      _
    $region11: #{_lambda_.7} parent=1 // pred_check_branch
      %25 = sbr.rel (0) target = $region13
    $region12: #{_lambda_.7} parent=1 // pred_region
      _
    $region13: #{_lambda_.7} parent=1 // pred_fallthru
      _
    // Predicated region
    $region14: #{_lambda_.7} parent=1 // pred_check
      _
    $region15: #{_lambda_.7} parent=1 // pred_check_branch
      %27 = sbr.rel (0) target = $region17
    $region16: #{_lambda_.7} parent=1 // pred_region
      %28 = dma.done [#allocation3], 2048
    $region17: #{_lambda_.7} parent=1 // pred_fallthru
      _
    %v29 = vld [vmem:[#allocation2] sm:$0xf]
    %v30 = vld [vmem:[#allocation2 + $0x4] sm:$0xf]
    %v31 = vld [vmem:[#allocation2 + $0x8] sm:$0xf]
    %v32 = vld [vmem:[#allocation2 + $0xc] sm:$0xf]
    %v33 = vld [vmem:[#allocation2 + $0x10] sm:$0xf]
    %v34 = vld [vmem:[#allocation2 + $0x14] sm:$0xf]
    %v35 = vld [vmem:[#allocation2 + $0x18] sm:$0xf]
    %v36 = vld [vmem:[#allocation2 + $0x1c] sm:$0xf]
    %v37 = vld [vmem:[#allocation2 + $0x20] sm:$0xf]
    %v38 = vld [vmem:[#allocation2 + $0x24] sm:$0xf]
    %v39 = vld [vmem:[#allocation2 + $0x28] sm:$0xf]
    %v40 = vld [vmem:[#allocation2 + $0x2c] sm:$0xf]
    %v41 = vld [vmem:[#allocation2 + $0x30] sm:$0xf]
    %v42 = vld [vmem:[#allocation2 + $0x34] sm:$0xf]
    %v43 = vld [vmem:[#allocation2 + $0x38] sm:$0xf]
    %v44 = vld [vmem:[#allocation2 + $0x3c] sm:$0xf]
    %v45 = vld [vmem:[#allocation2 + $0x40] sm:$0xf]
    %v46 = vld [vmem:[#allocation2 + $0x44] sm:$0xf]
    %v47 = vld [vmem:[#allocation2 + $0x48] sm:$0xf]
    %v48 = vld [vmem:[#allocation2 + $0x4c] sm:$0xf]
    %v49 = vld [vmem:[#allocation2 + $0x50] sm:$0xf]
    %v50 = vld [vmem:[#allocation2 + $0x54] sm:$0xf]
    %v51 = vld [vmem:[#allocation2 + $0x58] sm:$0xf]
    %v52 = vld [vmem:[#allocation2 + $0x5c] sm:$0xf]
    %v53 = vld [vmem:[#allocation2 + $0x60] sm:$0xf]
    %v54 = vld [vmem:[#allocation2 + $0x64] sm:$0xf]
    %v55 = vld [vmem:[#allocation2 + $0x68] sm:$0xf]
    %v56 = vld [vmem:[#allocation2 + $0x6c] sm:$0xf]
    %v57 = vld [vmem:[#allocation2 + $0x70] sm:$0xf]
    %v58 = vld [vmem:[#allocation2 + $0x74] sm:$0xf]
    %v59 = vld [vmem:[#allocation2 + $0x78] sm:$0xf]
    %v60 = vld [vmem:[#allocation2 + $0x7c] sm:$0xf]
    %v61 = vunpack.c.l.bf16 %v29
    %v62 = vunpack.c.l.bf16 %v30
    %v63 = vunpack.c.l.bf16 %v31
    %v64 = vunpack.c.l.bf16 %v32
    %v65 = vunpack.c.l.bf16 %v33
    %v66 = vunpack.c.l.bf16 %v34
    %v67 = vunpack.c.l.bf16 %v35
    %v68 = vunpack.c.l.bf16 %v36
    %v69 = vunpack.c.l.bf16 %v37
    %v70 = vunpack.c.l.bf16 %v38
    %v71 = vunpack.c.l.bf16 %v39
    %v72 = vunpack.c.l.bf16 %v40
    %v73 = vunpack.c.l.bf16 %v41
    %v74 = vunpack.c.l.bf16 %v42
    %v75 = vunpack.c.l.bf16 %v43
    %v76 = vunpack.c.l.bf16 %v44
    %v77 = vunpack.c.l.bf16 %v45
    %v78 = vunpack.c.l.bf16 %v46
    %v79 = vunpack.c.l.bf16 %v47
    %v80 = vunpack.c.l.bf16 %v48
    %v81 = vunpack.c.l.bf16 %v49
    %v82 = vunpack.c.l.bf16 %v50
    %v83 = vunpack.c.l.bf16 %v51
    %v84 = vunpack.c.l.bf16 %v52
    %v85 = vunpack.c.l.bf16 %v53
    %v86 = vunpack.c.l.bf16 %v54
    %v87 = vunpack.c.l.bf16 %v55
    %v88 = vunpack.c.l.bf16 %v56
    %v89 = vunpack.c.l.bf16 %v57
    %v90 = vunpack.c.l.bf16 %v58
    %v91 = vunpack.c.l.bf16 %v59
    %v92 = vunpack.c.l.bf16 %v60
    %v93 = vld [vmem:[%s1] sm:$0x1]
    %v95 = vlaneseq
    %v96 = vshrl.u32 %v95, 7
    %v97 = vsub.s32 0, %v96
    %v98 = vrot.slane %v93, %v97
    %v100 = vmul.f32 %v61, %v98
    %v101 = vmul.f32 %v62, %v98
    %v102 = vmul.f32 %v63, %v98
    %v103 = vmul.f32 %v64, %v98
    %v104 = vmul.f32 %v65, %v98
    %v105 = vmul.f32 %v66, %v98
    %v106 = vmul.f32 %v67, %v98
    %v107 = vmul.f32 %v68, %v98
    %v108 = vmul.f32 %v69, %v98
    %v109 = vmul.f32 %v70, %v98
    %v110 = vmul.f32 %v71, %v98
    %v111 = vmul.f32 %v72, %v98
    %v112 = vmul.f32 %v73, %v98
    %v113 = vmul.f32 %v74, %v98
    %v114 = vmul.f32 %v75, %v98
    %v115 = vmul.f32 %v76, %v98
    %v116 = vmul.f32 %v77, %v98
    %v117 = vmul.f32 %v78, %v98
    %v118 = vmul.f32 %v79, %v98
    %v119 = vmul.f32 %v80, %v98
    %v120 = vmul.f32 %v81, %v98
    %v121 = vmul.f32 %v82, %v98
    %v122 = vmul.f32 %v83, %v98
    %v123 = vmul.f32 %v84, %v98
    %v124 = vmul.f32 %v85, %v98
    %v125 = vmul.f32 %v86, %v98
    %v126 = vmul.f32 %v87, %v98
    %v127 = vmul.f32 %v88, %v98
    %v128 = vmul.f32 %v89, %v98
    %v129 = vmul.f32 %v90, %v98
    %v130 = vmul.f32 %v91, %v98
    %v131 = vmul.f32 %v92, %v98
    %v132 = vld [vmem:[%s2] sm:$0x1]
    %v134 = vlaneseq
    %v135 = vshrl.u32 %v134, 7
    %v136 = vsub.s32 0, %v135
    %v137 = vrot.slane %v132, %v136
    %v139 = vadd.f32 %v100, %v137
    %v140 = vadd.f32 %v101, %v137
    %v141 = vadd.f32 %v102, %v137
    %v142 = vadd.f32 %v103, %v137
    %v143 = vadd.f32 %v104, %v137
    %v144 = vadd.f32 %v105, %v137
    %v145 = vadd.f32 %v106, %v137
    %v146 = vadd.f32 %v107, %v137
    %v147 = vadd.f32 %v108, %v137
    %v148 = vadd.f32 %v109, %v137
    %v149 = vadd.f32 %v110, %v137
    %v150 = vadd.f32 %v111, %v137
    %v151 = vadd.f32 %v112, %v137
    %v152 = vadd.f32 %v113, %v137
    %v153 = vadd.f32 %v114, %v137
    %v154 = vadd.f32 %v115, %v137
    %v155 = vadd.f32 %v116, %v137
    %v156 = vadd.f32 %v117, %v137
    %v157 = vadd.f32 %v118, %v137
    %v158 = vadd.f32 %v119, %v137
    %v159 = vadd.f32 %v120, %v137
    %v160 = vadd.f32 %v121, %v137
    %v161 = vadd.f32 %v122, %v137
    %v162 = vadd.f32 %v123, %v137
    %v163 = vadd.f32 %v124, %v137
    %v164 = vadd.f32 %v125, %v137
    %v165 = vadd.f32 %v126, %v137
    %v166 = vadd.f32 %v127, %v137
    %v167 = vadd.f32 %v128, %v137
    %v168 = vadd.f32 %v129, %v137
    %v169 = vadd.f32 %v130, %v137
    %v170 = vadd.f32 %v131, %v137
    %v171 = vmax.f32 %v139, 0.0
    %v172 = vmax.f32 %v140, 0.0
    %v173 = vmax.f32 %v141, 0.0
    %v174 = vmax.f32 %v142, 0.0
    %v175 = vmax.f32 %v143, 0.0
    %v176 = vmax.f32 %v144, 0.0
    %v177 = vmax.f32 %v145, 0.0
    %v178 = vmax.f32 %v146, 0.0
    %v179 = vmax.f32 %v147, 0.0
    %v180 = vmax.f32 %v148, 0.0
    %v181 = vmax.f32 %v149, 0.0
    %v182 = vmax.f32 %v150, 0.0
    %v183 = vmax.f32 %v151, 0.0
    %v184 = vmax.f32 %v152, 0.0
    %v185 = vmax.f32 %v153, 0.0
    %v186 = vmax.f32 %v154, 0.0
    %v187 = vmax.f32 %v155, 0.0
    %v188 = vmax.f32 %v156, 0.0
    %v189 = vmax.f32 %v157, 0.0
    %v190 = vmax.f32 %v158, 0.0
    %v191 = vmax.f32 %v159, 0.0
    %v192 = vmax.f32 %v160, 0.0
    %v193 = vmax.f32 %v161, 0.0
    %v194 = vmax.f32 %v162, 0.0
    %v195 = vmax.f32 %v163, 0.0
    %v196 = vmax.f32 %v164, 0.0
    %v197 = vmax.f32 %v165, 0.0
    %v198 = vmax.f32 %v166, 0.0
    %v199 = vmax.f32 %v167, 0.0
    %v200 = vmax.f32 %v168, 0.0
    %v201 = vmax.f32 %v169, 0.0
    %v202 = vmax.f32 %v170, 0.0
    %v203 = vpack.c.bf16 %v172, %v171
    %v204 = vpack.c.bf16 %v174, %v173
    %v205 = vpack.c.bf16 %v176, %v175
    %v206 = vpack.c.bf16 %v178, %v177
    %v207 = vpack.c.bf16 %v180, %v179
    %v208 = vpack.c.bf16 %v182, %v181
    %v209 = vpack.c.bf16 %v184, %v183
    %v210 = vpack.c.bf16 %v186, %v185
    %v211 = vpack.c.bf16 %v188, %v187
    %v212 = vpack.c.bf16 %v190, %v189
    %v213 = vpack.c.bf16 %v192, %v191
    %v214 = vpack.c.bf16 %v194, %v193
    %v215 = vpack.c.bf16 %v196, %v195
    %v216 = vpack.c.bf16 %v198, %v197
    %v217 = vpack.c.bf16 %v200, %v199
    %v218 = vpack.c.bf16 %v202, %v201
    %v235 = vunpack.c.l.b16 %v203
    %v236 = vunpack.c.h.b16 %v203
    %v237 = vunpack.c.l.b16 %v204
    %v238 = vunpack.c.h.b16 %v204
    %v239 = vunpack.c.l.b16 %v205
    %v240 = vunpack.c.h.b16 %v205
    %v241 = vunpack.c.l.b16 %v206
    %v242 = vunpack.c.h.b16 %v206
    %v243 = vunpack.c.l.b16 %v207
    %v244 = vunpack.c.h.b16 %v207
    %v245 = vunpack.c.l.b16 %v208
    %v246 = vunpack.c.h.b16 %v208
    %v247 = vunpack.c.l.b16 %v209
    %v248 = vunpack.c.h.b16 %v209
    %v249 = vunpack.c.l.b16 %v210
    %v250 = vunpack.c.h.b16 %v210
    %v251 = vunpack.c.l.b16 %v211
    %v252 = vunpack.c.h.b16 %v211
    %v253 = vunpack.c.l.b16 %v212
    %v254 = vunpack.c.h.b16 %v212
    %v255 = vunpack.c.l.b16 %v213
    %v256 = vunpack.c.h.b16 %v213
    %v257 = vunpack.c.l.b16 %v214
    %v258 = vunpack.c.h.b16 %v214
    %v259 = vunpack.c.l.b16 %v215
    %v260 = vunpack.c.h.b16 %v215
    %v261 = vunpack.c.l.b16 %v216
    %v262 = vunpack.c.h.b16 %v216
    %v263 = vunpack.c.l.b16 %v217
    %v264 = vunpack.c.h.b16 %v217
    %v265 = vunpack.c.l.b16 %v218
    %v266 = vunpack.c.h.b16 %v218
    %v267 = vpack.c.b16 %v235, %v235
    %v268 = vpack.c.b16 %v236, %v236
    %v269 = vpack.c.b16 %v237, %v237
    %v270 = vpack.c.b16 %v238, %v238
    %v271 = vpack.c.b16 %v239, %v239
    %v272 = vpack.c.b16 %v240, %v240
    %v273 = vpack.c.b16 %v241, %v241
    %v274 = vpack.c.b16 %v242, %v242
    %v275 = vpack.c.b16 %v243, %v243
    %v276 = vpack.c.b16 %v244, %v244
    %v277 = vpack.c.b16 %v245, %v245
    %v278 = vpack.c.b16 %v246, %v246
    %v279 = vpack.c.b16 %v247, %v247
    %v280 = vpack.c.b16 %v248, %v248
    %v281 = vpack.c.b16 %v249, %v249
    %v282 = vpack.c.b16 %v250, %v250
    %v283 = vpack.c.b16 %v251, %v251
    %v284 = vpack.c.b16 %v252, %v252
    %v285 = vpack.c.b16 %v253, %v253
    %v286 = vpack.c.b16 %v254, %v254
    %v287 = vpack.c.b16 %v255, %v255
    %v288 = vpack.c.b16 %v256, %v256
    %v289 = vpack.c.b16 %v257, %v257
    %v290 = vpack.c.b16 %v258, %v258
    %v291 = vpack.c.b16 %v259, %v259
    %v292 = vpack.c.b16 %v260, %v260
    %v293 = vpack.c.b16 %v261, %v261
    %v294 = vpack.c.b16 %v262, %v262
    %v295 = vpack.c.b16 %v263, %v263
    %v296 = vpack.c.b16 %v264, %v264
    %v297 = vpack.c.b16 %v265, %v265
    %v298 = vpack.c.b16 %v266, %v266
    %331 = vst [vmem:[#allocation5] sm:$0xf] %v267
    %332 = vst [vmem:[#allocation5 + $0x4] sm:$0xf] %v268
    %333 = vst [vmem:[#allocation5 + $0x8] sm:$0xf] %v269
    %334 = vst [vmem:[#allocation5 + $0xc] sm:$0xf] %v270
    %335 = vst [vmem:[#allocation5 + $0x10] sm:$0xf] %v271
    %336 = vst [vmem:[#allocation5 + $0x14] sm:$0xf] %v272
    %337 = vst [vmem:[#allocation5 + $0x18] sm:$0xf] %v273
    %338 = vst [vmem:[#allocation5 + $0x1c] sm:$0xf] %v274
    %339 = vst [vmem:[#allocation5 + $0x20] sm:$0xf] %v275
    %340 = vst [vmem:[#allocation5 + $0x24] sm:$0xf] %v276
    %341 = vst [vmem:[#allocation5 + $0x28] sm:$0xf] %v277
    %342 = vst [vmem:[#allocation5 + $0x2c] sm:$0xf] %v278
    %343 = vst [vmem:[#allocation5 + $0x30] sm:$0xf] %v279
    %344 = vst [vmem:[#allocation5 + $0x34] sm:$0xf] %v280
    %345 = vst [vmem:[#allocation5 + $0x38] sm:$0xf] %v281
    %346 = vst [vmem:[#allocation5 + $0x3c] sm:$0xf] %v282
    %347 = vst [vmem:[#allocation5 + $0x40] sm:$0xf] %v283
    %348 = vst [vmem:[#allocation5 + $0x44] sm:$0xf] %v284
    %349 = vst [vmem:[#allocation5 + $0x48] sm:$0xf] %v285
    %350 = vst [vmem:[#allocation5 + $0x4c] sm:$0xf] %v286
    %351 = vst [vmem:[#allocation5 + $0x50] sm:$0xf] %v287
    %352 = vst [vmem:[#allocation5 + $0x54] sm:$0xf] %v288
    %353 = vst [vmem:[#allocation5 + $0x58] sm:$0xf] %v289
    %354 = vst [vmem:[#allocation5 + $0x5c] sm:$0xf] %v290
    %355 = vst [vmem:[#allocation5 + $0x60] sm:$0xf] %v291
    %356 = vst [vmem:[#allocation5 + $0x64] sm:$0xf] %v292
    %357 = vst [vmem:[#allocation5 + $0x68] sm:$0xf] %v293
    %358 = vst [vmem:[#allocation5 + $0x6c] sm:$0xf] %v294
    %359 = vst [vmem:[#allocation5 + $0x70] sm:$0xf] %v295
    %360 = vst [vmem:[#allocation5 + $0x74] sm:$0xf] %v296
    %361 = vst [vmem:[#allocation5 + $0x78] sm:$0xf] %v297
    %362 = vst [vmem:[#allocation5 + $0x7c] sm:$0xf] %v298
    // Predicated region
    $region18: #{_lambda_.7} parent=1 // pred_check
      _
    $region19: #{_lambda_.7} parent=1 // pred_check_branch
      %364 = sbr.rel (0) target = $region21
    $region20: #{_lambda_.7} parent=1 // pred_region
      %s366 = ssub.s32 2048, 2048
      %367 = vsyncadd [#allocation4], %s366
      %s368 = sshll.u32 [#allocation5], 4
      %s369 = int_to_ptr.vmem [resolvable:$true] %s368
      %374 = dma.vmem_to_hbm [thread:$0]  %s369, 2048, %s3, [#allocation4], 64, 64, 4
    $region21: #{_lambda_.7} parent=1 // pred_fallthru
      _
    // Predicated region
    $region22: #{_lambda_.7} parent=1 // pred_check
      _
    $region23: #{_lambda_.7} parent=1 // pred_check_branch
      %376 = sbr.rel (0) target = $region25
    $region24: #{_lambda_.7} parent=1 // pred_region
      %377 = dma.done [#allocation4], 2048
    $region25: #{_lambda_.7} parent=1 // pred_fallthru
      _
    %378 = vsyncpa [#allocation3], 1
    %379 = vsyncpa [#allocation4], 1

// kernel: _lambda_.5
$region0: #{_lambda_.5}
  #allocation0 [shape = 'u32[]', space=smem, size = 0x4, offset = 0x4, fixed_abs, tag = 'smem constant byte address 0x4 - core index']
  #allocation1 [shape = 'u32[144,128]{1,0:T(1,128)}', space=vmem, size = 0x12000, scoped, tag = 'internal scratch']
  %s0 = inlined_call_operand.hbm [shape: f32[256,128], index: 0, kind: input, shape index: {}]
  %s1 = inlined_call_operand.hbm [shape: f32[2,256,128], index: 1, kind: input, shape index: {}]
  %s2 = inlined_call_operand.hbm [shape: bf16[128,128], index: 2, kind: input, shape index: {}]
  %s3 = inlined_call_operand.hbm [shape: f32[1,128], index: 3, kind: input, shape index: {}]
  %s4 = inlined_call_operand.hbm [shape: bf16[256,128], index: 4, kind: output, shape index: {0}]
  %s5 = inlined_call_operand.hbm [shape: f32[1,8,128], index: 5, kind: output, shape index: {1}]
  %s6 = inlined_call_operand.hbm [shape: f32[1,8,128], index: 6, kind: output, shape index: {2}]
  %7 = xla_tuple %s4, %s5, %s6
  %s8 = sld [smem:[#allocation0]]
  $region58: #{_lambda_.5} parent=0
    _
  %s10 = ssub.s32 1, %s8
  %s11 = scalar_select 0, %s10, %s8
  $region1: #{_lambda_.5} parent=0
    #allocation2 [shape = 'u8[131072]{0}', space=vmem, size = 0x20000, scoped, tag = 'input window, operand 0, single buffered']
    #allocation3 [shape = 's32[1]{0}', space=sflag, size = 0x4, scoped, tag = 'scoped memory for _lambda_.5']
    #allocation4 [shape = 's32[1]{0}', space=sflag, size = 0x4, scoped, tag = 'scoped memory for _lambda_.5']
    #allocation5 [shape = 'u8[262144]{0}', space=vmem, size = 0x40000, scoped, tag = 'input window, operand 1, single buffered']
    #allocation6 [shape = 's32[1]{0}', space=sflag, size = 0x4, scoped, tag = 'scoped memory for _lambda_.5']
    #allocation7 [shape = 'u8[32768]{0}', space=vmem, size = 0x8000, scoped, tag = 'input window, operand 2, single buffered']
    #allocation8 [shape = 'u8[512]{0}', space=vmem, size = 0x400, scoped, tag = 'input window, operand 3, single buffered']
    #allocation9 [shape = 's32[1]{0}', space=sflag, size = 0x4, scoped, tag = 'scoped memory for _lambda_.5']
    #allocation10 [shape = 'u8[65536]{0}', space=vmem, size = 0x10000, scoped, tag = 'output window, operand 0, single buffered']
    #allocation11 [shape = 'u8[4096]{0}', space=vmem, size = 0x1000, scoped, tag = 'output window, operand 1, single buffered']
    #allocation12 [shape = 's32[1]{0}', space=sflag, size = 0x4, scoped, tag = 'scoped memory for _lambda_.5']
    #allocation13 [shape = 'u8[4096]{0}', space=vmem, size = 0x1000, scoped, tag = 'output window, operand 2, single buffered']
    %12 = vsyncpa [#allocation3], 0
    %13 = vsyncpa [#allocation6], 0
    %14 = vsyncpa [#allocation9], 0
    %15 = vsyncpa [#allocation4], 0
    %16 = vsyncpa [#allocation12], 0
    // Predicated region
    $region2: #{_lambda_.5} parent=1 // pred_check
      _
    $region3: #{_lambda_.5} parent=1 // pred_check_branch
      %18 = sbr.rel (0) target = $region5
    $region4: #{_lambda_.5} parent=1 // pred_region
      %s20 = ssub.s32 4096, 4096
      %21 = vsyncadd [#allocation3], %s20
      %s22 = sshll.u32 [#allocation2], 4
      %s23 = int_to_ptr.vmem [resolvable:$true] %s22
      %28 = dma.hbm_to_vmem [thread:$0]  %s0, 4096, %s23, [#allocation3], 128, 128, 8
    $region5: #{_lambda_.5} parent=1 // pred_fallthru
      _
    // Predicated region
    $region6: #{_lambda_.5} parent=1 // pred_check
      _
    $region7: #{_lambda_.5} parent=1 // pred_check_branch
      %30 = sbr.rel (0) target = $region9
    $region8: #{_lambda_.5} parent=1 // pred_region
      %s32 = ssub.s32 8192, 8192
      %33 = vsyncadd [#allocation6], %s32
      %s34 = sshll.u32 [#allocation5], 4
      %s35 = int_to_ptr.vmem [resolvable:$true] %s34
      %40 = dma.hbm_to_vmem [thread:$0]  %s1, 8192, %s35, [#allocation6], 128, 128, 8
    $region9: #{_lambda_.5} parent=1 // pred_fallthru
      _
    // Predicated region
    $region10: #{_lambda_.5} parent=1 // pred_check
      _
    $region11: #{_lambda_.5} parent=1 // pred_check_branch
      %42 = sbr.rel (0) target = $region13
    $region12: #{_lambda_.5} parent=1 // pred_region
      %s44 = ssub.s32 1024, 1024
      %45 = vsyncadd [#allocation6], %s44
      %s46 = sshll.u32 [#allocation7], 4
      %s47 = int_to_ptr.vmem [resolvable:$true] %s46
      %52 = dma.hbm_to_vmem [thread:$0]  %s2, 1024, %s47, [#allocation6], 64, 64, 4
    $region13: #{_lambda_.5} parent=1 // pred_fallthru
      _
    // Predicated region
    $region14: #{_lambda_.5} parent=1 // pred_check
      _
    $region15: #{_lambda_.5} parent=1 // pred_check_branch
      %54 = sbr.rel (0) target = $region17
    $region16: #{_lambda_.5} parent=1 // pred_region
      %s56 = ssub.s32 16, 16
      %57 = vsyncadd [#allocation9], %s56
      %s59 = sshll.u32 [#allocation8], 4
      %s60 = int_to_ptr.vmem [resolvable:$true] %s59
      %62 = dma.hbm_to_vmem [thread:$0]  %s3, 16, %s60, [#allocation9]
    $region17: #{_lambda_.5} parent=1 // pred_fallthru
      _
    // Predicated region
    $region18: #{_lambda_.5} parent=1 // pred_check
      _
    $region19: #{_lambda_.5} parent=1 // pred_check_branch
      %64 = sbr.rel (0) target = $region21
    $region20: #{_lambda_.5} parent=1 // pred_region
      %65 = dma.done [#allocation3], 4096
    $region21: #{_lambda_.5} parent=1 // pred_fallthru
      _
    // Predicated region
    $region22: #{_lambda_.5} parent=1 // pred_check
      _
    $region23: #{_lambda_.5} parent=1 // pred_check_branch
      %67 = sbr.rel (0) target = $region25
    $region24: #{_lambda_.5} parent=1 // pred_region
      %68 = dma.done [#allocation6], 8192
    $region25: #{_lambda_.5} parent=1 // pred_fallthru
      _
    // Predicated region
    $region26: #{_lambda_.5} parent=1 // pred_check
      _
    $region27: #{_lambda_.5} parent=1 // pred_check_branch
      %70 = sbr.rel (0) target = $region29
    $region28: #{_lambda_.5} parent=1 // pred_region
      %71 = dma.done [#allocation6], 1024
    $region29: #{_lambda_.5} parent=1 // pred_fallthru
      _
    // Predicated region
    $region30: #{_lambda_.5} parent=1 // pred_check
      _
    $region31: #{_lambda_.5} parent=1 // pred_check_branch
      %73 = sbr.rel (0) target = $region33
    $region32: #{_lambda_.5} parent=1 // pred_region
      %74 = dma.done [#allocation9], 16
    $region33: #{_lambda_.5} parent=1 // pred_fallthru
      _
    %v76 = vld [vmem:[#allocation5] sm:$0xff]
    %v77 = vld [vmem:[#allocation5 + $0x8] sm:$0xff]
    %v78 = vld [vmem:[#allocation5 + $0x10] sm:$0xff]
    %v79 = vld [vmem:[#allocation5 + $0x18] sm:$0xff]
    %v80 = vld [vmem:[#allocation5 + $0x20] sm:$0xff]
    %v81 = vld [vmem:[#allocation5 + $0x28] sm:$0xff]
    %v82 = vld [vmem:[#allocation5 + $0x30] sm:$0xff]
    %v83 = vld [vmem:[#allocation5 + $0x38] sm:$0xff]
    %v84 = vld [vmem:[#allocation5 + $0x40] sm:$0xff]
    %v85 = vld [vmem:[#allocation5 + $0x48] sm:$0xff]
    %v86 = vld [vmem:[#allocation5 + $0x50] sm:$0xff]
    %v87 = vld [vmem:[#allocation5 + $0x58] sm:$0xff]
    %v88 = vld [vmem:[#allocation5 + $0x60] sm:$0xff]
    %v89 = vld [vmem:[#allocation5 + $0x68] sm:$0xff]
    %v90 = vld [vmem:[#allocation5 + $0x70] sm:$0xff]
    %v91 = vld [vmem:[#allocation5 + $0x78] sm:$0xff]
    %v92 = vld [vmem:[#allocation5 + $0x80] sm:$0xff]
    %v93 = vld [vmem:[#allocation5 + $0x88] sm:$0xff]
    %v94 = vld [vmem:[#allocation5 + $0x90] sm:$0xff]
    %v95 = vld [vmem:[#allocation5 + $0x98] sm:$0xff]
    %v96 = vld [vmem:[#allocation5 + $0xa0] sm:$0xff]
    %v97 = vld [vmem:[#allocation5 + $0xa8] sm:$0xff]
    %v98 = vld [vmem:[#allocation5 + $0xb0] sm:$0xff]
    %v99 = vld [vmem:[#allocation5 + $0xb8] sm:$0xff]
    %v100 = vld [vmem:[#allocation5 + $0xc0] sm:$0xff]
    %v101 = vld [vmem:[#allocation5 + $0xc8] sm:$0xff]
    %v102 = vld [vmem:[#allocation5 + $0xd0] sm:$0xff]
    %v103 = vld [vmem:[#allocation5 + $0xd8] sm:$0xff]
    %v104 = vld [vmem:[#allocation5 + $0xe0] sm:$0xff]
    %v105 = vld [vmem:[#allocation5 + $0xe8] sm:$0xff]
    %v106 = vld [vmem:[#allocation5 + $0xf0] sm:$0xff]
    %v107 = vld [vmem:[#allocation5 + $0xf8] sm:$0xff]
    %v108 = vld [vmem:[#allocation5 + $0x100] sm:$0xff]
    %v109 = vld [vmem:[#allocation5 + $0x108] sm:$0xff]
    %v110 = vld [vmem:[#allocation5 + $0x110] sm:$0xff]
    %v111 = vld [vmem:[#allocation5 + $0x118] sm:$0xff]
    %v112 = vld [vmem:[#allocation5 + $0x120] sm:$0xff]
    %v113 = vld [vmem:[#allocation5 + $0x128] sm:$0xff]
    %v114 = vld [vmem:[#allocation5 + $0x130] sm:$0xff]
    %v115 = vld [vmem:[#allocation5 + $0x138] sm:$0xff]
    %v116 = vld [vmem:[#allocation5 + $0x140] sm:$0xff]
    %v117 = vld [vmem:[#allocation5 + $0x148] sm:$0xff]
    %v118 = vld [vmem:[#allocation5 + $0x150] sm:$0xff]
    %v119 = vld [vmem:[#allocation5 + $0x158] sm:$0xff]
    %v120 = vld [vmem:[#allocation5 + $0x160] sm:$0xff]
    %v121 = vld [vmem:[#allocation5 + $0x168] sm:$0xff]
    %v122 = vld [vmem:[#allocation5 + $0x170] sm:$0xff]
    %v123 = vld [vmem:[#allocation5 + $0x178] sm:$0xff]
    %v124 = vld [vmem:[#allocation5 + $0x180] sm:$0xff]
    %v125 = vld [vmem:[#allocation5 + $0x188] sm:$0xff]
    %v126 = vld [vmem:[#allocation5 + $0x190] sm:$0xff]
    %v127 = vld [vmem:[#allocation5 + $0x198] sm:$0xff]
    %v128 = vld [vmem:[#allocation5 + $0x1a0] sm:$0xff]
    %v129 = vld [vmem:[#allocation5 + $0x1a8] sm:$0xff]
    %v130 = vld [vmem:[#allocation5 + $0x1b0] sm:$0xff]
    %v131 = vld [vmem:[#allocation5 + $0x1b8] sm:$0xff]
    %v132 = vld [vmem:[#allocation5 + $0x1c0] sm:$0xff]
    %v133 = vld [vmem:[#allocation5 + $0x1c8] sm:$0xff]
    %v134 = vld [vmem:[#allocation5 + $0x1d0] sm:$0xff]
    %v135 = vld [vmem:[#allocation5 + $0x1d8] sm:$0xff]
    %v136 = vld [vmem:[#allocation5 + $0x1e0] sm:$0xff]
    %v137 = vld [vmem:[#allocation5 + $0x1e8] sm:$0xff]
    %v138 = vld [vmem:[#allocation5 + $0x1f0] sm:$0xff]
    %v139 = vld [vmem:[#allocation5 + $0x1f8] sm:$0xff]
    %v140 = vadd.f32 %v76, %v108
    %v141 = vadd.f32 %v77, %v109
    %v142 = vadd.f32 %v78, %v110
    %v143 = vadd.f32 %v79, %v111
    %v144 = vadd.f32 %v80, %v112
    %v145 = vadd.f32 %v81, %v113
    %v146 = vadd.f32 %v82, %v114
    %v147 = vadd.f32 %v83, %v115
    %v148 = vadd.f32 %v84, %v116
    %v149 = vadd.f32 %v85, %v117
    %v150 = vadd.f32 %v86, %v118
    %v151 = vadd.f32 %v87, %v119
    %v152 = vadd.f32 %v88, %v120
    %v153 = vadd.f32 %v89, %v121
    %v154 = vadd.f32 %v90, %v122
    %v155 = vadd.f32 %v91, %v123
    %v156 = vadd.f32 %v92, %v124
    %v157 = vadd.f32 %v93, %v125
    %v158 = vadd.f32 %v94, %v126
    %v159 = vadd.f32 %v95, %v127
    %v160 = vadd.f32 %v96, %v128
    %v161 = vadd.f32 %v97, %v129
    %v162 = vadd.f32 %v98, %v130
    %v163 = vadd.f32 %v99, %v131
    %v164 = vadd.f32 %v100, %v132
    %v165 = vadd.f32 %v101, %v133
    %v166 = vadd.f32 %v102, %v134
    %v167 = vadd.f32 %v103, %v135
    %v168 = vadd.f32 %v104, %v136
    %v169 = vadd.f32 %v105, %v137
    %v170 = vadd.f32 %v106, %v138
    %v171 = vadd.f32 %v107, %v139
    %v172 = vld [vmem:[#allocation2] sm:$0xff]
    %v173 = vld [vmem:[#allocation2 + $0x8] sm:$0xff]
    %v174 = vld [vmem:[#allocation2 + $0x10] sm:$0xff]
    %v175 = vld [vmem:[#allocation2 + $0x18] sm:$0xff]
    %v176 = vld [vmem:[#allocation2 + $0x20] sm:$0xff]
    %v177 = vld [vmem:[#allocation2 + $0x28] sm:$0xff]
    %v178 = vld [vmem:[#allocation2 + $0x30] sm:$0xff]
    %v179 = vld [vmem:[#allocation2 + $0x38] sm:$0xff]
    %v180 = vld [vmem:[#allocation2 + $0x40] sm:$0xff]
    %v181 = vld [vmem:[#allocation2 + $0x48] sm:$0xff]
    %v182 = vld [vmem:[#allocation2 + $0x50] sm:$0xff]
    %v183 = vld [vmem:[#allocation2 + $0x58] sm:$0xff]
    %v184 = vld [vmem:[#allocation2 + $0x60] sm:$0xff]
    %v185 = vld [vmem:[#allocation2 + $0x68] sm:$0xff]
    %v186 = vld [vmem:[#allocation2 + $0x70] sm:$0xff]
    %v187 = vld [vmem:[#allocation2 + $0x78] sm:$0xff]
    %v188 = vld [vmem:[#allocation2 + $0x80] sm:$0xff]
    %v189 = vld [vmem:[#allocation2 + $0x88] sm:$0xff]
    %v190 = vld [vmem:[#allocation2 + $0x90] sm:$0xff]
    %v191 = vld [vmem:[#allocation2 + $0x98] sm:$0xff]
    %v192 = vld [vmem:[#allocation2 + $0xa0] sm:$0xff]
    %v193 = vld [vmem:[#allocation2 + $0xa8] sm:$0xff]
    %v194 = vld [vmem:[#allocation2 + $0xb0] sm:$0xff]
    %v195 = vld [vmem:[#allocation2 + $0xb8] sm:$0xff]
    %v196 = vld [vmem:[#allocation2 + $0xc0] sm:$0xff]
    %v197 = vld [vmem:[#allocation2 + $0xc8] sm:$0xff]
    %v198 = vld [vmem:[#allocation2 + $0xd0] sm:$0xff]
    %v199 = vld [vmem:[#allocation2 + $0xd8] sm:$0xff]
    %v200 = vld [vmem:[#allocation2 + $0xe0] sm:$0xff]
    %v201 = vld [vmem:[#allocation2 + $0xe8] sm:$0xff]
    %v202 = vld [vmem:[#allocation2 + $0xf0] sm:$0xff]
    %v203 = vld [vmem:[#allocation2 + $0xf8] sm:$0xff]
    %v204 = vadd.f32 %v172, %v140
    %v205 = vadd.f32 %v173, %v141
    %v206 = vadd.f32 %v174, %v142
    %v207 = vadd.f32 %v175, %v143
    %v208 = vadd.f32 %v176, %v144
    %v209 = vadd.f32 %v177, %v145
    %v210 = vadd.f32 %v178, %v146
    %v211 = vadd.f32 %v179, %v147
    %v212 = vadd.f32 %v180, %v148
    %v213 = vadd.f32 %v181, %v149
    %v214 = vadd.f32 %v182, %v150
    %v215 = vadd.f32 %v183, %v151
    %v216 = vadd.f32 %v184, %v152
    %v217 = vadd.f32 %v185, %v153
    %v218 = vadd.f32 %v186, %v154
    %v219 = vadd.f32 %v187, %v155
    %v220 = vadd.f32 %v188, %v156
    %v221 = vadd.f32 %v189, %v157
    %v222 = vadd.f32 %v190, %v158
    %v223 = vadd.f32 %v191, %v159
    %v224 = vadd.f32 %v192, %v160
    %v225 = vadd.f32 %v193, %v161
    %v226 = vadd.f32 %v194, %v162
    %v227 = vadd.f32 %v195, %v163
    %v228 = vadd.f32 %v196, %v164
    %v229 = vadd.f32 %v197, %v165
    %v230 = vadd.f32 %v198, %v166
    %v231 = vadd.f32 %v199, %v167
    %v232 = vadd.f32 %v200, %v168
    %v233 = vadd.f32 %v201, %v169
    %v234 = vadd.f32 %v202, %v170
    %v235 = vadd.f32 %v203, %v171
    %v236 = vpack.c.bf16 %v205, %v204
    %v237 = vpack.c.bf16 %v207, %v206
    %v238 = vpack.c.bf16 %v209, %v208
    %v239 = vpack.c.bf16 %v211, %v210
    %v240 = vpack.c.bf16 %v213, %v212
    %v241 = vpack.c.bf16 %v215, %v214
    %v242 = vpack.c.bf16 %v217, %v216
    %v243 = vpack.c.bf16 %v219, %v218
    %v244 = vpack.c.bf16 %v221, %v220
    %v245 = vpack.c.bf16 %v223, %v222
    %v246 = vpack.c.bf16 %v225, %v224
    %v247 = vpack.c.bf16 %v227, %v226
    %v248 = vpack.c.bf16 %v229, %v228
    %v249 = vpack.c.bf16 %v231, %v230
    %v250 = vpack.c.bf16 %v233, %v232
    %v251 = vpack.c.bf16 %v235, %v234
    %v252 = vld [vmem:[#allocation7] sm:$0xf]
    %v253 = vld [vmem:[#allocation7 + $0x4] sm:$0xf]
    %v254 = vld [vmem:[#allocation7 + $0x8] sm:$0xf]
    %v255 = vld [vmem:[#allocation7 + $0xc] sm:$0xf]
    %v256 = vld [vmem:[#allocation7 + $0x10] sm:$0xf]
    %v257 = vld [vmem:[#allocation7 + $0x14] sm:$0xf]
    %v258 = vld [vmem:[#allocation7 + $0x18] sm:$0xf]
    %v259 = vld [vmem:[#allocation7 + $0x1c] sm:$0xf]
    %v260 = vld [vmem:[#allocation7 + $0x20] sm:$0xf]
    %v261 = vld [vmem:[#allocation7 + $0x24] sm:$0xf]
    %v262 = vld [vmem:[#allocation7 + $0x28] sm:$0xf]
    %v263 = vld [vmem:[#allocation7 + $0x2c] sm:$0xf]
    %v264 = vld [vmem:[#allocation7 + $0x30] sm:$0xf]
    %v265 = vld [vmem:[#allocation7 + $0x34] sm:$0xf]
    %v266 = vld [vmem:[#allocation7 + $0x38] sm:$0xf]
    %v267 = vld [vmem:[#allocation7 + $0x3c] sm:$0xf]
    %v268 = vld [vmem:[#allocation8] sm:$0x1]
    %v270 = vlaneseq
    %v271 = vshrl.u32 %v270, 7
    %v272 = vsub.s32 0, %v271
    %v273 = vrot.slane %v268, %v272
    %v291 = vunpack.c.l.b16 %v252
    %v292 = vunpack.c.l.b16 %v253
    %v293 = vunpack.c.l.b16 %v254
    %v294 = vunpack.c.l.b16 %v255
    %v295 = vunpack.c.l.b16 %v256
    %v296 = vunpack.c.l.b16 %v257
    %v297 = vunpack.c.l.b16 %v258
    %v298 = vunpack.c.l.b16 %v259
    %v299 = vunpack.c.l.b16 %v260
    %v300 = vunpack.c.l.b16 %v261
    %v301 = vunpack.c.l.b16 %v262
    %v302 = vunpack.c.l.b16 %v263
    %v303 = vunpack.c.l.b16 %v264
    %v304 = vunpack.c.l.b16 %v265
    %v305 = vunpack.c.l.b16 %v266
    %v306 = vunpack.c.l.b16 %v267
    %v307 = vpack.c.b16 %v292, %v291
    %v308 = vpack.c.b16 %v294, %v293
    %v309 = vpack.c.b16 %v296, %v295
    %v310 = vpack.c.b16 %v298, %v297
    %v311 = vpack.c.b16 %v300, %v299
    %v312 = vpack.c.b16 %v302, %v301
    %v313 = vpack.c.b16 %v304, %v303
    %v314 = vpack.c.b16 %v306, %v305
    %323 = vmatprep.subr.bf16.mxu0 0
    %324 = vmatpush1.bf16.msra.mxu0 %v307
    %325 = vmatprep.subr.bf16.mxu0 0
    %326 = vmatpush1.bf16.msra.mxu0 %v308
    %327 = vmatprep.subr.bf16.mxu0 0
    %328 = vmatpush1.bf16.msra.mxu0 %v309
    %329 = vmatprep.subr.bf16.mxu0 0
    %330 = vmatpush1.bf16.msra.mxu0 %v310
    %331 = vmatprep.subr.bf16.mxu0 0
    %332 = vmatpush1.bf16.msra.mxu0 %v311
    %333 = vmatprep.subr.bf16.mxu0 0
    %334 = vmatpush1.bf16.msra.mxu0 %v312
    %335 = vmatprep.subr.bf16.mxu0 0
    %336 = vmatpush1.bf16.msra.mxu0 %v313
    %337 = vmatprep.subr.bf16.mxu0 0
    %338 = vmatpush1.bf16.msra.mxu0 %v314
    %339 = vmatprep.subr.bf16.mxu0 0
    %340 = vmatpush1.bf16.msra.mxu0 0
    %341 = vmatprep.subr.bf16.mxu0 0
    %342 = vmatpush1.bf16.msra.mxu0 0
    %343 = vmatprep.subr.bf16.mxu0 0
    %344 = vmatpush1.bf16.msra.mxu0 0
    %345 = vmatprep.subr.bf16.mxu0 0
    %346 = vmatpush1.bf16.msra.mxu0 0
    %347 = vmatprep.subr.bf16.mxu0 0
    %348 = vmatpush1.bf16.msra.mxu0 0
    %349 = vmatprep.subr.bf16.mxu0 0
    %350 = vmatpush1.bf16.msra.mxu0 0
    %351 = vmatprep.subr.bf16.mxu0 0
    %352 = vmatpush1.bf16.msra.mxu0 0
    %353 = vmatprep.subr.bf16.mxu0 0
    %354 = vmatpush1.bf16.msra.mxu0 0
    %355 = vmatprep.mubr.bf16.mxu0 0
    %356 = vmatmul.mubr.bf16.gmra.mrb[0].mxu0 %v236
    %v357 = vpop.f32.mrb[0].mxu0
    %v358 = vadd.f32 %v273, %v357
    %v359 = vpop.f32.mrb[0].mxu0
    %v360 = vpop.f32.mrb[0].mxu0
    %v361 = vadd.f32 %v273, %v360
    %v362 = vpop.f32.mrb[0].mxu0
    %363 = vmatprep.mubr.bf16.mxu0 0
    %364 = vmatmul.mubr.bf16.gmra.mrb[0].mxu0 %v237
    %v365 = vpop.f32.mrb[0].mxu0
    %v366 = vadd.f32 %v273, %v365
    %v367 = vpop.f32.mrb[0].mxu0
    %v368 = vpop.f32.mrb[0].mxu0
    %v369 = vadd.f32 %v273, %v368
    %v370 = vpop.f32.mrb[0].mxu0
    %371 = vmatprep.mubr.bf16.mxu0 0
    %372 = vmatmul.mubr.bf16.gmra.mrb[0].mxu0 %v238
    %v373 = vpop.f32.mrb[0].mxu0
    %v374 = vadd.f32 %v273, %v373
    %v375 = vpop.f32.mrb[0].mxu0
    %v376 = vpop.f32.mrb[0].mxu0
    %v377 = vadd.f32 %v273, %v376
    %v378 = vpop.f32.mrb[0].mxu0
    %379 = vmatprep.mubr.bf16.mxu0 0
    %380 = vmatmul.mubr.bf16.gmra.mrb[0].mxu0 %v239
    %v381 = vpop.f32.mrb[0].mxu0
    %v382 = vadd.f32 %v273, %v381
    %v383 = vpop.f32.mrb[0].mxu0
    %v384 = vpop.f32.mrb[0].mxu0
    %v385 = vadd.f32 %v273, %v384
    %v386 = vpop.f32.mrb[0].mxu0
    %387 = vmatprep.mubr.bf16.mxu0 0
    %388 = vmatmul.mubr.bf16.gmra.mrb[0].mxu0 %v240
    %v389 = vpop.f32.mrb[0].mxu0
    %v390 = vadd.f32 %v273, %v389
    %v391 = vpop.f32.mrb[0].mxu0
    %v392 = vpop.f32.mrb[0].mxu0
    %v393 = vadd.f32 %v273, %v392
    %v394 = vpop.f32.mrb[0].mxu0
    %395 = vmatprep.mubr.bf16.mxu0 0
    %396 = vmatmul.mubr.bf16.gmra.mrb[0].mxu0 %v241
    %v397 = vpop.f32.mrb[0].mxu0
    %v398 = vadd.f32 %v273, %v397
    %v399 = vpop.f32.mrb[0].mxu0
    %v400 = vpop.f32.mrb[0].mxu0
    %v401 = vadd.f32 %v273, %v400
    %v402 = vpop.f32.mrb[0].mxu0
    %403 = vmatprep.mubr.bf16.mxu0 0
    %404 = vmatmul.mubr.bf16.gmra.mrb[0].mxu0 %v242
    %v405 = vpop.f32.mrb[0].mxu0
    %v406 = vadd.f32 %v273, %v405
    %v407 = vpop.f32.mrb[0].mxu0
    %v408 = vpop.f32.mrb[0].mxu0
    %v409 = vadd.f32 %v273, %v408
    %v410 = vpop.f32.mrb[0].mxu0
    %411 = vmatprep.mubr.bf16.mxu0 0
    %412 = vmatmul.mubr.bf16.gmra.mrb[0].mxu0 %v243
    %v413 = vpop.f32.mrb[0].mxu0
    %v414 = vadd.f32 %v273, %v413
    %v415 = vpop.f32.mrb[0].mxu0
    %v416 = vpop.f32.mrb[0].mxu0
    %v417 = vadd.f32 %v273, %v416
    %v418 = vpop.f32.mrb[0].mxu0
    %419 = vmatprep.mubr.bf16.mxu0 0
    %420 = vmatmul.mubr.bf16.gmra.mrb[0].mxu0 %v244
    %v421 = vpop.f32.mrb[0].mxu0
    %v422 = vadd.f32 %v273, %v421
    %v423 = vpop.f32.mrb[0].mxu0
    %v424 = vpop.f32.mrb[0].mxu0
    %v425 = vadd.f32 %v273, %v424
    %v426 = vpop.f32.mrb[0].mxu0
    %427 = vmatprep.mubr.bf16.mxu0 0
    %428 = vmatmul.mubr.bf16.gmra.mrb[0].mxu0 %v245
    %v429 = vpop.f32.mrb[0].mxu0
    %v430 = vadd.f32 %v273, %v429
    %v431 = vpop.f32.mrb[0].mxu0
    %v432 = vpop.f32.mrb[0].mxu0
    %v433 = vadd.f32 %v273, %v432
    %v434 = vpop.f32.mrb[0].mxu0
    %435 = vmatprep.mubr.bf16.mxu0 0
    %436 = vmatmul.mubr.bf16.gmra.mrb[0].mxu0 %v246
    %v437 = vpop.f32.mrb[0].mxu0
    %v438 = vadd.f32 %v273, %v437
    %v439 = vpop.f32.mrb[0].mxu0
    %v440 = vpop.f32.mrb[0].mxu0
    %v441 = vadd.f32 %v273, %v440
    %v442 = vpop.f32.mrb[0].mxu0
    %443 = vmatprep.mubr.bf16.mxu0 0
    %444 = vmatmul.mubr.bf16.gmra.mrb[0].mxu0 %v247
    %v445 = vpop.f32.mrb[0].mxu0
    %v446 = vadd.f32 %v273, %v445
    %v447 = vpop.f32.mrb[0].mxu0
    %v448 = vpop.f32.mrb[0].mxu0
    %v449 = vadd.f32 %v273, %v448
    %v450 = vpop.f32.mrb[0].mxu0
    %451 = vmatprep.mubr.bf16.mxu0 0
    %452 = vmatmul.mubr.bf16.gmra.mrb[0].mxu0 %v248
    %v453 = vpop.f32.mrb[0].mxu0
    %v454 = vadd.f32 %v273, %v453
    %v455 = vpop.f32.mrb[0].mxu0
    %v456 = vpop.f32.mrb[0].mxu0
    %v457 = vadd.f32 %v273, %v456
    %v458 = vpop.f32.mrb[0].mxu0
    %459 = vmatprep.mubr.bf16.mxu0 0
    %460 = vmatmul.mubr.bf16.gmra.mrb[0].mxu0 %v249
    %v461 = vpop.f32.mrb[0].mxu0
    %v462 = vadd.f32 %v273, %v461
    %v463 = vpop.f32.mrb[0].mxu0
    %v464 = vpop.f32.mrb[0].mxu0
    %v465 = vadd.f32 %v273, %v464
    %v466 = vpop.f32.mrb[0].mxu0
    %467 = vmatprep.mubr.bf16.mxu0 0
    %468 = vmatmul.mubr.bf16.gmra.mrb[0].mxu0 %v250
    %v469 = vpop.f32.mrb[0].mxu0
    %v470 = vadd.f32 %v273, %v469
    %v471 = vpop.f32.mrb[0].mxu0
    %v472 = vpop.f32.mrb[0].mxu0
    %v473 = vadd.f32 %v273, %v472
    %v474 = vpop.f32.mrb[0].mxu0
    %475 = vmatprep.mubr.bf16.mxu0 0
    %476 = vmatmul.mubr.bf16.gmra.mrb[0].mxu0 %v251
    %v477 = vpop.f32.mrb[0].mxu0
    %v478 = vadd.f32 %v273, %v477
    %v479 = vpop.f32.mrb[0].mxu0
    %v480 = vpop.f32.mrb[0].mxu0
    %v481 = vadd.f32 %v273, %v480
    %v482 = vpop.f32.mrb[0].mxu0
    %483 = vdwg.mxu0
    %v484 = vpack.c.bf16 %v361, %v358
    %v485 = vpack.c.bf16 %v369, %v366
    %v486 = vpack.c.bf16 %v377, %v374
    %v487 = vpack.c.bf16 %v385, %v382
    %v488 = vpack.c.bf16 %v393, %v390
    %v489 = vpack.c.bf16 %v401, %v398
    %v490 = vpack.c.bf16 %v409, %v406
    %v491 = vpack.c.bf16 %v417, %v414
    %v492 = vpack.c.bf16 %v425, %v422
    %v493 = vpack.c.bf16 %v433, %v430
    %v494 = vpack.c.bf16 %v441, %v438
    %v495 = vpack.c.bf16 %v449, %v446
    %v496 = vpack.c.bf16 %v457, %v454
    %v497 = vpack.c.bf16 %v465, %v462
    %v498 = vpack.c.bf16 %v473, %v470
    %v499 = vpack.c.bf16 %v481, %v478
    %v516 = vunpack.c.l.b16 %v484
    %v517 = vunpack.c.h.b16 %v484
    %v518 = vunpack.c.l.b16 %v485
    %v519 = vunpack.c.h.b16 %v485
    %v520 = vunpack.c.l.b16 %v486
    %v521 = vunpack.c.h.b16 %v486
    %v522 = vunpack.c.l.b16 %v487
    %v523 = vunpack.c.h.b16 %v487
    %v524 = vunpack.c.l.b16 %v488
    %v525 = vunpack.c.h.b16 %v488
    %v526 = vunpack.c.l.b16 %v489
    %v527 = vunpack.c.h.b16 %v489
    %v528 = vunpack.c.l.b16 %v490
    %v529 = vunpack.c.h.b16 %v490
    %v530 = vunpack.c.l.b16 %v491
    %v531 = vunpack.c.h.b16 %v491
    %v532 = vunpack.c.l.b16 %v492
    %v533 = vunpack.c.h.b16 %v492
    %v534 = vunpack.c.l.b16 %v493
    %v535 = vunpack.c.h.b16 %v493
    %v536 = vunpack.c.l.b16 %v494
    %v537 = vunpack.c.h.b16 %v494
    %v538 = vunpack.c.l.b16 %v495
    %v539 = vunpack.c.h.b16 %v495
    %v540 = vunpack.c.l.b16 %v496
    %v541 = vunpack.c.h.b16 %v496
    %v542 = vunpack.c.l.b16 %v497
    %v543 = vunpack.c.h.b16 %v497
    %v544 = vunpack.c.l.b16 %v498
    %v545 = vunpack.c.h.b16 %v498
    %v546 = vunpack.c.l.b16 %v499
    %v547 = vunpack.c.h.b16 %v499
    %v548 = vpack.c.b16 %v516, %v516
    %v549 = vpack.c.b16 %v517, %v517
    %v550 = vpack.c.b16 %v518, %v518
    %v551 = vpack.c.b16 %v519, %v519
    %v552 = vpack.c.b16 %v520, %v520
    %v553 = vpack.c.b16 %v521, %v521
    %v554 = vpack.c.b16 %v522, %v522
    %v555 = vpack.c.b16 %v523, %v523
    %v556 = vpack.c.b16 %v524, %v524
    %v557 = vpack.c.b16 %v525, %v525
    %v558 = vpack.c.b16 %v526, %v526
    %v559 = vpack.c.b16 %v527, %v527
    %v560 = vpack.c.b16 %v528, %v528
    %v561 = vpack.c.b16 %v529, %v529
    %v562 = vpack.c.b16 %v530, %v530
    %v563 = vpack.c.b16 %v531, %v531
    %v564 = vpack.c.b16 %v532, %v532
    %v565 = vpack.c.b16 %v533, %v533
    %v566 = vpack.c.b16 %v534, %v534
    %v567 = vpack.c.b16 %v535, %v535
    %v568 = vpack.c.b16 %v536, %v536
    %v569 = vpack.c.b16 %v537, %v537
    %v570 = vpack.c.b16 %v538, %v538
    %v571 = vpack.c.b16 %v539, %v539
    %v572 = vpack.c.b16 %v540, %v540
    %v573 = vpack.c.b16 %v541, %v541
    %v574 = vpack.c.b16 %v542, %v542
    %v575 = vpack.c.b16 %v543, %v543
    %v576 = vpack.c.b16 %v544, %v544
    %v577 = vpack.c.b16 %v545, %v545
    %v578 = vpack.c.b16 %v546, %v546
    %v579 = vpack.c.b16 %v547, %v547
    %612 = vst [vmem:[#allocation10] sm:$0xf] %v548
    %613 = vst [vmem:[#allocation10 + $0x4] sm:$0xf] %v549
    %614 = vst [vmem:[#allocation10 + $0x8] sm:$0xf] %v550
    %615 = vst [vmem:[#allocation10 + $0xc] sm:$0xf] %v551
    %616 = vst [vmem:[#allocation10 + $0x10] sm:$0xf] %v552
    %617 = vst [vmem:[#allocation10 + $0x14] sm:$0xf] %v553
    %618 = vst [vmem:[#allocation10 + $0x18] sm:$0xf] %v554
    %619 = vst [vmem:[#allocation10 + $0x1c] sm:$0xf] %v555
    %620 = vst [vmem:[#allocation10 + $0x20] sm:$0xf] %v556
    %621 = vst [vmem:[#allocation10 + $0x24] sm:$0xf] %v557
    %622 = vst [vmem:[#allocation10 + $0x28] sm:$0xf] %v558
    %623 = vst [vmem:[#allocation10 + $0x2c] sm:$0xf] %v559
    %624 = vst [vmem:[#allocation10 + $0x30] sm:$0xf] %v560
    %625 = vst [vmem:[#allocation10 + $0x34] sm:$0xf] %v561
    %626 = vst [vmem:[#allocation10 + $0x38] sm:$0xf] %v562
    %627 = vst [vmem:[#allocation10 + $0x3c] sm:$0xf] %v563
    %628 = vst [vmem:[#allocation10 + $0x40] sm:$0xf] %v564
    %629 = vst [vmem:[#allocation10 + $0x44] sm:$0xf] %v565
    %630 = vst [vmem:[#allocation10 + $0x48] sm:$0xf] %v566
    %631 = vst [vmem:[#allocation10 + $0x4c] sm:$0xf] %v567
    %632 = vst [vmem:[#allocation10 + $0x50] sm:$0xf] %v568
    %633 = vst [vmem:[#allocation10 + $0x54] sm:$0xf] %v569
    %634 = vst [vmem:[#allocation10 + $0x58] sm:$0xf] %v570
    %635 = vst [vmem:[#allocation10 + $0x5c] sm:$0xf] %v571
    %636 = vst [vmem:[#allocation10 + $0x60] sm:$0xf] %v572
    %637 = vst [vmem:[#allocation10 + $0x64] sm:$0xf] %v573
    %638 = vst [vmem:[#allocation10 + $0x68] sm:$0xf] %v574
    %639 = vst [vmem:[#allocation10 + $0x6c] sm:$0xf] %v575
    %640 = vst [vmem:[#allocation10 + $0x70] sm:$0xf] %v576
    %641 = vst [vmem:[#allocation10 + $0x74] sm:$0xf] %v577
    %642 = vst [vmem:[#allocation10 + $0x78] sm:$0xf] %v578
    %643 = vst [vmem:[#allocation10 + $0x7c] sm:$0xf] %v579
    %v644 = vlaneseq
    %v645 = vshrl.u32 %v644, 7
    %v646 = vadd.s32 %v645, 8
    %v647 = vadd.s32 %v645, 16
    %v648 = vadd.s32 %v645, 24
    %v649 = vadd.s32 %v645, 32
    %v650 = vadd.s32 %v645, 40
    %v651 = vadd.s32 %v645, 48
    %v652 = vadd.s32 %v645, 56
    %v653 = vadd.s32 %v645, 64
    %v654 = vadd.s32 %v645, 72
    %v655 = vadd.s32 %v645, 80
    %v656 = vadd.s32 %v645, 88
    %v657 = vadd.s32 %v645, 96
    %v658 = vadd.s32 %v645, 104
    %v659 = vadd.s32 %v645, 112
    %v660 = vadd.s32 %v645, 120
    %v661 = vadd.s32 %v645, 128
    %v662 = vadd.s32 %v645, 136
    %v663 = vadd.s32 %v645, 144
    %v664 = vadd.s32 %v645, 152
    %v665 = vadd.s32 %v645, 160
    %v666 = vadd.s32 %v645, 168
    %v667 = vadd.s32 %v645, 176
    %v668 = vadd.s32 %v645, 184
    %v669 = vadd.s32 %v645, 192
    %v670 = vadd.s32 %v645, 200
    %v671 = vadd.s32 %v645, 208
    %v672 = vadd.s32 %v645, 216
    %v673 = vadd.s32 %v645, 224
    %v674 = vadd.s32 %v645, 232
    %v675 = vadd.s32 %v645, 240
    %v676 = vadd.s32 %v645, 248
    %s677 = smul.u32 0, 256
    %v678 = vstv %s677
    %v679 = vadd.s32 %v645, %v678
    %v680 = vadd.s32 %v646, %v678
    %v681 = vadd.s32 %v647, %v678
    %v682 = vadd.s32 %v648, %v678
    %v683 = vadd.s32 %v649, %v678
    %v684 = vadd.s32 %v650, %v678
    %v685 = vadd.s32 %v651, %v678
    %v686 = vadd.s32 %v652, %v678
    %v687 = vadd.s32 %v653, %v678
    %v688 = vadd.s32 %v654, %v678
    %v689 = vadd.s32 %v655, %v678
    %v690 = vadd.s32 %v656, %v678
    %v691 = vadd.s32 %v657, %v678
    %v692 = vadd.s32 %v658, %v678
    %v693 = vadd.s32 %v659, %v678
    %v694 = vadd.s32 %v660, %v678
    %v695 = vadd.s32 %v661, %v678
    %v696 = vadd.s32 %v662, %v678
    %v697 = vadd.s32 %v663, %v678
    %v698 = vadd.s32 %v664, %v678
    %v699 = vadd.s32 %v665, %v678
    %v700 = vadd.s32 %v666, %v678
    %v701 = vadd.s32 %v667, %v678
    %v702 = vadd.s32 %v668, %v678
    %v703 = vadd.s32 %v669, %v678
    %v704 = vadd.s32 %v670, %v678
    %v705 = vadd.s32 %v671, %v678
    %v706 = vadd.s32 %v672, %v678
    %v707 = vadd.s32 %v673, %v678
    %v708 = vadd.s32 %v674, %v678
    %v709 = vadd.s32 %v675, %v678
    %v710 = vadd.s32 %v676, %v678
    %vm711 = vcmp.lt.s32.totalorder %v679, 20
    %vm712 = vcmp.lt.s32.totalorder %v680, 20
    %vm713 = vcmp.lt.s32.totalorder %v681, 20
    %vm714 = vcmp.lt.s32.totalorder %v682, 20
    %vm715 = vcmp.lt.s32.totalorder %v683, 20
    %vm716 = vcmp.lt.s32.totalorder %v684, 20
    %vm717 = vcmp.lt.s32.totalorder %v685, 20
    %vm718 = vcmp.lt.s32.totalorder %v686, 20
    %vm719 = vcmp.lt.s32.totalorder %v687, 20
    %vm720 = vcmp.lt.s32.totalorder %v688, 20
    %vm721 = vcmp.lt.s32.totalorder %v689, 20
    %vm722 = vcmp.lt.s32.totalorder %v690, 20
    %vm723 = vcmp.lt.s32.totalorder %v691, 20
    %vm724 = vcmp.lt.s32.totalorder %v692, 20
    %vm725 = vcmp.lt.s32.totalorder %v693, 20
    %vm726 = vcmp.lt.s32.totalorder %v694, 20
    %vm727 = vcmp.lt.s32.totalorder %v695, 20
    %vm728 = vcmp.lt.s32.totalorder %v696, 20
    %vm729 = vcmp.lt.s32.totalorder %v697, 20
    %vm730 = vcmp.lt.s32.totalorder %v698, 20
    %vm731 = vcmp.lt.s32.totalorder %v699, 20
    %vm732 = vcmp.lt.s32.totalorder %v700, 20
    %vm733 = vcmp.lt.s32.totalorder %v701, 20
    %vm734 = vcmp.lt.s32.totalorder %v702, 20
    %vm735 = vcmp.lt.s32.totalorder %v703, 20
    %vm736 = vcmp.lt.s32.totalorder %v704, 20
    %vm737 = vcmp.lt.s32.totalorder %v705, 20
    %vm738 = vcmp.lt.s32.totalorder %v706, 20
    %vm739 = vcmp.lt.s32.totalorder %v707, 20
    %vm740 = vcmp.lt.s32.totalorder %v708, 20
    %vm741 = vcmp.lt.s32.totalorder %v709, 20
    %vm742 = vcmp.lt.s32.totalorder %v710, 20
    %v743 = vsel %vm711, 1, 0
    %v744 = vsel %vm712, 1, 0
    %v745 = vsel %vm713, 1, 0
    %v746 = vsel %vm714, 1, 0
    %v747 = vsel %vm715, 1, 0
    %v748 = vsel %vm716, 1, 0
    %v749 = vsel %vm717, 1, 0
    %v750 = vsel %vm718, 1, 0
    %v751 = vsel %vm719, 1, 0
    %v752 = vsel %vm720, 1, 0
    %v753 = vsel %vm721, 1, 0
    %v754 = vsel %vm722, 1, 0
    %v755 = vsel %vm723, 1, 0
    %v756 = vsel %vm724, 1, 0
    %v757 = vsel %vm725, 1, 0
    %v758 = vsel %vm726, 1, 0
    %v759 = vsel %vm727, 1, 0
    %v760 = vsel %vm728, 1, 0
    %v761 = vsel %vm729, 1, 0
    %v762 = vsel %vm730, 1, 0
    %v763 = vsel %vm731, 1, 0
    %v764 = vsel %vm732, 1, 0
    %v765 = vsel %vm733, 1, 0
    %v766 = vsel %vm734, 1, 0
    %v767 = vsel %vm735, 1, 0
    %v768 = vsel %vm736, 1, 0
    %v769 = vsel %vm737, 1, 0
    %v770 = vsel %vm738, 1, 0
    %v771 = vsel %vm739, 1, 0
    %v772 = vsel %vm740, 1, 0
    %v773 = vsel %vm741, 1, 0
    %v774 = vsel %vm742, 1, 0
    %v775 = vcvt.s32.f32 %v743
    %v776 = vcvt.s32.f32 %v744
    %v777 = vcvt.s32.f32 %v745
    %v778 = vcvt.s32.f32 %v746
    %v779 = vcvt.s32.f32 %v747
    %v780 = vcvt.s32.f32 %v748
    %v781 = vcvt.s32.f32 %v749
    %v782 = vcvt.s32.f32 %v750
    %v783 = vcvt.s32.f32 %v751
    %v784 = vcvt.s32.f32 %v752
    %v785 = vcvt.s32.f32 %v753
    %v786 = vcvt.s32.f32 %v754
    %v787 = vcvt.s32.f32 %v755
    %v788 = vcvt.s32.f32 %v756
    %v789 = vcvt.s32.f32 %v757
    %v790 = vcvt.s32.f32 %v758
    %v791 = vcvt.s32.f32 %v759
    %v792 = vcvt.s32.f32 %v760
    %v793 = vcvt.s32.f32 %v761
    %v794 = vcvt.s32.f32 %v762
    %v795 = vcvt.s32.f32 %v763
    %v796 = vcvt.s32.f32 %v764
    %v797 = vcvt.s32.f32 %v765
    %v798 = vcvt.s32.f32 %v766
    %v799 = vcvt.s32.f32 %v767
    %v800 = vcvt.s32.f32 %v768
    %v801 = vcvt.s32.f32 %v769
    %v802 = vcvt.s32.f32 %v770
    %v803 = vcvt.s32.f32 %v771
    %v804 = vcvt.s32.f32 %v772
    %v805 = vcvt.s32.f32 %v773
    %v806 = vcvt.s32.f32 %v774
    %s807 = ssub.s32 20, %s677
    %p808 = scmp.lt.s32.totalorder %s807, 256
    %s809 = scalar_select %p808, %s807, 256
    %p810 = scmp.gt.s32.totalorder %s809, 1
    %s811 = scalar_select %p810, %s809, 1
    %s812 = scvt.s32.f32 %s811
    %v813 = vmul.f32 %v358, %v775
    %v814 = vmul.f32 %v361, %v776
    %v815 = vmul.f32 %v366, %v777
    %v816 = vmul.f32 %v369, %v778
    %v817 = vmul.f32 %v374, %v779
    %v818 = vmul.f32 %v377, %v780
    %v819 = vmul.f32 %v382, %v781
    %v820 = vmul.f32 %v385, %v782
    %v821 = vmul.f32 %v390, %v783
    %v822 = vmul.f32 %v393, %v784
    %v823 = vmul.f32 %v398, %v785
    %v824 = vmul.f32 %v401, %v786
    %v825 = vmul.f32 %v406, %v787
    %v826 = vmul.f32 %v409, %v788
    %v827 = vmul.f32 %v414, %v789
    %v828 = vmul.f32 %v417, %v790
    %v829 = vmul.f32 %v422, %v791
    %v830 = vmul.f32 %v425, %v792
    %v831 = vmul.f32 %v430, %v793
    %v832 = vmul.f32 %v433, %v794
    %v833 = vmul.f32 %v438, %v795
    %v834 = vmul.f32 %v441, %v796
    %v835 = vmul.f32 %v446, %v797
    %v836 = vmul.f32 %v449, %v798
    %v837 = vmul.f32 %v454, %v799
    %v838 = vmul.f32 %v457, %v800
    %v839 = vmul.f32 %v462, %v801
    %v840 = vmul.f32 %v465, %v802
    %v841 = vmul.f32 %v470, %v803
    %v842 = vmul.f32 %v473, %v804
    %v843 = vmul.f32 %v478, %v805
    %v844 = vmul.f32 %v481, %v806
    %v845 = vadd.f32 %v813, %v814
    %v846 = vadd.f32 %v845, %v815
    %v847 = vadd.f32 %v846, %v816
    %v848 = vadd.f32 %v847, %v817
    %v849 = vadd.f32 %v848, %v818
    %v850 = vadd.f32 %v849, %v819
    %v851 = vadd.f32 %v850, %v820
    %v852 = vadd.f32 %v851, %v821
    %v853 = vadd.f32 %v852, %v822
    %v854 = vadd.f32 %v853, %v823
    %v855 = vadd.f32 %v854, %v824
    %v856 = vadd.f32 %v855, %v825
    %v857 = vadd.f32 %v856, %v826
    %v858 = vadd.f32 %v857, %v827
    %v859 = vadd.f32 %v858, %v828
    %v860 = vadd.f32 %v859, %v829
    %v861 = vadd.f32 %v860, %v830
    %v862 = vadd.f32 %v861, %v831
    %v863 = vadd.f32 %v862, %v832
    %v864 = vadd.f32 %v863, %v833
    %v865 = vadd.f32 %v864, %v834
    %v866 = vadd.f32 %v865, %v835
    %v867 = vadd.f32 %v866, %v836
    %v868 = vadd.f32 %v867, %v837
    %v869 = vadd.f32 %v868, %v838
    %v870 = vadd.f32 %v869, %v839
    %v871 = vadd.f32 %v870, %v840
    %v872 = vadd.f32 %v871, %v841
    %v873 = vadd.f32 %v872, %v842
    %v874 = vadd.f32 %v873, %v843
    %v875 = vadd.f32 %v874, %v844
    %v876 = vrot.slane %v875, 4
    %v877 = vadd.f32 %v875, %v876
    %v878 = vrot.slane %v877, 2
    %v879 = vadd.f32 %v877, %v878
    %v880 = vrot.slane %v879, 1
    %v881 = vadd.f32 %v879, %v880
    %v882 = vstv %s812
    %v883 = vrcp.pop %v882
    %s884 = vtos %v883
    %v885 = vstv %s884
    %v886 = vmul.f32 %v881, %v885
    %v887 = vsub.f32 %v358, %v886
    %v888 = vsub.f32 %v361, %v886
    %v889 = vsub.f32 %v366, %v886
    %v890 = vsub.f32 %v369, %v886
    %v891 = vsub.f32 %v374, %v886
    %v892 = vsub.f32 %v377, %v886
    %v893 = vsub.f32 %v382, %v886
    %v894 = vsub.f32 %v385, %v886
    %v895 = vsub.f32 %v390, %v886
    %v896 = vsub.f32 %v393, %v886
    %v897 = vsub.f32 %v398, %v886
    %v898 = vsub.f32 %v401, %v886
    %v899 = vsub.f32 %v406, %v886
    %v900 = vsub.f32 %v409, %v886
    %v901 = vsub.f32 %v414, %v886
    %v902 = vsub.f32 %v417, %v886
    %v903 = vsub.f32 %v422, %v886
    %v904 = vsub.f32 %v425, %v886
    %v905 = vsub.f32 %v430, %v886
    %v906 = vsub.f32 %v433, %v886
    %v907 = vsub.f32 %v438, %v886
    %v908 = vsub.f32 %v441, %v886
    %v909 = vsub.f32 %v446, %v886
    %v910 = vsub.f32 %v449, %v886
    %v911 = vsub.f32 %v454, %v886
    %v912 = vsub.f32 %v457, %v886
    %v913 = vsub.f32 %v462, %v886
    %v914 = vsub.f32 %v465, %v886
    %v915 = vsub.f32 %v470, %v886
    %v916 = vsub.f32 %v473, %v886
    %v917 = vsub.f32 %v478, %v886
    %v918 = vsub.f32 %v481, %v886
    %v919 = vmul.f32 %v887, %v775
    %v920 = vmul.f32 %v888, %v776
    %v921 = vmul.f32 %v889, %v777
    %v922 = vmul.f32 %v890, %v778
    %v923 = vmul.f32 %v891, %v779
    %v924 = vmul.f32 %v892, %v780
    %v925 = vmul.f32 %v893, %v781
    %v926 = vmul.f32 %v894, %v782
    %v927 = vmul.f32 %v895, %v783
    %v928 = vmul.f32 %v896, %v784
    %v929 = vmul.f32 %v897, %v785
    %v930 = vmul.f32 %v898, %v786
    %v931 = vmul.f32 %v899, %v787
    %v932 = vmul.f32 %v900, %v788
    %v933 = vmul.f32 %v901, %v789
    %v934 = vmul.f32 %v902, %v790
    %v935 = vmul.f32 %v903, %v791
    %v936 = vmul.f32 %v904, %v792
    %v937 = vmul.f32 %v905, %v793
    %v938 = vmul.f32 %v906, %v794
    %v939 = vmul.f32 %v907, %v795
    %v940 = vmul.f32 %v908, %v796
    %v941 = vmul.f32 %v909, %v797
    %v942 = vmul.f32 %v910, %v798
    %v943 = vmul.f32 %v911, %v799
    %v944 = vmul.f32 %v912, %v800
    %v945 = vmul.f32 %v913, %v801
    %v946 = vmul.f32 %v914, %v802
    %v947 = vmul.f32 %v915, %v803
    %v948 = vmul.f32 %v916, %v804
    %v949 = vmul.f32 %v917, %v805
    %v950 = vmul.f32 %v918, %v806
    %v951 = vmul.f32 %v919, %v919
    %v952 = vmul.f32 %v920, %v920
    %v953 = vmul.f32 %v921, %v921
    %v954 = vmul.f32 %v922, %v922
    %v955 = vmul.f32 %v923, %v923
    %v956 = vmul.f32 %v924, %v924
    %v957 = vmul.f32 %v925, %v925
    %v958 = vmul.f32 %v926, %v926
    %v959 = vmul.f32 %v927, %v927
    %v960 = vmul.f32 %v928, %v928
    %v961 = vmul.f32 %v929, %v929
    %v962 = vmul.f32 %v930, %v930
    %v963 = vmul.f32 %v931, %v931
    %v964 = vmul.f32 %v932, %v932
    %v965 = vmul.f32 %v933, %v933
    %v966 = vmul.f32 %v934, %v934
    %v967 = vmul.f32 %v935, %v935
    %v968 = vmul.f32 %v936, %v936
    %v969 = vmul.f32 %v937, %v937
    %v970 = vmul.f32 %v938, %v938
    %v971 = vmul.f32 %v939, %v939
    %v972 = vmul.f32 %v940, %v940
    %v973 = vmul.f32 %v941, %v941
    %v974 = vmul.f32 %v942, %v942
    %v975 = vmul.f32 %v943, %v943
    %v976 = vmul.f32 %v944, %v944
    %v977 = vmul.f32 %v945, %v945
    %v978 = vmul.f32 %v946, %v946
    %v979 = vmul.f32 %v947, %v947
    %v980 = vmul.f32 %v948, %v948
    %v981 = vmul.f32 %v949, %v949
    %v982 = vmul.f32 %v950, %v950
    %v983 = vadd.f32 %v951, %v952
    %v984 = vadd.f32 %v983, %v953
    %v985 = vadd.f32 %v984, %v954
    %v986 = vadd.f32 %v985, %v955
    %v987 = vadd.f32 %v986, %v956
    %v988 = vadd.f32 %v987, %v957
    %v989 = vadd.f32 %v988, %v958
    %v990 = vadd.f32 %v989, %v959
    %v991 = vadd.f32 %v990, %v960
    %v992 = vadd.f32 %v991, %v961
    %v993 = vadd.f32 %v992, %v962
    %v994 = vadd.f32 %v993, %v963
    %v995 = vadd.f32 %v994, %v964
    %v996 = vadd.f32 %v995, %v965
    %v997 = vadd.f32 %v996, %v966
    %v998 = vadd.f32 %v997, %v967
    %v999 = vadd.f32 %v998, %v968
    %v1000 = vadd.f32 %v999, %v969
    %v1001 = vadd.f32 %v1000, %v970
    %v1002 = vadd.f32 %v1001, %v971
    %v1003 = vadd.f32 %v1002, %v972
    %v1004 = vadd.f32 %v1003, %v973
    %v1005 = vadd.f32 %v1004, %v974
    %v1006 = vadd.f32 %v1005, %v975
    %v1007 = vadd.f32 %v1006, %v976
    %v1008 = vadd.f32 %v1007, %v977
    %v1009 = vadd.f32 %v1008, %v978
    %v1010 = vadd.f32 %v1009, %v979
    %v1011 = vadd.f32 %v1010, %v980
    %v1012 = vadd.f32 %v1011, %v981
    %v1013 = vadd.f32 %v1012, %v982
    %v1014 = vrot.slane %v1013, 4
    %v1015 = vadd.f32 %v1013, %v1014
    %v1016 = vrot.slane %v1015, 2
    %v1017 = vadd.f32 %v1015, %v1016
    %v1018 = vrot.slane %v1017, 1
    %v1019 = vadd.f32 %v1017, %v1018
    %vm1020 = vcmp.eq.s32.totalorder %v645, 0
    %v1021 = vsel %vm1020, %v881, 0.0
    %1022 = vst [vmem:[#allocation11] sm:$0xff] %v1021
    %v1023 = vsel %vm1020, %v1019, 0.0
    %1024 = vst [vmem:[#allocation13] sm:$0xff] %v1023
    // Predicated region
    $region34: #{_lambda_.5} parent=1 // pred_check
      _
    $region35: #{_lambda_.5} parent=1 // pred_check_branch
      %1026 = sbr.rel (0) target = $region37
    $region36: #{_lambda_.5} parent=1 // pred_region
      %s1028 = ssub.s32 2048, 2048
      %1029 = vsyncadd [#allocation4], %s1028
      %s1030 = sshll.u32 [#allocation10], 4
      %s1031 = int_to_ptr.vmem [resolvable:$true] %s1030
      %1036 = dma.vmem_to_hbm [thread:$0]  %s1031, 2048, %s4, [#allocation4], 64, 64, 4
    $region37: #{_lambda_.5} parent=1 // pred_fallthru
      _
    // Predicated region
    $region38: #{_lambda_.5} parent=1 // pred_check
      _
    $region39: #{_lambda_.5} parent=1 // pred_check_branch
      %1038 = sbr.rel (0) target = $region41
    $region40: #{_lambda_.5} parent=1 // pred_region
      %s1040 = ssub.s32 128, 128
      %1041 = vsyncadd [#allocation12], %s1040
      %s1043 = sshll.u32 [#allocation11], 4
      %s1044 = int_to_ptr.vmem [resolvable:$true] %s1043
      %1046 = dma.vmem_to_hbm [thread:$0]  %s1044, 128, %s5, [#allocation12]
    $region41: #{_lambda_.5} parent=1 // pred_fallthru
      _
    // Predicated region
    $region42: #{_lambda_.5} parent=1 // pred_check
      _
    $region43: #{_lambda_.5} parent=1 // pred_check_branch
      %1048 = sbr.rel (0) target = $region45
    $region44: #{_lambda_.5} parent=1 // pred_region
      %s1050 = ssub.s32 128, 128
      %1051 = vsyncadd [#allocation12], %s1050
      %s1053 = sshll.u32 [#allocation13], 4
      %s1054 = int_to_ptr.vmem [resolvable:$true] %s1053
      %1056 = dma.vmem_to_hbm [thread:$0]  %s1054, 128, %s6, [#allocation12]
    $region45: #{_lambda_.5} parent=1 // pred_fallthru
      _
    // Predicated region
    $region46: #{_lambda_.5} parent=1 // pred_check
      _
    $region47: #{_lambda_.5} parent=1 // pred_check_branch
      %1058 = sbr.rel (0) target = $region49
    $region48: #{_lambda_.5} parent=1 // pred_region
      %1059 = dma.done [#allocation4], 2048
    $region49: #{_lambda_.5} parent=1 // pred_fallthru
      _
    // Predicated region
    $region50: #{_lambda_.5} parent=1 // pred_check
      _
    $region51: #{_lambda_.5} parent=1 // pred_check_branch
      %1061 = sbr.rel (0) target = $region53
    $region52: #{_lambda_.5} parent=1 // pred_region
      %1062 = dma.done [#allocation12], 128
    $region53: #{_lambda_.5} parent=1 // pred_fallthru
      _
    // Predicated region
    $region54: #{_lambda_.5} parent=1 // pred_check
      _
    $region55: #{_lambda_.5} parent=1 // pred_check_branch
      %1064 = sbr.rel (0) target = $region57
    $region56: #{_lambda_.5} parent=1 // pred_region
      %1065 = dma.done [#allocation12], 128
    $region57: #{_lambda_.5} parent=1 // pred_fallthru
      _
    %1066 = vsyncpa [#allocation3], 1
    %1067 = vsyncpa [#allocation6], 1
    %1068 = vsyncpa [#allocation9], 1
    %1069 = vsyncpa [#allocation4], 1
    %1070 = vsyncpa [#allocation12], 1

// kernel: _lambda_.4
$region0: #{_lambda_.4}
  #allocation0 [shape = 'u32[]', space=smem, size = 0x4, offset = 0x4, fixed_abs, tag = 'smem constant byte address 0x4 - core index']
  #allocation1 [shape = 'u32[144,128]{1,0:T(1,128)}', space=vmem, size = 0x12000, scoped, tag = 'internal scratch']
  %s0 = inlined_call_operand.hbm [shape: s32[512,1], index: 0, kind: input, shape index: {}]
  %s1 = inlined_call_operand.hbm [shape: s32[1,512], index: 1, kind: input, shape index: {}]
  %s2 = inlined_call_operand.hbm [shape: bf16[512,128], index: 2, kind: input, shape index: {}]
  %s3 = inlined_call_operand.hbm [shape: bf16[256,128], index: 3, kind: input, shape index: {}]
  %s4 = inlined_call_operand.hbm [shape: bf16[128,128], index: 4, kind: input, shape index: {}]
  %s5 = inlined_call_operand.hbm [shape: f32[1,128], index: 5, kind: input, shape index: {}]
  %s6 = inlined_call_operand.hbm [shape: f32[2,256,128], index: 6, kind: output, shape index: {}]
  %s7 = sld [smem:[#allocation0]]
  $region85: #{_lambda_.4} parent=0
    _
  %s9 = ssub.s32 1, %s7
  %s10 = scalar_select 0, %s9, %s7
  $region1: #{_lambda_.4} parent=0
    #allocation2 [shape = 'u8[262144]{0}', space=vmem, size = 0x40000, scoped, tag = 'input window, operand 0']
    #allocation3 [shape = 's32[2]{0}', space=sflag, size = 0x8, scoped, tag = 'scoped memory for _lambda_.4']
    #allocation4 [shape = 's32[2]{0}', space=sflag, size = 0x8, scoped, tag = 'scoped memory for _lambda_.4']
    #allocation5 [shape = 'u8[2048]{0}', space=vmem, size = 0x800, scoped, tag = 'input window, operand 1']
    #allocation6 [shape = 's32[2]{0}', space=sflag, size = 0x8, scoped, tag = 'scoped memory for _lambda_.4']
    #allocation7 [shape = 'u8[131072]{0}', space=vmem, size = 0x20000, scoped, tag = 'input window, operand 2']
    #allocation8 [shape = 'u8[65536]{0}', space=vmem, size = 0x10000, scoped, tag = 'input window, operand 3, single buffered']
    #allocation9 [shape = 's32[1]{0}', space=sflag, size = 0x4, scoped, tag = 'scoped memory for _lambda_.4']
    #allocation10 [shape = 'u8[32768]{0}', space=vmem, size = 0x8000, scoped, tag = 'input window, operand 4, single buffered']
    #allocation11 [shape = 'u8[512]{0}', space=vmem, size = 0x400, scoped, tag = 'input window, operand 5, single buffered']
    #allocation12 [shape = 's32[1]{0}', space=sflag, size = 0x4, scoped, tag = 'scoped memory for _lambda_.4']
    #allocation13 [shape = 'u8[262144]{0}', space=vmem, size = 0x40000, scoped, tag = 'output window, operand 0']
    %11 = vsyncpa [#allocation3], 0
    %s12 = scalar_lea.sflag [#allocation3], 1
    %13 = vsyncpa %s12, 0
    %14 = vsyncpa [#allocation6], 0
    %s15 = scalar_lea.sflag [#allocation6], 1
    %16 = vsyncpa %s15, 0
    %17 = vsyncpa [#allocation9], 0
    %18 = vsyncpa [#allocation12], 0
    %19 = vsyncpa [#allocation4], 0
    %s20 = scalar_lea.sflag [#allocation4], 1
    %21 = vsyncpa %s20, 0
    loop: start=0, step=1, limit=4
    $region2: #{_lambda_.4} parent=1 // loop_pre_header
      _
    $region3: #{_lambda_.4} parent=1 // loop_header
      %s23 = sphi 0, %s27
      %p24 = scmp.ge.s32.totalorder %s23, 4
      %s30 = sphi 0, %s42
      %s31 = sphi 0, %s38
      %s32 = sphi 0, %s30
      %s33 = sphi 0, %s31
      %s34 = sphi 0, %s32
      %s35 = sphi 0, %s33
      %s47 = sphi 0, %s49
      %s50 = sphi 0, %s47
      %s51 = sphi 0, %s50
      %s67 = sphi 0, %s51
      %s75 = sphi 0, %s77
      %s78 = sphi 0, %s75
      %s79 = sphi 0, %s78
      %s95 = sphi 0, %s79
      %s103 = sphi 0, %s105
      %s106 = sphi 0, %s103
      %s107 = sphi 0, %s106
      %s123 = sphi 0, %s107
      %s127 = sphi 0, %s127
      %s129 = sphi 0, %s127
      %s130 = sphi 0, %s129
      %s144 = sphi 0, %s130
      %s148 = sphi 0, %s148
      %s150 = sphi 0, %s148
      %s151 = sphi 0, %s150
      %s165 = sphi 0, %s151
      %s169 = sphi 0, %s169
      %s171 = sphi 0, %s169
      %s172 = sphi 0, %s171
      %s186 = sphi 0, %s172
      %s192 = sphi 0, %s194
      %s195 = sphi 0, %s192
      %s196 = sphi 0, %s195
      %s212 = sphi 0, %s196
    $region4: #{_lambda_.4} parent=1 // loop_header_branch
      %26 = sbr.rel (%p24) target = $region8
    $region5: #{_lambda_.4} parent=1 // loop_body
      %s28 = ssub.s32 %s23, 1
      %s29 = ssub.s32 %s23, 2
      %s36 = sadd.s32 1, %s31
      %p37 = scmp.ge.s32.totalorder %s36, 1
      %s38 = scalar_select %p37, 0, %s36
      %s39 = sadd.s32 1, %s30
      %s40 = scalar_select %p37, %s39, %s30
      %p41 = scmp.ge.s32.totalorder %s40, 2
      %s42 = scalar_select %p41, 0, %s40
      %s43 = sadd.s32 %s30, %s31
      %s44 = sadd.s32 %s42, %s38
      %s45 = ssub.s32 %s43, %s44
      %p46 = scmp.eq.s32.totalorder %s45, 0
      %s48 = sadd.s32 %s47, 1
      %s49 = scalar_select %p46, %s47, %s48
      %p52 = pneg %p46
      %p53 = scmp.eq.s32.totalorder %s23, 1
      %p54 = por %p52, %p53
      %p55 = scmp.ne.s32.totalorder %s47, %s50
      %p56 = scmp.eq.s32.totalorder %s23, 0
      %p57 = por %p55, %p56
      %p58 = scmp.ne.s32.totalorder %s47, %s50
      %p59 = scmp.eq.s32.totalorder %s28, 1
      %p60 = por %p58, %p59
      %p61 = scmp.ne.s32.totalorder %s50, %s51
      %p62 = scmp.eq.s32.totalorder %s28, 0
      %p63 = por %p61, %p62
      %p64 = scmp.ne.s32.totalorder %s50, %s51
      %p65 = scmp.eq.s32.totalorder %s29, 1
      %p66 = por %p64, %p65
      %p68 = scmp.ne.s32.totalorder %s51, %s67
      %p69 = scmp.eq.s32.totalorder %s29, 0
      %p70 = por %p68, %p69
      %s71 = sadd.s32 %s30, %s31
      %s72 = sadd.s32 %s42, %s38
      %s73 = ssub.s32 %s71, %s72
      %p74 = scmp.eq.s32.totalorder %s73, 0
      %s76 = sadd.s32 %s75, 1
      %s77 = scalar_select %p74, %s75, %s76
      %p80 = pneg %p74
      %p81 = scmp.eq.s32.totalorder %s23, 1
      %p82 = por %p80, %p81
      %p83 = scmp.ne.s32.totalorder %s75, %s78
      %p84 = scmp.eq.s32.totalorder %s23, 0
      %p85 = por %p83, %p84
      %p86 = scmp.ne.s32.totalorder %s75, %s78
      %p87 = scmp.eq.s32.totalorder %s28, 1
      %p88 = por %p86, %p87
      %p89 = scmp.ne.s32.totalorder %s78, %s79
      %p90 = scmp.eq.s32.totalorder %s28, 0
      %p91 = por %p89, %p90
      %p92 = scmp.ne.s32.totalorder %s78, %s79
      %p93 = scmp.eq.s32.totalorder %s29, 1
      %p94 = por %p92, %p93
      %p96 = scmp.ne.s32.totalorder %s79, %s95
      %p97 = scmp.eq.s32.totalorder %s29, 0
      %p98 = por %p96, %p97
      %s99 = sadd.s32 %s30, %s31
      %s100 = sadd.s32 %s42, %s38
      %s101 = ssub.s32 %s99, %s100
      %p102 = scmp.eq.s32.totalorder %s101, 0
      %s104 = sadd.s32 %s103, 1
      %s105 = scalar_select %p102, %s103, %s104
      %p108 = pneg %p102
      %p109 = scmp.eq.s32.totalorder %s23, 1
      %p110 = por %p108, %p109
      %p111 = scmp.ne.s32.totalorder %s103, %s106
      %p112 = scmp.eq.s32.totalorder %s23, 0
      %p113 = por %p111, %p112
      %p114 = scmp.ne.s32.totalorder %s103, %s106
      %p115 = scmp.eq.s32.totalorder %s28, 1
      %p116 = por %p114, %p115
      %p117 = scmp.ne.s32.totalorder %s106, %s107
      %p118 = scmp.eq.s32.totalorder %s28, 0
      %p119 = por %p117, %p118
      %p120 = scmp.ne.s32.totalorder %s106, %s107
      %p121 = scmp.eq.s32.totalorder %s29, 1
      %p122 = por %p120, %p121
      %p124 = scmp.ne.s32.totalorder %s107, %s123
      %p125 = scmp.eq.s32.totalorder %s29, 0
      %p126 = por %p124, %p125
      %s128 = sadd.s32 %s127, 1
      %p131 = scmp.eq.s32.totalorder %s23, 1
      %p132 = scmp.ne.s32.totalorder %s127, %s129
      %p133 = scmp.eq.s32.totalorder %s23, 0
      %p134 = por %p132, %p133
      %p135 = scmp.ne.s32.totalorder %s127, %s129
      %p136 = scmp.eq.s32.totalorder %s28, 1
      %p137 = por %p135, %p136
      %p138 = scmp.ne.s32.totalorder %s129, %s130
      %p139 = scmp.eq.s32.totalorder %s28, 0
      %p140 = por %p138, %p139
      %p141 = scmp.ne.s32.totalorder %s129, %s130
      %p142 = scmp.eq.s32.totalorder %s29, 1
      %p143 = por %p141, %p142
      %p145 = scmp.ne.s32.totalorder %s130, %s144
      %p146 = scmp.eq.s32.totalorder %s29, 0
      %p147 = por %p145, %p146
      %s149 = sadd.s32 %s148, 1
      %p152 = scmp.eq.s32.totalorder %s23, 1
      %p153 = scmp.ne.s32.totalorder %s148, %s150
      %p154 = scmp.eq.s32.totalorder %s23, 0
      %p155 = por %p153, %p154
      %p156 = scmp.ne.s32.totalorder %s148, %s150
      %p157 = scmp.eq.s32.totalorder %s28, 1
      %p158 = por %p156, %p157
      %p159 = scmp.ne.s32.totalorder %s150, %s151
      %p160 = scmp.eq.s32.totalorder %s28, 0
      %p161 = por %p159, %p160
      %p162 = scmp.ne.s32.totalorder %s150, %s151
      %p163 = scmp.eq.s32.totalorder %s29, 1
      %p164 = por %p162, %p163
      %p166 = scmp.ne.s32.totalorder %s151, %s165
      %p167 = scmp.eq.s32.totalorder %s29, 0
      %p168 = por %p166, %p167
      %s170 = sadd.s32 %s169, 1
      %p173 = scmp.eq.s32.totalorder %s23, 1
      %p174 = scmp.ne.s32.totalorder %s169, %s171
      %p175 = scmp.eq.s32.totalorder %s23, 0
      %p176 = por %p174, %p175
      %p177 = scmp.ne.s32.totalorder %s169, %s171
      %p178 = scmp.eq.s32.totalorder %s28, 1
      %p179 = por %p177, %p178
      %p180 = scmp.ne.s32.totalorder %s171, %s172
      %p181 = scmp.eq.s32.totalorder %s28, 0
      %p182 = por %p180, %p181
      %p183 = scmp.ne.s32.totalorder %s171, %s172
      %p184 = scmp.eq.s32.totalorder %s29, 1
      %p185 = por %p183, %p184
      %p187 = scmp.ne.s32.totalorder %s172, %s186
      %p188 = scmp.eq.s32.totalorder %s29, 0
      %p189 = por %p187, %p188
      %s190 = ssub.s32 %s30, %s42
      %p191 = scmp.eq.s32.totalorder %s190, 0
      %s193 = sadd.s32 %s192, 1
      %s194 = scalar_select %p191, %s192, %s193
      %p197 = pneg %p191
      %p198 = scmp.eq.s32.totalorder %s23, 1
      %p199 = por %p197, %p198
      %p200 = scmp.ne.s32.totalorder %s192, %s195
      %p201 = scmp.eq.s32.totalorder %s23, 0
      %p202 = por %p200, %p201
      %p203 = scmp.ne.s32.totalorder %s192, %s195
      %p204 = scmp.eq.s32.totalorder %s28, 1
      %p205 = por %p203, %p204
      %p206 = scmp.ne.s32.totalorder %s195, %s196
      %p207 = scmp.eq.s32.totalorder %s28, 0
      %p208 = por %p206, %p207
      %p209 = scmp.ne.s32.totalorder %s195, %s196
      %p210 = scmp.eq.s32.totalorder %s29, 1
      %p211 = por %p209, %p210
      %p213 = scmp.ne.s32.totalorder %s196, %s212
      %p214 = scmp.eq.s32.totalorder %s29, 0
      %p215 = por %p213, %p214
      %p216 = scmp.le.s32.totalorder 1, %s23
      %p217 = scmp.lt.s32.totalorder %s23, 3
      %p218 = pnand %p216, %p217
      %p219 = pneg %p218
      // Predicated region
      $region9: #{_lambda_.4} parent=5 // pred_check
        _
      $region10: #{_lambda_.4} parent=5 // pred_check_branch
        %221 = sbr.rel (%p218) target = $region12
      $region11: #{_lambda_.4} parent=5 // pred_region
        %s222 = ssub.s32 %s23, 1
        // Predicated region
        $region13: #{_lambda_.4} parent=11 // pred_check
          %p223 = pneg %p140
        $region14: #{_lambda_.4} parent=11 // pred_check_branch
          %225 = sbr.rel (%p223) target = $region16
        $region15: #{_lambda_.4} parent=11 // pred_region
          %s227 = ssub.s32 2048, 2048
          %228 = vsyncadd [#allocation9], %s227
          %s229 = sshll.u32 [#allocation8], 4
          %s230 = int_to_ptr.vmem [resolvable:$true] %s229
          %235 = dma.hbm_to_vmem [thread:$0]  %s3, 2048, %s230, [#allocation9], 64, 64, 4
        $region16: #{_lambda_.4} parent=11 // pred_fallthru
          _
        // Predicated region
        $region17: #{_lambda_.4} parent=11 // pred_check
          %p236 = pneg %p161
        $region18: #{_lambda_.4} parent=11 // pred_check_branch
          %238 = sbr.rel (%p236) target = $region20
        $region19: #{_lambda_.4} parent=11 // pred_region
          %s240 = ssub.s32 1024, 1024
          %241 = vsyncadd [#allocation9], %s240
          %s242 = sshll.u32 [#allocation10], 4
          %s243 = int_to_ptr.vmem [resolvable:$true] %s242
          %248 = dma.hbm_to_vmem [thread:$0]  %s4, 1024, %s243, [#allocation9], 64, 64, 4
        $region20: #{_lambda_.4} parent=11 // pred_fallthru
          _
        // Predicated region
        $region21: #{_lambda_.4} parent=11 // pred_check
          %p249 = pneg %p182
        $region22: #{_lambda_.4} parent=11 // pred_check_branch
          %251 = sbr.rel (%p249) target = $region24
        $region23: #{_lambda_.4} parent=11 // pred_region
          %s253 = ssub.s32 16, 16
          %254 = vsyncadd [#allocation12], %s253
          %s256 = sshll.u32 [#allocation11], 4
          %s257 = int_to_ptr.vmem [resolvable:$true] %s256
          %259 = dma.hbm_to_vmem [thread:$0]  %s5, 16, %s257, [#allocation12]
        $region24: #{_lambda_.4} parent=11 // pred_fallthru
          _
      $region12: #{_lambda_.4} parent=5 // pred_fallthru
        _
      %p260 = scmp.lt.s32.totalorder %s23, 2
      // Predicated region
      $region25: #{_lambda_.4} parent=5 // pred_check
        %p261 = pneg %p260
      $region26: #{_lambda_.4} parent=5 // pred_check_branch
        %263 = sbr.rel (%p261) target = $region28
      $region27: #{_lambda_.4} parent=5 // pred_region
        // Predicated region
        $region29: #{_lambda_.4} parent=27 // pred_check
          %p264 = pneg %p57
        $region30: #{_lambda_.4} parent=27 // pred_check_branch
          %266 = sbr.rel (%p264) target = $region32
        $region31: #{_lambda_.4} parent=27 // pred_region
          %s267 = sand.u32 %s47, 1
          %s268 = scalar_lea.sflag [#allocation3], %s267
          %s269 = sand.u32 %s47, 1
          %s270 = smul.addr %s269, 256
          %s271 = scalar_lea.vmem [#allocation2], %s270
          %s272 = sadd.s32 %s30, %s31
          %s273 = smul.u32 32, %s272
          %s275 = ssub.s32 4096, 4096
          %276 = vsyncadd %s268, %s275
          %s277 = smul.addr %s273, 128
          %s278 = scalar_lea.hbm %s0, %s277
          %s279 = sshll.u32 %s271, 4
          %s280 = int_to_ptr.vmem [resolvable:$true] %s279
          %285 = dma.hbm_to_vmem [thread:$0]  %s278, 4096, %s280, %s268, 128, 128, 8
        $region32: #{_lambda_.4} parent=27 // pred_fallthru
          _
        // Predicated region
        $region33: #{_lambda_.4} parent=27 // pred_check
          %p286 = pneg %p85
        $region34: #{_lambda_.4} parent=27 // pred_check_branch
          %288 = sbr.rel (%p286) target = $region36
        $region35: #{_lambda_.4} parent=27 // pred_region
          %s289 = sand.u32 %s23, 1
          %s290 = scalar_lea.sflag [#allocation6], %s289
          %s291 = sand.u32 %s75, 1
          %s292 = smul.addr %s291, 2
          %s293 = scalar_lea.vmem [#allocation5], %s292
          %s294 = sadd.s32 %s30, %s31
          %s295 = smul.u32 2, %s294
          %s297 = ssub.s32 32, 32
          %298 = vsyncadd %s290, %s297
          %s299 = smul.addr %s295, 16
          %s300 = scalar_lea.hbm %s1, %s299
          %s302 = sshll.u32 %s293, 4
          %s303 = int_to_ptr.vmem [resolvable:$true] %s302
          %305 = dma.hbm_to_vmem [thread:$0]  %s300, 32, %s303, %s290
        $region36: #{_lambda_.4} parent=27 // pred_fallthru
          _
        // Predicated region
        $region37: #{_lambda_.4} parent=27 // pred_check
          %p306 = pneg %p113
        $region38: #{_lambda_.4} parent=27 // pred_check_branch
          %308 = sbr.rel (%p306) target = $region40
        $region39: #{_lambda_.4} parent=27 // pred_region
          %s309 = sand.u32 %s23, 1
          %s310 = scalar_lea.sflag [#allocation6], %s309
          %s311 = sand.u32 %s103, 1
          %s312 = smul.addr %s311, 128
          %s313 = scalar_lea.vmem [#allocation7], %s312
          %s314 = sadd.s32 %s30, %s31
          %s315 = smul.u32 32, %s314
          %s317 = ssub.s32 2048, 2048
          %318 = vsyncadd %s310, %s317
          %s319 = smul.addr %s315, 64
          %s320 = scalar_lea.hbm %s2, %s319
          %s321 = sshll.u32 %s313, 4
          %s322 = int_to_ptr.vmem [resolvable:$true] %s321
          %327 = dma.hbm_to_vmem [thread:$0]  %s320, 2048, %s322, %s310, 64, 64, 4
        $region40: #{_lambda_.4} parent=27 // pred_fallthru
          _
      $region28: #{_lambda_.4} parent=5 // pred_fallthru
        _
      %p328 = scmp.le.s32.totalorder 1, %s23
      %p329 = scmp.lt.s32.totalorder %s23, 3
      %p330 = pnand %p328, %p329
      %p331 = pneg %p330
      // Predicated region
      $region41: #{_lambda_.4} parent=5 // pred_check
        _
      $region42: #{_lambda_.4} parent=5 // pred_check_branch
        %333 = sbr.rel (%p330) target = $region44
      $region43: #{_lambda_.4} parent=5 // pred_region
        %s334 = ssub.s32 %s23, 1
        %s335 = sand.u32 %s50, 1
        %s336 = scalar_lea.sflag [#allocation3], %s335
        %s337 = sand.u32 %s50, 1
        %s338 = smul.addr %s337, 256
        %s339 = scalar_lea.vmem [#allocation2], %s338
        // Predicated region
        $region45: #{_lambda_.4} parent=43 // pred_check
          %p340 = pneg %p63
        $region46: #{_lambda_.4} parent=43 // pred_check_branch
          %342 = sbr.rel (%p340) target = $region48
        $region47: #{_lambda_.4} parent=43 // pred_region
          %343 = dma.done %s336, 4096
        $region48: #{_lambda_.4} parent=43 // pred_fallthru
          _
        %s344 = sand.u32 %s28, 1
        %s345 = scalar_lea.sflag [#allocation6], %s344
        %s346 = sand.u32 %s78, 1
        %s347 = smul.addr %s346, 2
        %s348 = scalar_lea.vmem [#allocation5], %s347
        // Predicated region
        $region49: #{_lambda_.4} parent=43 // pred_check
          %p349 = pneg %p91
        $region50: #{_lambda_.4} parent=43 // pred_check_branch
          %351 = sbr.rel (%p349) target = $region52
        $region51: #{_lambda_.4} parent=43 // pred_region
          %352 = dma.done %s345, 32
        $region52: #{_lambda_.4} parent=43 // pred_fallthru
          _
        %s353 = sand.u32 %s28, 1
        %s354 = scalar_lea.sflag [#allocation6], %s353
        %s355 = sand.u32 %s106, 1
        %s356 = smul.addr %s355, 128
        %s357 = scalar_lea.vmem [#allocation7], %s356
        // Predicated region
        $region53: #{_lambda_.4} parent=43 // pred_check
          %p358 = pneg %p119
        $region54: #{_lambda_.4} parent=43 // pred_check_branch
          %360 = sbr.rel (%p358) target = $region56
        $region55: #{_lambda_.4} parent=43 // pred_region
          %361 = dma.done %s354, 2048
        $region56: #{_lambda_.4} parent=43 // pred_fallthru
          _
        // Predicated region
        $region57: #{_lambda_.4} parent=43 // pred_check
          %p362 = pneg %p140
        $region58: #{_lambda_.4} parent=43 // pred_check_branch
          %364 = sbr.rel (%p362) target = $region60
        $region59: #{_lambda_.4} parent=43 // pred_region
          %365 = dma.done [#allocation9], 2048
        $region60: #{_lambda_.4} parent=43 // pred_fallthru
          _
        // Predicated region
        $region61: #{_lambda_.4} parent=43 // pred_check
          %p366 = pneg %p161
        $region62: #{_lambda_.4} parent=43 // pred_check_branch
          %368 = sbr.rel (%p366) target = $region64
        $region63: #{_lambda_.4} parent=43 // pred_region
          %369 = dma.done [#allocation9], 1024
        $region64: #{_lambda_.4} parent=43 // pred_fallthru
          _
        // Predicated region
        $region65: #{_lambda_.4} parent=43 // pred_check
          %p370 = pneg %p182
        $region66: #{_lambda_.4} parent=43 // pred_check_branch
          %372 = sbr.rel (%p370) target = $region68
        $region67: #{_lambda_.4} parent=43 // pred_region
          %373 = dma.done [#allocation12], 16
        $region68: #{_lambda_.4} parent=43 // pred_fallthru
          _
        %s374 = sand.u32 %s50, 1
        %s375 = scalar_lea.sflag [#allocation3], %s374
        %s376 = sand.u32 %s50, 1
        %s377 = smul.addr %s376, 256
        %s378 = scalar_lea.vmem [#allocation2], %s377
        %p379 = pneg %p63
        %p380 = pneg %p60
        %s381 = sand.u32 %s28, 1
        %s382 = scalar_lea.sflag [#allocation6], %s381
        %s383 = sand.u32 %s78, 1
        %s384 = smul.addr %s383, 2
        %s385 = scalar_lea.vmem [#allocation5], %s384
        %p386 = pneg %p91
        %p387 = pneg %p88
        %s388 = sand.u32 %s28, 1
        %s389 = scalar_lea.sflag [#allocation6], %s388
        %s390 = sand.u32 %s106, 1
        %s391 = smul.addr %s390, 128
        %s392 = scalar_lea.vmem [#allocation7], %s391
        %p393 = pneg %p119
        %p394 = pneg %p116
        %p395 = pneg %p140
        %p396 = pneg %p137
        %p397 = pneg %p161
        %p398 = pneg %p158
        %p399 = pneg %p182
        %p400 = pneg %p179
        %p401 = pneg %p208
        %p402 = pneg %p205
        %s403 = sand.u32 %s195, 1
        %s404 = scalar_lea.sflag [#allocation4], %s403
        %s405 = sand.u32 %s195, 1
        %s406 = smul.addr %s405, 256
        %s407 = scalar_lea.vmem [#allocation13], %s406
        %s408 = sadd.s32 %s32, %s33
        %s409 = smul.u32 32, %s408
        %s410 = sadd.s32 %s32, %s33
        %s411 = smul.u32 2, %s410
        %s412 = sadd.s32 %s32, %s33
        %s413 = smul.u32 32, %s412
        %p415 = scmp.eq.s32.totalorder %s33, 0
        // Predicated region
        $region69: #{_lambda_.4} parent=43 // pred_check
          %p416 = pneg %p415
        $region70: #{_lambda_.4} parent=43 // pred_check_branch
          %418 = sbr.rel (%p416) target = $region72
        $region71: #{_lambda_.4} parent=43 // pred_region
          %419 = vst [vmem:[%s407] sm:$0xff] 0.0
          %420 = vst [vmem:[%s407 + $0x8] sm:$0xff] 0.0
          %421 = vst [vmem:[%s407 + $0x10] sm:$0xff] 0.0
          %422 = vst [vmem:[%s407 + $0x18] sm:$0xff] 0.0
          %423 = vst [vmem:[%s407 + $0x20] sm:$0xff] 0.0
          %424 = vst [vmem:[%s407 + $0x28] sm:$0xff] 0.0
          %425 = vst [vmem:[%s407 + $0x30] sm:$0xff] 0.0
          %426 = vst [vmem:[%s407 + $0x38] sm:$0xff] 0.0
          %427 = vst [vmem:[%s407 + $0x40] sm:$0xff] 0.0
          %428 = vst [vmem:[%s407 + $0x48] sm:$0xff] 0.0
          %429 = vst [vmem:[%s407 + $0x50] sm:$0xff] 0.0
          %430 = vst [vmem:[%s407 + $0x58] sm:$0xff] 0.0
          %431 = vst [vmem:[%s407 + $0x60] sm:$0xff] 0.0
          %432 = vst [vmem:[%s407 + $0x68] sm:$0xff] 0.0
          %433 = vst [vmem:[%s407 + $0x70] sm:$0xff] 0.0
          %434 = vst [vmem:[%s407 + $0x78] sm:$0xff] 0.0
          %435 = vst [vmem:[%s407 + $0x80] sm:$0xff] 0.0
          %436 = vst [vmem:[%s407 + $0x88] sm:$0xff] 0.0
          %437 = vst [vmem:[%s407 + $0x90] sm:$0xff] 0.0
          %438 = vst [vmem:[%s407 + $0x98] sm:$0xff] 0.0
          %439 = vst [vmem:[%s407 + $0xa0] sm:$0xff] 0.0
          %440 = vst [vmem:[%s407 + $0xa8] sm:$0xff] 0.0
          %441 = vst [vmem:[%s407 + $0xb0] sm:$0xff] 0.0
          %442 = vst [vmem:[%s407 + $0xb8] sm:$0xff] 0.0
          %443 = vst [vmem:[%s407 + $0xc0] sm:$0xff] 0.0
          %444 = vst [vmem:[%s407 + $0xc8] sm:$0xff] 0.0
          %445 = vst [vmem:[%s407 + $0xd0] sm:$0xff] 0.0
          %446 = vst [vmem:[%s407 + $0xd8] sm:$0xff] 0.0
          %447 = vst [vmem:[%s407 + $0xe0] sm:$0xff] 0.0
          %448 = vst [vmem:[%s407 + $0xe8] sm:$0xff] 0.0
          %449 = vst [vmem:[%s407 + $0xf0] sm:$0xff] 0.0
          %450 = vst [vmem:[%s407 + $0xf8] sm:$0xff] 0.0
        $region72: #{_lambda_.4} parent=43 // pred_fallthru
          _
        %v451 = vld [vmem:[%s339] sm:$0xff]
        %v452 = vld [vmem:[%s339 + $0x8] sm:$0xff]
        %v453 = vld [vmem:[%s339 + $0x10] sm:$0xff]
        %v454 = vld [vmem:[%s339 + $0x18] sm:$0xff]
        %v455 = vld [vmem:[%s339 + $0x20] sm:$0xff]
        %v456 = vld [vmem:[%s339 + $0x28] sm:$0xff]
        %v457 = vld [vmem:[%s339 + $0x30] sm:$0xff]
        %v458 = vld [vmem:[%s339 + $0x38] sm:$0xff]
        %v459 = vld [vmem:[%s339 + $0x40] sm:$0xff]
        %v460 = vld [vmem:[%s339 + $0x48] sm:$0xff]
        %v461 = vld [vmem:[%s339 + $0x50] sm:$0xff]
        %v462 = vld [vmem:[%s339 + $0x58] sm:$0xff]
        %v463 = vld [vmem:[%s339 + $0x60] sm:$0xff]
        %v464 = vld [vmem:[%s339 + $0x68] sm:$0xff]
        %v465 = vld [vmem:[%s339 + $0x70] sm:$0xff]
        %v466 = vld [vmem:[%s339 + $0x78] sm:$0xff]
        %v467 = vld [vmem:[%s339 + $0x80] sm:$0xff]
        %v468 = vld [vmem:[%s339 + $0x88] sm:$0xff]
        %v469 = vld [vmem:[%s339 + $0x90] sm:$0xff]
        %v470 = vld [vmem:[%s339 + $0x98] sm:$0xff]
        %v471 = vld [vmem:[%s339 + $0xa0] sm:$0xff]
        %v472 = vld [vmem:[%s339 + $0xa8] sm:$0xff]
        %v473 = vld [vmem:[%s339 + $0xb0] sm:$0xff]
        %v474 = vld [vmem:[%s339 + $0xb8] sm:$0xff]
        %v475 = vld [vmem:[%s339 + $0xc0] sm:$0xff]
        %v476 = vld [vmem:[%s339 + $0xc8] sm:$0xff]
        %v477 = vld [vmem:[%s339 + $0xd0] sm:$0xff]
        %v478 = vld [vmem:[%s339 + $0xd8] sm:$0xff]
        %v479 = vld [vmem:[%s339 + $0xe0] sm:$0xff]
        %v480 = vld [vmem:[%s339 + $0xe8] sm:$0xff]
        %v481 = vld [vmem:[%s339 + $0xf0] sm:$0xff]
        %v482 = vld [vmem:[%s339 + $0xf8] sm:$0xff]
        %v483 = vld [vmem:[%s348] sm:$0x3]
        %v484 = vlaneseq
        %v485 = vand.u32 %v484, 127
        %v486 = vadd.s32 %v485, 128
        %487 = vset.pattern.permute.xlu0 0
        %488 = vperm.xlu0 %487, %v451
        %v489 = vpop.permute.xlu0 %488
        %490 = vset.pattern.permute.xlu0 0
        %491 = vperm.xlu0 %490, %v452
        %v492 = vpop.permute.xlu0 %491
        %493 = vset.pattern.permute.xlu0 0
        %494 = vperm.xlu0 %493, %v453
        %v495 = vpop.permute.xlu0 %494
        %496 = vset.pattern.permute.xlu0 0
        %497 = vperm.xlu0 %496, %v454
        %v498 = vpop.permute.xlu0 %497
        %499 = vset.pattern.permute.xlu0 0
        %500 = vperm.xlu0 %499, %v455
        %v501 = vpop.permute.xlu0 %500
        %502 = vset.pattern.permute.xlu0 0
        %503 = vperm.xlu0 %502, %v456
        %v504 = vpop.permute.xlu0 %503
        %505 = vset.pattern.permute.xlu0 0
        %506 = vperm.xlu0 %505, %v457
        %v507 = vpop.permute.xlu0 %506
        %508 = vset.pattern.permute.xlu0 0
        %509 = vperm.xlu0 %508, %v458
        %v510 = vpop.permute.xlu0 %509
        %511 = vset.pattern.permute.xlu0 0
        %512 = vperm.xlu0 %511, %v459
        %v513 = vpop.permute.xlu0 %512
        %514 = vset.pattern.permute.xlu0 0
        %515 = vperm.xlu0 %514, %v460
        %v516 = vpop.permute.xlu0 %515
        %517 = vset.pattern.permute.xlu0 0
        %518 = vperm.xlu0 %517, %v461
        %v519 = vpop.permute.xlu0 %518
        %520 = vset.pattern.permute.xlu0 0
        %521 = vperm.xlu0 %520, %v462
        %v522 = vpop.permute.xlu0 %521
        %523 = vset.pattern.permute.xlu0 0
        %524 = vperm.xlu0 %523, %v463
        %v525 = vpop.permute.xlu0 %524
        %526 = vset.pattern.permute.xlu0 0
        %527 = vperm.xlu0 %526, %v464
        %v528 = vpop.permute.xlu0 %527
        %529 = vset.pattern.permute.xlu0 0
        %530 = vperm.xlu0 %529, %v465
        %v531 = vpop.permute.xlu0 %530
        %532 = vset.pattern.permute.xlu0 0
        %533 = vperm.xlu0 %532, %v466
        %v534 = vpop.permute.xlu0 %533
        %535 = vset.pattern.permute.xlu0 0
        %536 = vperm.xlu0 %535, %v467
        %v537 = vpop.permute.xlu0 %536
        %538 = vset.pattern.permute.xlu0 0
        %539 = vperm.xlu0 %538, %v468
        %v540 = vpop.permute.xlu0 %539
        %541 = vset.pattern.permute.xlu0 0
        %542 = vperm.xlu0 %541, %v469
        %v543 = vpop.permute.xlu0 %542
        %544 = vset.pattern.permute.xlu0 0
        %545 = vperm.xlu0 %544, %v470
        %v546 = vpop.permute.xlu0 %545
        %547 = vset.pattern.permute.xlu0 0
        %548 = vperm.xlu0 %547, %v471
        %v549 = vpop.permute.xlu0 %548
        %550 = vset.pattern.permute.xlu0 0
        %551 = vperm.xlu0 %550, %v472
        %v552 = vpop.permute.xlu0 %551
        %553 = vset.pattern.permute.xlu0 0
        %554 = vperm.xlu0 %553, %v473
        %v555 = vpop.permute.xlu0 %554
        %556 = vset.pattern.permute.xlu0 0
        %557 = vperm.xlu0 %556, %v474
        %v558 = vpop.permute.xlu0 %557
        %559 = vset.pattern.permute.xlu0 0
        %560 = vperm.xlu0 %559, %v475
        %v561 = vpop.permute.xlu0 %560
        %562 = vset.pattern.permute.xlu0 0
        %563 = vperm.xlu0 %562, %v476
        %v564 = vpop.permute.xlu0 %563
        %565 = vset.pattern.permute.xlu0 0
        %566 = vperm.xlu0 %565, %v477
        %v567 = vpop.permute.xlu0 %566
        %568 = vset.pattern.permute.xlu0 0
        %569 = vperm.xlu0 %568, %v478
        %v570 = vpop.permute.xlu0 %569
        %571 = vset.pattern.permute.xlu0 0
        %572 = vperm.xlu0 %571, %v479
        %v573 = vpop.permute.xlu0 %572
        %574 = vset.pattern.permute.xlu0 0
        %575 = vperm.xlu0 %574, %v480
        %v576 = vpop.permute.xlu0 %575
        %577 = vset.pattern.permute.xlu0 0
        %578 = vperm.xlu0 %577, %v481
        %v579 = vpop.permute.xlu0 %578
        %580 = vset.pattern.permute.xlu0 0
        %581 = vperm.xlu0 %580, %v482
        %v582 = vpop.permute.xlu0 %581
        %vm583 = vcmp.eq.s32.totalorder %v485, %v489
        %vm584 = vcmp.eq.s32.totalorder %v486, %v489
        %vm585 = vcmp.eq.s32.totalorder %v485, %v492
        %vm586 = vcmp.eq.s32.totalorder %v486, %v492
        %vm587 = vcmp.eq.s32.totalorder %v485, %v495
        %vm588 = vcmp.eq.s32.totalorder %v486, %v495
        %vm589 = vcmp.eq.s32.totalorder %v485, %v498
        %vm590 = vcmp.eq.s32.totalorder %v486, %v498
        %vm591 = vcmp.eq.s32.totalorder %v485, %v501
        %vm592 = vcmp.eq.s32.totalorder %v486, %v501
        %vm593 = vcmp.eq.s32.totalorder %v485, %v504
        %vm594 = vcmp.eq.s32.totalorder %v486, %v504
        %vm595 = vcmp.eq.s32.totalorder %v485, %v507
        %vm596 = vcmp.eq.s32.totalorder %v486, %v507
        %vm597 = vcmp.eq.s32.totalorder %v485, %v510
        %vm598 = vcmp.eq.s32.totalorder %v486, %v510
        %vm599 = vcmp.eq.s32.totalorder %v485, %v513
        %vm600 = vcmp.eq.s32.totalorder %v486, %v513
        %vm601 = vcmp.eq.s32.totalorder %v485, %v516
        %vm602 = vcmp.eq.s32.totalorder %v486, %v516
        %vm603 = vcmp.eq.s32.totalorder %v485, %v519
        %vm604 = vcmp.eq.s32.totalorder %v486, %v519
        %vm605 = vcmp.eq.s32.totalorder %v485, %v522
        %vm606 = vcmp.eq.s32.totalorder %v486, %v522
        %vm607 = vcmp.eq.s32.totalorder %v485, %v525
        %vm608 = vcmp.eq.s32.totalorder %v486, %v525
        %vm609 = vcmp.eq.s32.totalorder %v485, %v528
        %vm610 = vcmp.eq.s32.totalorder %v486, %v528
        %vm611 = vcmp.eq.s32.totalorder %v485, %v531
        %vm612 = vcmp.eq.s32.totalorder %v486, %v531
        %vm613 = vcmp.eq.s32.totalorder %v485, %v534
        %vm614 = vcmp.eq.s32.totalorder %v486, %v534
        %vm615 = vcmp.eq.s32.totalorder %v485, %v537
        %vm616 = vcmp.eq.s32.totalorder %v486, %v537
        %vm617 = vcmp.eq.s32.totalorder %v485, %v540
        %vm618 = vcmp.eq.s32.totalorder %v486, %v540
        %vm619 = vcmp.eq.s32.totalorder %v485, %v543
        %vm620 = vcmp.eq.s32.totalorder %v486, %v543
        %vm621 = vcmp.eq.s32.totalorder %v485, %v546
        %vm622 = vcmp.eq.s32.totalorder %v486, %v546
        %vm623 = vcmp.eq.s32.totalorder %v485, %v549
        %vm624 = vcmp.eq.s32.totalorder %v486, %v549
        %vm625 = vcmp.eq.s32.totalorder %v485, %v552
        %vm626 = vcmp.eq.s32.totalorder %v486, %v552
        %vm627 = vcmp.eq.s32.totalorder %v485, %v555
        %vm628 = vcmp.eq.s32.totalorder %v486, %v555
        %vm629 = vcmp.eq.s32.totalorder %v485, %v558
        %vm630 = vcmp.eq.s32.totalorder %v486, %v558
        %vm631 = vcmp.eq.s32.totalorder %v485, %v561
        %vm632 = vcmp.eq.s32.totalorder %v486, %v561
        %vm633 = vcmp.eq.s32.totalorder %v485, %v564
        %vm634 = vcmp.eq.s32.totalorder %v486, %v564
        %vm635 = vcmp.eq.s32.totalorder %v485, %v567
        %vm636 = vcmp.eq.s32.totalorder %v486, %v567
        %vm637 = vcmp.eq.s32.totalorder %v485, %v570
        %vm638 = vcmp.eq.s32.totalorder %v486, %v570
        %vm639 = vcmp.eq.s32.totalorder %v485, %v573
        %vm640 = vcmp.eq.s32.totalorder %v486, %v573
        %vm641 = vcmp.eq.s32.totalorder %v485, %v576
        %vm642 = vcmp.eq.s32.totalorder %v486, %v576
        %vm643 = vcmp.eq.s32.totalorder %v485, %v579
        %vm644 = vcmp.eq.s32.totalorder %v486, %v579
        %vm645 = vcmp.eq.s32.totalorder %v485, %v582
        %vm646 = vcmp.eq.s32.totalorder %v486, %v582
        %v647 = vsel %vm583, 1, 0
        %v648 = vsel %vm584, 1, 0
        %v649 = vsel %vm585, 1, 0
        %v650 = vsel %vm586, 1, 0
        %v651 = vsel %vm587, 1, 0
        %v652 = vsel %vm588, 1, 0
        %v653 = vsel %vm589, 1, 0
        %v654 = vsel %vm590, 1, 0
        %v655 = vsel %vm591, 1, 0
        %v656 = vsel %vm592, 1, 0
        %v657 = vsel %vm593, 1, 0
        %v658 = vsel %vm594, 1, 0
        %v659 = vsel %vm595, 1, 0
        %v660 = vsel %vm596, 1, 0
        %v661 = vsel %vm597, 1, 0
        %v662 = vsel %vm598, 1, 0
        %v663 = vsel %vm599, 1, 0
        %v664 = vsel %vm600, 1, 0
        %v665 = vsel %vm601, 1, 0
        %v666 = vsel %vm602, 1, 0
        %v667 = vsel %vm603, 1, 0
        %v668 = vsel %vm604, 1, 0
        %v669 = vsel %vm605, 1, 0
        %v670 = vsel %vm606, 1, 0
        %v671 = vsel %vm607, 1, 0
        %v672 = vsel %vm608, 1, 0
        %v673 = vsel %vm609, 1, 0
        %v674 = vsel %vm610, 1, 0
        %v675 = vsel %vm611, 1, 0
        %v676 = vsel %vm612, 1, 0
        %v677 = vsel %vm613, 1, 0
        %v678 = vsel %vm614, 1, 0
        %v679 = vsel %vm615, 1, 0
        %v680 = vsel %vm616, 1, 0
        %v681 = vsel %vm617, 1, 0
        %v682 = vsel %vm618, 1, 0
        %v683 = vsel %vm619, 1, 0
        %v684 = vsel %vm620, 1, 0
        %v685 = vsel %vm621, 1, 0
        %v686 = vsel %vm622, 1, 0
        %v687 = vsel %vm623, 1, 0
        %v688 = vsel %vm624, 1, 0
        %v689 = vsel %vm625, 1, 0
        %v690 = vsel %vm626, 1, 0
        %v691 = vsel %vm627, 1, 0
        %v692 = vsel %vm628, 1, 0
        %v693 = vsel %vm629, 1, 0
        %v694 = vsel %vm630, 1, 0
        %v695 = vsel %vm631, 1, 0
        %v696 = vsel %vm632, 1, 0
        %v697 = vsel %vm633, 1, 0
        %v698 = vsel %vm634, 1, 0
        %v699 = vsel %vm635, 1, 0
        %v700 = vsel %vm636, 1, 0
        %v701 = vsel %vm637, 1, 0
        %v702 = vsel %vm638, 1, 0
        %v703 = vsel %vm639, 1, 0
        %v704 = vsel %vm640, 1, 0
        %v705 = vsel %vm641, 1, 0
        %v706 = vsel %vm642, 1, 0
        %v707 = vsel %vm643, 1, 0
        %v708 = vsel %vm644, 1, 0
        %v709 = vsel %vm645, 1, 0
        %v710 = vsel %vm646, 1, 0
        %v711 = vcvt.s32.f32 %v647
        %v712 = vcvt.s32.f32 %v648
        %v713 = vcvt.s32.f32 %v649
        %v714 = vcvt.s32.f32 %v650
        %v715 = vcvt.s32.f32 %v651
        %v716 = vcvt.s32.f32 %v652
        %v717 = vcvt.s32.f32 %v653
        %v718 = vcvt.s32.f32 %v654
        %v719 = vcvt.s32.f32 %v655
        %v720 = vcvt.s32.f32 %v656
        %v721 = vcvt.s32.f32 %v657
        %v722 = vcvt.s32.f32 %v658
        %v723 = vcvt.s32.f32 %v659
        %v724 = vcvt.s32.f32 %v660
        %v725 = vcvt.s32.f32 %v661
        %v726 = vcvt.s32.f32 %v662
        %v727 = vcvt.s32.f32 %v663
        %v728 = vcvt.s32.f32 %v664
        %v729 = vcvt.s32.f32 %v665
        %v730 = vcvt.s32.f32 %v666
        %v731 = vcvt.s32.f32 %v667
        %v732 = vcvt.s32.f32 %v668
        %v733 = vcvt.s32.f32 %v669
        %v734 = vcvt.s32.f32 %v670
        %v735 = vcvt.s32.f32 %v671
        %v736 = vcvt.s32.f32 %v672
        %v737 = vcvt.s32.f32 %v673
        %v738 = vcvt.s32.f32 %v674
        %v739 = vcvt.s32.f32 %v675
        %v740 = vcvt.s32.f32 %v676
        %v741 = vcvt.s32.f32 %v677
        %v742 = vcvt.s32.f32 %v678
        %v743 = vcvt.s32.f32 %v679
        %v744 = vcvt.s32.f32 %v680
        %v745 = vcvt.s32.f32 %v681
        %v746 = vcvt.s32.f32 %v682
        %v747 = vcvt.s32.f32 %v683
        %v748 = vcvt.s32.f32 %v684
        %v749 = vcvt.s32.f32 %v685
        %v750 = vcvt.s32.f32 %v686
        %v751 = vcvt.s32.f32 %v687
        %v752 = vcvt.s32.f32 %v688
        %v753 = vcvt.s32.f32 %v689
        %v754 = vcvt.s32.f32 %v690
        %v755 = vcvt.s32.f32 %v691
        %v756 = vcvt.s32.f32 %v692
        %v757 = vcvt.s32.f32 %v693
        %v758 = vcvt.s32.f32 %v694
        %v759 = vcvt.s32.f32 %v695
        %v760 = vcvt.s32.f32 %v696
        %v761 = vcvt.s32.f32 %v697
        %v762 = vcvt.s32.f32 %v698
        %v763 = vcvt.s32.f32 %v699
        %v764 = vcvt.s32.f32 %v700
        %v765 = vcvt.s32.f32 %v701
        %v766 = vcvt.s32.f32 %v702
        %v767 = vcvt.s32.f32 %v703
        %v768 = vcvt.s32.f32 %v704
        %v769 = vcvt.s32.f32 %v705
        %v770 = vcvt.s32.f32 %v706
        %v771 = vcvt.s32.f32 %v707
        %v772 = vcvt.s32.f32 %v708
        %v773 = vcvt.s32.f32 %v709
        %v774 = vcvt.s32.f32 %v710
        %v775 = vpack.c.bf16 %v713, %v711
        %v776 = vpack.c.bf16 %v714, %v712
        %v777 = vpack.c.bf16 %v717, %v715
        %v778 = vpack.c.bf16 %v718, %v716
        %v779 = vpack.c.bf16 %v721, %v719
        %v780 = vpack.c.bf16 %v722, %v720
        %v781 = vpack.c.bf16 %v725, %v723
        %v782 = vpack.c.bf16 %v726, %v724
        %v783 = vpack.c.bf16 %v729, %v727
        %v784 = vpack.c.bf16 %v730, %v728
        %v785 = vpack.c.bf16 %v733, %v731
        %v786 = vpack.c.bf16 %v734, %v732
        %v787 = vpack.c.bf16 %v737, %v735
        %v788 = vpack.c.bf16 %v738, %v736
        %v789 = vpack.c.bf16 %v741, %v739
        %v790 = vpack.c.bf16 %v742, %v740
        %v791 = vpack.c.bf16 %v745, %v743
        %v792 = vpack.c.bf16 %v746, %v744
        %v793 = vpack.c.bf16 %v749, %v747
        %v794 = vpack.c.bf16 %v750, %v748
        %v795 = vpack.c.bf16 %v753, %v751
        %v796 = vpack.c.bf16 %v754, %v752
        %v797 = vpack.c.bf16 %v757, %v755
        %v798 = vpack.c.bf16 %v758, %v756
        %v799 = vpack.c.bf16 %v761, %v759
        %v800 = vpack.c.bf16 %v762, %v760
        %v801 = vpack.c.bf16 %v765, %v763
        %v802 = vpack.c.bf16 %v766, %v764
        %v803 = vpack.c.bf16 %v769, %v767
        %v804 = vpack.c.bf16 %v770, %v768
        %v805 = vpack.c.bf16 %v773, %v771
        %v806 = vpack.c.bf16 %v774, %v772
        %v807 = vlaneseq
        %v808 = vshrl.u32 %v807, 7
        %v809 = vadd.s32 %v808, 8
        %v810 = vadd.s32 %v808, 16
        %v811 = vadd.s32 %v808, 24
        %v812 = vadd.s32 %v808, 32
        %v813 = vadd.s32 %v808, 40
        %v814 = vadd.s32 %v808, 48
        %v815 = vadd.s32 %v808, 56
        %v816 = vadd.s32 %v808, 64
        %v817 = vadd.s32 %v808, 72
        %v818 = vadd.s32 %v808, 80
        %v819 = vadd.s32 %v808, 88
        %v820 = vadd.s32 %v808, 96
        %v821 = vadd.s32 %v808, 104
        %v822 = vadd.s32 %v808, 112
        %v823 = vadd.s32 %v808, 120
        %v824 = vadd.s32 %v808, 128
        %v825 = vadd.s32 %v808, 136
        %v826 = vadd.s32 %v808, 144
        %v827 = vadd.s32 %v808, 152
        %v828 = vadd.s32 %v808, 160
        %v829 = vadd.s32 %v808, 168
        %v830 = vadd.s32 %v808, 176
        %v831 = vadd.s32 %v808, 184
        %v832 = vadd.s32 %v808, 192
        %v833 = vadd.s32 %v808, 200
        %v834 = vadd.s32 %v808, 208
        %v835 = vadd.s32 %v808, 216
        %v836 = vadd.s32 %v808, 224
        %v837 = vadd.s32 %v808, 232
        %v838 = vadd.s32 %v808, 240
        %v839 = vadd.s32 %v808, 248
        %v840 = vlaneseq
        %v841 = vshrl.u32 %v840, 7
        %v842 = vsub.s32 0, %v841
        %v843 = vrot.slane %v483, %v842
        %v844 = vlaneseq
        %v845 = vshrl.u32 %v844, 7
        %v846 = vsub.s32 1, %v845
        %v847 = vrot.slane %v483, %v846
        %vm848 = vcmp.eq.s32.totalorder %v808, %v843
        %vm849 = vcmp.eq.s32.totalorder %v808, %v847
        %vm850 = vcmp.eq.s32.totalorder %v809, %v843
        %vm851 = vcmp.eq.s32.totalorder %v809, %v847
        %vm852 = vcmp.eq.s32.totalorder %v810, %v843
        %vm853 = vcmp.eq.s32.totalorder %v810, %v847
        %vm854 = vcmp.eq.s32.totalorder %v811, %v843
        %vm855 = vcmp.eq.s32.totalorder %v811, %v847
        %vm856 = vcmp.eq.s32.totalorder %v812, %v843
        %vm857 = vcmp.eq.s32.totalorder %v812, %v847
        %vm858 = vcmp.eq.s32.totalorder %v813, %v843
        %vm859 = vcmp.eq.s32.totalorder %v813, %v847
        %vm860 = vcmp.eq.s32.totalorder %v814, %v843
        %vm861 = vcmp.eq.s32.totalorder %v814, %v847
        %vm862 = vcmp.eq.s32.totalorder %v815, %v843
        %vm863 = vcmp.eq.s32.totalorder %v815, %v847
        %vm864 = vcmp.eq.s32.totalorder %v816, %v843
        %vm865 = vcmp.eq.s32.totalorder %v816, %v847
        %vm866 = vcmp.eq.s32.totalorder %v817, %v843
        %vm867 = vcmp.eq.s32.totalorder %v817, %v847
        %vm868 = vcmp.eq.s32.totalorder %v818, %v843
        %vm869 = vcmp.eq.s32.totalorder %v818, %v847
        %vm870 = vcmp.eq.s32.totalorder %v819, %v843
        %vm871 = vcmp.eq.s32.totalorder %v819, %v847
        %vm872 = vcmp.eq.s32.totalorder %v820, %v843
        %vm873 = vcmp.eq.s32.totalorder %v820, %v847
        %vm874 = vcmp.eq.s32.totalorder %v821, %v843
        %vm875 = vcmp.eq.s32.totalorder %v821, %v847
        %vm876 = vcmp.eq.s32.totalorder %v822, %v843
        %vm877 = vcmp.eq.s32.totalorder %v822, %v847
        %vm878 = vcmp.eq.s32.totalorder %v823, %v843
        %vm879 = vcmp.eq.s32.totalorder %v823, %v847
        %vm880 = vcmp.eq.s32.totalorder %v824, %v843
        %vm881 = vcmp.eq.s32.totalorder %v824, %v847
        %vm882 = vcmp.eq.s32.totalorder %v825, %v843
        %vm883 = vcmp.eq.s32.totalorder %v825, %v847
        %vm884 = vcmp.eq.s32.totalorder %v826, %v843
        %vm885 = vcmp.eq.s32.totalorder %v826, %v847
        %vm886 = vcmp.eq.s32.totalorder %v827, %v843
        %vm887 = vcmp.eq.s32.totalorder %v827, %v847
        %vm888 = vcmp.eq.s32.totalorder %v828, %v843
        %vm889 = vcmp.eq.s32.totalorder %v828, %v847
        %vm890 = vcmp.eq.s32.totalorder %v829, %v843
        %vm891 = vcmp.eq.s32.totalorder %v829, %v847
        %vm892 = vcmp.eq.s32.totalorder %v830, %v843
        %vm893 = vcmp.eq.s32.totalorder %v830, %v847
        %vm894 = vcmp.eq.s32.totalorder %v831, %v843
        %vm895 = vcmp.eq.s32.totalorder %v831, %v847
        %vm896 = vcmp.eq.s32.totalorder %v832, %v843
        %vm897 = vcmp.eq.s32.totalorder %v832, %v847
        %vm898 = vcmp.eq.s32.totalorder %v833, %v843
        %vm899 = vcmp.eq.s32.totalorder %v833, %v847
        %vm900 = vcmp.eq.s32.totalorder %v834, %v843
        %vm901 = vcmp.eq.s32.totalorder %v834, %v847
        %vm902 = vcmp.eq.s32.totalorder %v835, %v843
        %vm903 = vcmp.eq.s32.totalorder %v835, %v847
        %vm904 = vcmp.eq.s32.totalorder %v836, %v843
        %vm905 = vcmp.eq.s32.totalorder %v836, %v847
        %vm906 = vcmp.eq.s32.totalorder %v837, %v843
        %vm907 = vcmp.eq.s32.totalorder %v837, %v847
        %vm908 = vcmp.eq.s32.totalorder %v838, %v843
        %vm909 = vcmp.eq.s32.totalorder %v838, %v847
        %vm910 = vcmp.eq.s32.totalorder %v839, %v843
        %vm911 = vcmp.eq.s32.totalorder %v839, %v847
        %v912 = vsel %vm848, 1, 0
        %v913 = vsel %vm849, 1, 0
        %v914 = vsel %vm850, 1, 0
        %v915 = vsel %vm851, 1, 0
        %v916 = vsel %vm852, 1, 0
        %v917 = vsel %vm853, 1, 0
        %v918 = vsel %vm854, 1, 0
        %v919 = vsel %vm855, 1, 0
        %v920 = vsel %vm856, 1, 0
        %v921 = vsel %vm857, 1, 0
        %v922 = vsel %vm858, 1, 0
        %v923 = vsel %vm859, 1, 0
        %v924 = vsel %vm860, 1, 0
        %v925 = vsel %vm861, 1, 0
        %v926 = vsel %vm862, 1, 0
        %v927 = vsel %vm863, 1, 0
        %v928 = vsel %vm864, 1, 0
        %v929 = vsel %vm865, 1, 0
        %v930 = vsel %vm866, 1, 0
        %v931 = vsel %vm867, 1, 0
        %v932 = vsel %vm868, 1, 0
        %v933 = vsel %vm869, 1, 0
        %v934 = vsel %vm870, 1, 0
        %v935 = vsel %vm871, 1, 0
        %v936 = vsel %vm872, 1, 0
        %v937 = vsel %vm873, 1, 0
        %v938 = vsel %vm874, 1, 0
        %v939 = vsel %vm875, 1, 0
        %v940 = vsel %vm876, 1, 0
        %v941 = vsel %vm877, 1, 0
        %v942 = vsel %vm878, 1, 0
        %v943 = vsel %vm879, 1, 0
        %v944 = vsel %vm880, 1, 0
        %v945 = vsel %vm881, 1, 0
        %v946 = vsel %vm882, 1, 0
        %v947 = vsel %vm883, 1, 0
        %v948 = vsel %vm884, 1, 0
        %v949 = vsel %vm885, 1, 0
        %v950 = vsel %vm886, 1, 0
        %v951 = vsel %vm887, 1, 0
        %v952 = vsel %vm888, 1, 0
        %v953 = vsel %vm889, 1, 0
        %v954 = vsel %vm890, 1, 0
        %v955 = vsel %vm891, 1, 0
        %v956 = vsel %vm892, 1, 0
        %v957 = vsel %vm893, 1, 0
        %v958 = vsel %vm894, 1, 0
        %v959 = vsel %vm895, 1, 0
        %v960 = vsel %vm896, 1, 0
        %v961 = vsel %vm897, 1, 0
        %v962 = vsel %vm898, 1, 0
        %v963 = vsel %vm899, 1, 0
        %v964 = vsel %vm900, 1, 0
        %v965 = vsel %vm901, 1, 0
        %v966 = vsel %vm902, 1, 0
        %v967 = vsel %vm903, 1, 0
        %v968 = vsel %vm904, 1, 0
        %v969 = vsel %vm905, 1, 0
        %v970 = vsel %vm906, 1, 0
        %v971 = vsel %vm907, 1, 0
        %v972 = vsel %vm908, 1, 0
        %v973 = vsel %vm909, 1, 0
        %v974 = vsel %vm910, 1, 0
        %v975 = vsel %vm911, 1, 0
        %v976 = vcvt.s32.f32 %v912
        %v977 = vcvt.s32.f32 %v913
        %v978 = vcvt.s32.f32 %v914
        %v979 = vcvt.s32.f32 %v915
        %v980 = vcvt.s32.f32 %v916
        %v981 = vcvt.s32.f32 %v917
        %v982 = vcvt.s32.f32 %v918
        %v983 = vcvt.s32.f32 %v919
        %v984 = vcvt.s32.f32 %v920
        %v985 = vcvt.s32.f32 %v921
        %v986 = vcvt.s32.f32 %v922
        %v987 = vcvt.s32.f32 %v923
        %v988 = vcvt.s32.f32 %v924
        %v989 = vcvt.s32.f32 %v925
        %v990 = vcvt.s32.f32 %v926
        %v991 = vcvt.s32.f32 %v927
        %v992 = vcvt.s32.f32 %v928
        %v993 = vcvt.s32.f32 %v929
        %v994 = vcvt.s32.f32 %v930
        %v995 = vcvt.s32.f32 %v931
        %v996 = vcvt.s32.f32 %v932
        %v997 = vcvt.s32.f32 %v933
        %v998 = vcvt.s32.f32 %v934
        %v999 = vcvt.s32.f32 %v935
        %v1000 = vcvt.s32.f32 %v936
        %v1001 = vcvt.s32.f32 %v937
        %v1002 = vcvt.s32.f32 %v938
        %v1003 = vcvt.s32.f32 %v939
        %v1004 = vcvt.s32.f32 %v940
        %v1005 = vcvt.s32.f32 %v941
        %v1006 = vcvt.s32.f32 %v942
        %v1007 = vcvt.s32.f32 %v943
        %v1008 = vcvt.s32.f32 %v944
        %v1009 = vcvt.s32.f32 %v945
        %v1010 = vcvt.s32.f32 %v946
        %v1011 = vcvt.s32.f32 %v947
        %v1012 = vcvt.s32.f32 %v948
        %v1013 = vcvt.s32.f32 %v949
        %v1014 = vcvt.s32.f32 %v950
        %v1015 = vcvt.s32.f32 %v951
        %v1016 = vcvt.s32.f32 %v952
        %v1017 = vcvt.s32.f32 %v953
        %v1018 = vcvt.s32.f32 %v954
        %v1019 = vcvt.s32.f32 %v955
        %v1020 = vcvt.s32.f32 %v956
        %v1021 = vcvt.s32.f32 %v957
        %v1022 = vcvt.s32.f32 %v958
        %v1023 = vcvt.s32.f32 %v959
        %v1024 = vcvt.s32.f32 %v960
        %v1025 = vcvt.s32.f32 %v961
        %v1026 = vcvt.s32.f32 %v962
        %v1027 = vcvt.s32.f32 %v963
        %v1028 = vcvt.s32.f32 %v964
        %v1029 = vcvt.s32.f32 %v965
        %v1030 = vcvt.s32.f32 %v966
        %v1031 = vcvt.s32.f32 %v967
        %v1032 = vcvt.s32.f32 %v968
        %v1033 = vcvt.s32.f32 %v969
        %v1034 = vcvt.s32.f32 %v970
        %v1035 = vcvt.s32.f32 %v971
        %v1036 = vcvt.s32.f32 %v972
        %v1037 = vcvt.s32.f32 %v973
        %v1038 = vcvt.s32.f32 %v974
        %v1039 = vcvt.s32.f32 %v975
        %v1040 = vpack.c.bf16 %v978, %v976
        %v1041 = vpack.c.bf16 %v979, %v977
        %v1042 = vpack.c.bf16 %v982, %v980
        %v1043 = vpack.c.bf16 %v983, %v981
        %v1044 = vpack.c.bf16 %v986, %v984
        %v1045 = vpack.c.bf16 %v987, %v985
        %v1046 = vpack.c.bf16 %v990, %v988
        %v1047 = vpack.c.bf16 %v991, %v989
        %v1048 = vpack.c.bf16 %v994, %v992
        %v1049 = vpack.c.bf16 %v995, %v993
        %v1050 = vpack.c.bf16 %v998, %v996
        %v1051 = vpack.c.bf16 %v999, %v997
        %v1052 = vpack.c.bf16 %v1002, %v1000
        %v1053 = vpack.c.bf16 %v1003, %v1001
        %v1054 = vpack.c.bf16 %v1006, %v1004
        %v1055 = vpack.c.bf16 %v1007, %v1005
        %v1056 = vpack.c.bf16 %v1010, %v1008
        %v1057 = vpack.c.bf16 %v1011, %v1009
        %v1058 = vpack.c.bf16 %v1014, %v1012
        %v1059 = vpack.c.bf16 %v1015, %v1013
        %v1060 = vpack.c.bf16 %v1018, %v1016
        %v1061 = vpack.c.bf16 %v1019, %v1017
        %v1062 = vpack.c.bf16 %v1022, %v1020
        %v1063 = vpack.c.bf16 %v1023, %v1021
        %v1064 = vpack.c.bf16 %v1026, %v1024
        %v1065 = vpack.c.bf16 %v1027, %v1025
        %v1066 = vpack.c.bf16 %v1030, %v1028
        %v1067 = vpack.c.bf16 %v1031, %v1029
        %v1068 = vpack.c.bf16 %v1034, %v1032
        %v1069 = vpack.c.bf16 %v1035, %v1033
        %v1070 = vpack.c.bf16 %v1038, %v1036
        %v1071 = vpack.c.bf16 %v1039, %v1037
        %v1072 = vld [vmem:[%s357] sm:$0xf]
        %v1073 = vld [vmem:[%s357 + $0x4] sm:$0xf]
        %v1074 = vld [vmem:[%s357 + $0x8] sm:$0xf]
        %v1075 = vld [vmem:[%s357 + $0xc] sm:$0xf]
        %v1076 = vld [vmem:[%s357 + $0x10] sm:$0xf]
        %v1077 = vld [vmem:[%s357 + $0x14] sm:$0xf]
        %v1078 = vld [vmem:[%s357 + $0x18] sm:$0xf]
        %v1079 = vld [vmem:[%s357 + $0x1c] sm:$0xf]
        %v1080 = vld [vmem:[%s357 + $0x20] sm:$0xf]
        %v1081 = vld [vmem:[%s357 + $0x24] sm:$0xf]
        %v1082 = vld [vmem:[%s357 + $0x28] sm:$0xf]
        %v1083 = vld [vmem:[%s357 + $0x2c] sm:$0xf]
        %v1084 = vld [vmem:[%s357 + $0x30] sm:$0xf]
        %v1085 = vld [vmem:[%s357 + $0x34] sm:$0xf]
        %v1086 = vld [vmem:[%s357 + $0x38] sm:$0xf]
        %v1087 = vld [vmem:[%s357 + $0x3c] sm:$0xf]
        %v1088 = vld [vmem:[%s357 + $0x40] sm:$0xf]
        %v1089 = vld [vmem:[%s357 + $0x44] sm:$0xf]
        %v1090 = vld [vmem:[%s357 + $0x48] sm:$0xf]
        %v1091 = vld [vmem:[%s357 + $0x4c] sm:$0xf]
        %v1092 = vld [vmem:[%s357 + $0x50] sm:$0xf]
        %v1093 = vld [vmem:[%s357 + $0x54] sm:$0xf]
        %v1094 = vld [vmem:[%s357 + $0x58] sm:$0xf]
        %v1095 = vld [vmem:[%s357 + $0x5c] sm:$0xf]
        %v1096 = vld [vmem:[%s357 + $0x60] sm:$0xf]
        %v1097 = vld [vmem:[%s357 + $0x64] sm:$0xf]
        %v1098 = vld [vmem:[%s357 + $0x68] sm:$0xf]
        %v1099 = vld [vmem:[%s357 + $0x6c] sm:$0xf]
        %v1100 = vld [vmem:[%s357 + $0x70] sm:$0xf]
        %v1101 = vld [vmem:[%s357 + $0x74] sm:$0xf]
        %v1102 = vld [vmem:[%s357 + $0x78] sm:$0xf]
        %v1103 = vld [vmem:[%s357 + $0x7c] sm:$0xf]
        %v1104 = vld [vmem:[#allocation10] sm:$0xf]
        %v1105 = vld [vmem:[#allocation10 + $0x4] sm:$0xf]
        %v1106 = vld [vmem:[#allocation10 + $0x8] sm:$0xf]
        %v1107 = vld [vmem:[#allocation10 + $0xc] sm:$0xf]
        %v1108 = vld [vmem:[#allocation10 + $0x10] sm:$0xf]
        %v1109 = vld [vmem:[#allocation10 + $0x14] sm:$0xf]
        %v1110 = vld [vmem:[#allocation10 + $0x18] sm:$0xf]
        %v1111 = vld [vmem:[#allocation10 + $0x1c] sm:$0xf]
        %v1112 = vld [vmem:[#allocation10 + $0x20] sm:$0xf]
        %v1113 = vld [vmem:[#allocation10 + $0x24] sm:$0xf]
        %v1114 = vld [vmem:[#allocation10 + $0x28] sm:$0xf]
        %v1115 = vld [vmem:[#allocation10 + $0x2c] sm:$0xf]
        %v1116 = vld [vmem:[#allocation10 + $0x30] sm:$0xf]
        %v1117 = vld [vmem:[#allocation10 + $0x34] sm:$0xf]
        %v1118 = vld [vmem:[#allocation10 + $0x38] sm:$0xf]
        %v1119 = vld [vmem:[#allocation10 + $0x3c] sm:$0xf]
        %v1120 = vld [vmem:[#allocation11] sm:$0x1]
        %v1122 = vlaneseq
        %v1123 = vshrl.u32 %v1122, 7
        %v1124 = vsub.s32 0, %v1123
        %v1125 = vrot.slane %v1120, %v1124
        %v1159 = vunpack.c.l.b16 %v1072
        %v1160 = vunpack.c.l.b16 %v1073
        %v1161 = vunpack.c.l.b16 %v1074
        %v1162 = vunpack.c.l.b16 %v1075
        %v1163 = vunpack.c.l.b16 %v1076
        %v1164 = vunpack.c.l.b16 %v1077
        %v1165 = vunpack.c.l.b16 %v1078
        %v1166 = vunpack.c.l.b16 %v1079
        %v1167 = vunpack.c.l.b16 %v1080
        %v1168 = vunpack.c.l.b16 %v1081
        %v1169 = vunpack.c.l.b16 %v1082
        %v1170 = vunpack.c.l.b16 %v1083
        %v1171 = vunpack.c.l.b16 %v1084
        %v1172 = vunpack.c.l.b16 %v1085
        %v1173 = vunpack.c.l.b16 %v1086
        %v1174 = vunpack.c.l.b16 %v1087
        %v1175 = vunpack.c.l.b16 %v1088
        %v1176 = vunpack.c.l.b16 %v1089
        %v1177 = vunpack.c.l.b16 %v1090
        %v1178 = vunpack.c.l.b16 %v1091
        %v1179 = vunpack.c.l.b16 %v1092
        %v1180 = vunpack.c.l.b16 %v1093
        %v1181 = vunpack.c.l.b16 %v1094
        %v1182 = vunpack.c.l.b16 %v1095
        %v1183 = vunpack.c.l.b16 %v1096
        %v1184 = vunpack.c.l.b16 %v1097
        %v1185 = vunpack.c.l.b16 %v1098
        %v1186 = vunpack.c.l.b16 %v1099
        %v1187 = vunpack.c.l.b16 %v1100
        %v1188 = vunpack.c.l.b16 %v1101
        %v1189 = vunpack.c.l.b16 %v1102
        %v1190 = vunpack.c.l.b16 %v1103
        %v1191 = vpack.c.b16 %v1160, %v1159
        %v1192 = vpack.c.b16 %v1162, %v1161
        %v1193 = vpack.c.b16 %v1164, %v1163
        %v1194 = vpack.c.b16 %v1166, %v1165
        %v1195 = vpack.c.b16 %v1168, %v1167
        %v1196 = vpack.c.b16 %v1170, %v1169
        %v1197 = vpack.c.b16 %v1172, %v1171
        %v1198 = vpack.c.b16 %v1174, %v1173
        %v1199 = vpack.c.b16 %v1176, %v1175
        %v1200 = vpack.c.b16 %v1178, %v1177
        %v1201 = vpack.c.b16 %v1180, %v1179
        %v1202 = vpack.c.b16 %v1182, %v1181
        %v1203 = vpack.c.b16 %v1184, %v1183
        %v1204 = vpack.c.b16 %v1186, %v1185
        %v1205 = vpack.c.b16 %v1188, %v1187
        %v1206 = vpack.c.b16 %v1190, %v1189
        %v1239 = vunpack.c.l.b16 %v1104
        %v1240 = vunpack.c.l.b16 %v1105
        %v1241 = vunpack.c.l.b16 %v1106
        %v1242 = vunpack.c.l.b16 %v1107
        %v1243 = vunpack.c.l.b16 %v1108
        %v1244 = vunpack.c.l.b16 %v1109
        %v1245 = vunpack.c.l.b16 %v1110
        %v1246 = vunpack.c.l.b16 %v1111
        %v1247 = vunpack.c.l.b16 %v1112
        %v1248 = vunpack.c.l.b16 %v1113
        %v1249 = vunpack.c.l.b16 %v1114
        %v1250 = vunpack.c.l.b16 %v1115
        %v1251 = vunpack.c.l.b16 %v1116
        %v1252 = vunpack.c.l.b16 %v1117
        %v1253 = vunpack.c.l.b16 %v1118
        %v1254 = vunpack.c.l.b16 %v1119
        %v1255 = vpack.c.b16 %v1240, %v1239
        %v1256 = vpack.c.b16 %v1242, %v1241
        %v1257 = vpack.c.b16 %v1244, %v1243
        %v1258 = vpack.c.b16 %v1246, %v1245
        %v1259 = vpack.c.b16 %v1248, %v1247
        %v1260 = vpack.c.b16 %v1250, %v1249
        %v1261 = vpack.c.b16 %v1252, %v1251
        %v1262 = vpack.c.b16 %v1254, %v1253
        %1271 = vmatprep.subr.bf16.mxu0 0
        %1272 = vmatpush1.bf16.msra.mxu0 %v1255
        %1273 = vmatprep.subr.bf16.mxu0 0
        %1274 = vmatpush1.bf16.msra.mxu0 %v1256
        %1275 = vmatprep.subr.bf16.mxu0 0
        %1276 = vmatpush1.bf16.msra.mxu0 %v1257
        %1277 = vmatprep.subr.bf16.mxu0 0
        %1278 = vmatpush1.bf16.msra.mxu0 %v1258
        %1279 = vmatprep.subr.bf16.mxu0 0
        %1280 = vmatpush1.bf16.msra.mxu0 %v1259
        %1281 = vmatprep.subr.bf16.mxu0 0
        %1282 = vmatpush1.bf16.msra.mxu0 %v1260
        %1283 = vmatprep.subr.bf16.mxu0 0
        %1284 = vmatpush1.bf16.msra.mxu0 %v1261
        %1285 = vmatprep.subr.bf16.mxu0 0
        %1286 = vmatpush1.bf16.msra.mxu0 %v1262
        %1287 = vmatprep.subr.bf16.mxu0 0
        %1288 = vmatpush1.bf16.msra.mxu0 0
        %1289 = vmatprep.subr.bf16.mxu0 0
        %1290 = vmatpush1.bf16.msra.mxu0 0
        %1291 = vmatprep.subr.bf16.mxu0 0
        %1292 = vmatpush1.bf16.msra.mxu0 0
        %1293 = vmatprep.subr.bf16.mxu0 0
        %1294 = vmatpush1.bf16.msra.mxu0 0
        %1295 = vmatprep.subr.bf16.mxu0 0
        %1296 = vmatpush1.bf16.msra.mxu0 0
        %1297 = vmatprep.subr.bf16.mxu0 0
        %1298 = vmatpush1.bf16.msra.mxu0 0
        %1299 = vmatprep.subr.bf16.mxu0 0
        %1300 = vmatpush1.bf16.msra.mxu0 0
        %1301 = vmatprep.subr.bf16.mxu0 0
        %1302 = vmatpush1.bf16.msra.mxu0 0
        %1303 = vmatprep.mubr.bf16.mxu0 0
        %1304 = vmatmul.mubr.bf16.gmra.mrb[0].mxu0 %v1191
        %v1305 = vpop.f32.mrb[0].mxu0
        %v1306 = vadd.f32 %v1125, %v1305
        %v1307 = vpop.f32.mrb[0].mxu0
        %v1308 = vpop.f32.mrb[0].mxu0
        %v1309 = vadd.f32 %v1125, %v1308
        %v1310 = vpop.f32.mrb[0].mxu0
        %1311 = vmatprep.mubr.bf16.mxu0 0
        %1312 = vmatmul.mubr.bf16.gmra.mrb[0].mxu0 %v1192
        %v1313 = vpop.f32.mrb[0].mxu0
        %v1314 = vadd.f32 %v1125, %v1313
        %v1315 = vpop.f32.mrb[0].mxu0
        %v1316 = vpop.f32.mrb[0].mxu0
        %v1317 = vadd.f32 %v1125, %v1316
        %v1318 = vpop.f32.mrb[0].mxu0
        %1319 = vmatprep.mubr.bf16.mxu0 0
        %1320 = vmatmul.mubr.bf16.gmra.mrb[0].mxu0 %v1193
        %v1321 = vpop.f32.mrb[0].mxu0
        %v1322 = vadd.f32 %v1125, %v1321
        %v1323 = vpop.f32.mrb[0].mxu0
        %v1324 = vpop.f32.mrb[0].mxu0
        %v1325 = vadd.f32 %v1125, %v1324
        %v1326 = vpop.f32.mrb[0].mxu0
        %1327 = vmatprep.mubr.bf16.mxu0 0
        %1328 = vmatmul.mubr.bf16.gmra.mrb[0].mxu0 %v1194
        %v1329 = vpop.f32.mrb[0].mxu0
        %v1330 = vadd.f32 %v1125, %v1329
        %v1331 = vpop.f32.mrb[0].mxu0
        %v1332 = vpop.f32.mrb[0].mxu0
        %v1333 = vadd.f32 %v1125, %v1332
        %v1334 = vpop.f32.mrb[0].mxu0
        %1335 = vmatprep.mubr.bf16.mxu0 0
        %1336 = vmatmul.mubr.bf16.gmra.mrb[0].mxu0 %v1195
        %v1337 = vpop.f32.mrb[0].mxu0
        %v1338 = vadd.f32 %v1125, %v1337
        %v1339 = vpop.f32.mrb[0].mxu0
        %v1340 = vpop.f32.mrb[0].mxu0
        %v1341 = vadd.f32 %v1125, %v1340
        %v1342 = vpop.f32.mrb[0].mxu0
        %1343 = vmatprep.mubr.bf16.mxu0 0
        %1344 = vmatmul.mubr.bf16.gmra.mrb[0].mxu0 %v1196
        %v1345 = vpop.f32.mrb[0].mxu0
        %v1346 = vadd.f32 %v1125, %v1345
        %v1347 = vpop.f32.mrb[0].mxu0
        %v1348 = vpop.f32.mrb[0].mxu0
        %v1349 = vadd.f32 %v1125, %v1348
        %v1350 = vpop.f32.mrb[0].mxu0
        %1351 = vmatprep.mubr.bf16.mxu0 0
        %1352 = vmatmul.mubr.bf16.gmra.mrb[0].mxu0 %v1197
        %v1353 = vpop.f32.mrb[0].mxu0
        %v1354 = vadd.f32 %v1125, %v1353
        %v1355 = vpop.f32.mrb[0].mxu0
        %v1356 = vpop.f32.mrb[0].mxu0
        %v1357 = vadd.f32 %v1125, %v1356
        %v1358 = vpop.f32.mrb[0].mxu0
        %1359 = vmatprep.mubr.bf16.mxu0 0
        %1360 = vmatmul.mubr.bf16.gmra.mrb[0].mxu0 %v1198
        %v1361 = vpop.f32.mrb[0].mxu0
        %v1362 = vadd.f32 %v1125, %v1361
        %v1363 = vpop.f32.mrb[0].mxu0
        %v1364 = vpop.f32.mrb[0].mxu0
        %v1365 = vadd.f32 %v1125, %v1364
        %v1366 = vpop.f32.mrb[0].mxu0
        %1367 = vmatprep.mubr.bf16.mxu0 0
        %1368 = vmatmul.mubr.bf16.gmra.mrb[0].mxu0 %v1199
        %v1369 = vpop.f32.mrb[0].mxu0
        %v1370 = vadd.f32 %v1125, %v1369
        %v1371 = vpop.f32.mrb[0].mxu0
        %v1372 = vpop.f32.mrb[0].mxu0
        %v1373 = vadd.f32 %v1125, %v1372
        %v1374 = vpop.f32.mrb[0].mxu0
        %1375 = vmatprep.mubr.bf16.mxu0 0
        %1376 = vmatmul.mubr.bf16.gmra.mrb[0].mxu0 %v1200
        %v1377 = vpop.f32.mrb[0].mxu0
        %v1378 = vadd.f32 %v1125, %v1377
        %v1379 = vpop.f32.mrb[0].mxu0
        %v1380 = vpop.f32.mrb[0].mxu0
        %v1381 = vadd.f32 %v1125, %v1380
        %v1382 = vpop.f32.mrb[0].mxu0
        %1383 = vmatprep.mubr.bf16.mxu0 0
        %1384 = vmatmul.mubr.bf16.gmra.mrb[0].mxu0 %v1201
        %v1385 = vpop.f32.mrb[0].mxu0
        %v1386 = vadd.f32 %v1125, %v1385
        %v1387 = vpop.f32.mrb[0].mxu0
        %v1388 = vpop.f32.mrb[0].mxu0
        %v1389 = vadd.f32 %v1125, %v1388
        %v1390 = vpop.f32.mrb[0].mxu0
        %1391 = vmatprep.mubr.bf16.mxu0 0
        %1392 = vmatmul.mubr.bf16.gmra.mrb[0].mxu0 %v1202
        %v1393 = vpop.f32.mrb[0].mxu0
        %v1394 = vadd.f32 %v1125, %v1393
        %v1395 = vpop.f32.mrb[0].mxu0
        %v1396 = vpop.f32.mrb[0].mxu0
        %v1397 = vadd.f32 %v1125, %v1396
        %v1398 = vpop.f32.mrb[0].mxu0
        %1399 = vmatprep.mubr.bf16.mxu0 0
        %1400 = vmatmul.mubr.bf16.gmra.mrb[0].mxu0 %v1203
        %v1401 = vpop.f32.mrb[0].mxu0
        %v1402 = vadd.f32 %v1125, %v1401
        %v1403 = vpop.f32.mrb[0].mxu0
        %v1404 = vpop.f32.mrb[0].mxu0
        %v1405 = vadd.f32 %v1125, %v1404
        %v1406 = vpop.f32.mrb[0].mxu0
        %1407 = vmatprep.mubr.bf16.mxu0 0
        %1408 = vmatmul.mubr.bf16.gmra.mrb[0].mxu0 %v1204
        %v1409 = vpop.f32.mrb[0].mxu0
        %v1410 = vadd.f32 %v1125, %v1409
        %v1411 = vpop.f32.mrb[0].mxu0
        %v1412 = vpop.f32.mrb[0].mxu0
        %v1413 = vadd.f32 %v1125, %v1412
        %v1414 = vpop.f32.mrb[0].mxu0
        %1415 = vmatprep.mubr.bf16.mxu0 0
        %1416 = vmatmul.mubr.bf16.gmra.mrb[0].mxu0 %v1205
        %v1417 = vpop.f32.mrb[0].mxu0
        %v1418 = vadd.f32 %v1125, %v1417
        %v1419 = vpop.f32.mrb[0].mxu0
        %v1420 = vpop.f32.mrb[0].mxu0
        %v1421 = vadd.f32 %v1125, %v1420
        %v1422 = vpop.f32.mrb[0].mxu0
        %1423 = vmatprep.mubr.bf16.mxu0 0
        %1424 = vmatmul.mubr.bf16.gmra.mrb[0].mxu0 %v1206
        %v1425 = vpop.f32.mrb[0].mxu0
        %v1426 = vadd.f32 %v1125, %v1425
        %v1427 = vpop.f32.mrb[0].mxu0
        %v1428 = vpop.f32.mrb[0].mxu0
        %v1429 = vadd.f32 %v1125, %v1428
        %v1430 = vpop.f32.mrb[0].mxu0
        %1431 = vdwg.mxu0
        %v1432 = vld [vmem:[#allocation8] sm:$0xf]
        %v1433 = vld [vmem:[#allocation8 + $0x4] sm:$0xf]
        %v1434 = vld [vmem:[#allocation8 + $0x8] sm:$0xf]
        %v1435 = vld [vmem:[#allocation8 + $0xc] sm:$0xf]
        %v1436 = vld [vmem:[#allocation8 + $0x10] sm:$0xf]
        %v1437 = vld [vmem:[#allocation8 + $0x14] sm:$0xf]
        %v1438 = vld [vmem:[#allocation8 + $0x18] sm:$0xf]
        %v1439 = vld [vmem:[#allocation8 + $0x1c] sm:$0xf]
        %v1440 = vld [vmem:[#allocation8 + $0x20] sm:$0xf]
        %v1441 = vld [vmem:[#allocation8 + $0x24] sm:$0xf]
        %v1442 = vld [vmem:[#allocation8 + $0x28] sm:$0xf]
        %v1443 = vld [vmem:[#allocation8 + $0x2c] sm:$0xf]
        %v1444 = vld [vmem:[#allocation8 + $0x30] sm:$0xf]
        %v1445 = vld [vmem:[#allocation8 + $0x34] sm:$0xf]
        %v1446 = vld [vmem:[#allocation8 + $0x38] sm:$0xf]
        %v1447 = vld [vmem:[#allocation8 + $0x3c] sm:$0xf]
        %v1448 = vld [vmem:[#allocation8 + $0x40] sm:$0xf]
        %v1449 = vld [vmem:[#allocation8 + $0x44] sm:$0xf]
        %v1450 = vld [vmem:[#allocation8 + $0x48] sm:$0xf]
        %v1451 = vld [vmem:[#allocation8 + $0x4c] sm:$0xf]
        %v1452 = vld [vmem:[#allocation8 + $0x50] sm:$0xf]
        %v1453 = vld [vmem:[#allocation8 + $0x54] sm:$0xf]
        %v1454 = vld [vmem:[#allocation8 + $0x58] sm:$0xf]
        %v1455 = vld [vmem:[#allocation8 + $0x5c] sm:$0xf]
        %v1456 = vld [vmem:[#allocation8 + $0x60] sm:$0xf]
        %v1457 = vld [vmem:[#allocation8 + $0x64] sm:$0xf]
        %v1458 = vld [vmem:[#allocation8 + $0x68] sm:$0xf]
        %v1459 = vld [vmem:[#allocation8 + $0x6c] sm:$0xf]
        %v1460 = vld [vmem:[#allocation8 + $0x70] sm:$0xf]
        %v1461 = vld [vmem:[#allocation8 + $0x74] sm:$0xf]
        %v1462 = vld [vmem:[#allocation8 + $0x78] sm:$0xf]
        %v1463 = vld [vmem:[#allocation8 + $0x7c] sm:$0xf]
        %v1496 = vunpack.c.l.b16 %v1432
        %v1497 = vunpack.c.l.b16 %v1433
        %v1498 = vunpack.c.l.b16 %v1434
        %v1499 = vunpack.c.l.b16 %v1435
        %v1500 = vunpack.c.l.b16 %v1436
        %v1501 = vunpack.c.l.b16 %v1437
        %v1502 = vunpack.c.l.b16 %v1438
        %v1503 = vunpack.c.l.b16 %v1439
        %v1504 = vunpack.c.l.b16 %v1440
        %v1505 = vunpack.c.l.b16 %v1441
        %v1506 = vunpack.c.l.b16 %v1442
        %v1507 = vunpack.c.l.b16 %v1443
        %v1508 = vunpack.c.l.b16 %v1444
        %v1509 = vunpack.c.l.b16 %v1445
        %v1510 = vunpack.c.l.b16 %v1446
        %v1511 = vunpack.c.l.b16 %v1447
        %v1512 = vunpack.c.l.b16 %v1448
        %v1513 = vunpack.c.l.b16 %v1449
        %v1514 = vunpack.c.l.b16 %v1450
        %v1515 = vunpack.c.l.b16 %v1451
        %v1516 = vunpack.c.l.b16 %v1452
        %v1517 = vunpack.c.l.b16 %v1453
        %v1518 = vunpack.c.l.b16 %v1454
        %v1519 = vunpack.c.l.b16 %v1455
        %v1520 = vunpack.c.l.b16 %v1456
        %v1521 = vunpack.c.l.b16 %v1457
        %v1522 = vunpack.c.l.b16 %v1458
        %v1523 = vunpack.c.l.b16 %v1459
        %v1524 = vunpack.c.l.b16 %v1460
        %v1525 = vunpack.c.l.b16 %v1461
        %v1526 = vunpack.c.l.b16 %v1462
        %v1527 = vunpack.c.l.b16 %v1463
        %v1528 = vpack.c.b16 %v1497, %v1496
        %v1529 = vpack.c.b16 %v1499, %v1498
        %v1530 = vpack.c.b16 %v1501, %v1500
        %v1531 = vpack.c.b16 %v1503, %v1502
        %v1532 = vpack.c.b16 %v1505, %v1504
        %v1533 = vpack.c.b16 %v1507, %v1506
        %v1534 = vpack.c.b16 %v1509, %v1508
        %v1535 = vpack.c.b16 %v1511, %v1510
        %v1536 = vpack.c.b16 %v1513, %v1512
        %v1537 = vpack.c.b16 %v1515, %v1514
        %v1538 = vpack.c.b16 %v1517, %v1516
        %v1539 = vpack.c.b16 %v1519, %v1518
        %v1540 = vpack.c.b16 %v1521, %v1520
        %v1541 = vpack.c.b16 %v1523, %v1522
        %v1542 = vpack.c.b16 %v1525, %v1524
        %v1543 = vpack.c.b16 %v1527, %v1526
        %1560 = vmatprep.subr.bf16.mxu0 0
        %1561 = vmatpush1.bf16.msra.mxu0 %v1528
        %1562 = vmatprep.subr.bf16.mxu0 0
        %1563 = vmatpush1.bf16.msra.mxu0 %v1529
        %1564 = vmatprep.subr.bf16.mxu0 0
        %1565 = vmatpush1.bf16.msra.mxu0 %v1530
        %1566 = vmatprep.subr.bf16.mxu0 0
        %1567 = vmatpush1.bf16.msra.mxu0 %v1531
        %1568 = vmatprep.subr.bf16.mxu0 0
        %1569 = vmatpush1.bf16.msra.mxu0 %v1532
        %1570 = vmatprep.subr.bf16.mxu0 0
        %1571 = vmatpush1.bf16.msra.mxu0 %v1533
        %1572 = vmatprep.subr.bf16.mxu0 0
        %1573 = vmatpush1.bf16.msra.mxu0 %v1534
        %1574 = vmatprep.subr.bf16.mxu0 0
        %1575 = vmatpush1.bf16.msra.mxu0 %v1535
        %1576 = vmatprep.subr.bf16.mxu0 0
        %1577 = vmatpush1.bf16.msra.mxu0 %v1536
        %1578 = vmatprep.subr.bf16.mxu0 0
        %1579 = vmatpush1.bf16.msra.mxu0 %v1537
        %1580 = vmatprep.subr.bf16.mxu0 0
        %1581 = vmatpush1.bf16.msra.mxu0 %v1538
        %1582 = vmatprep.subr.bf16.mxu0 0
        %1583 = vmatpush1.bf16.msra.mxu0 %v1539
        %1584 = vmatprep.subr.bf16.mxu0 0
        %1585 = vmatpush1.bf16.msra.mxu0 %v1540
        %1586 = vmatprep.subr.bf16.mxu0 0
        %1587 = vmatpush1.bf16.msra.mxu0 %v1541
        %1588 = vmatprep.subr.bf16.mxu0 0
        %1589 = vmatpush1.bf16.msra.mxu0 %v1542
        %1590 = vmatprep.subr.bf16.mxu0 0
        %1591 = vmatpush1.bf16.msra.mxu0 %v1543
        %1592 = vmatprep.mubr.bf16.mxu0 %v776
        %1593 = vmatmul.mubr.bf16.gmra.mrb[0].mxu0 %v775
        %v1594 = vpop.f32.mrb[0].mxu0
        %v1595 = vadd.f32 %v1306, %v1594
        %v1596 = vpop.f32.mrb[0].mxu0
        %v1597 = vpop.f32.mrb[0].mxu0
        %v1598 = vadd.f32 %v1309, %v1597
        %v1599 = vpop.f32.mrb[0].mxu0
        %1600 = vmatprep.mubr.bf16.mxu0 %v778
        %1601 = vmatmul.mubr.bf16.gmra.mrb[0].mxu0 %v777
        %v1602 = vpop.f32.mrb[0].mxu0
        %v1603 = vadd.f32 %v1314, %v1602
        %v1604 = vpop.f32.mrb[0].mxu0
        %v1605 = vpop.f32.mrb[0].mxu0
        %v1606 = vadd.f32 %v1317, %v1605
        %v1607 = vpop.f32.mrb[0].mxu0
        %1608 = vmatprep.mubr.bf16.mxu0 %v780
        %1609 = vmatmul.mubr.bf16.gmra.mrb[0].mxu0 %v779
        %v1610 = vpop.f32.mrb[0].mxu0
        %v1611 = vadd.f32 %v1322, %v1610
        %v1612 = vpop.f32.mrb[0].mxu0
        %v1613 = vpop.f32.mrb[0].mxu0
        %v1614 = vadd.f32 %v1325, %v1613
        %v1615 = vpop.f32.mrb[0].mxu0
        %1616 = vmatprep.mubr.bf16.mxu0 %v782
        %1617 = vmatmul.mubr.bf16.gmra.mrb[0].mxu0 %v781
        %v1618 = vpop.f32.mrb[0].mxu0
        %v1619 = vadd.f32 %v1330, %v1618
        %v1620 = vpop.f32.mrb[0].mxu0
        %v1621 = vpop.f32.mrb[0].mxu0
        %v1622 = vadd.f32 %v1333, %v1621
        %v1623 = vpop.f32.mrb[0].mxu0
        %1624 = vmatprep.mubr.bf16.mxu0 %v784
        %1625 = vmatmul.mubr.bf16.gmra.mrb[0].mxu0 %v783
        %v1626 = vpop.f32.mrb[0].mxu0
        %v1627 = vadd.f32 %v1338, %v1626
        %v1628 = vpop.f32.mrb[0].mxu0
        %v1629 = vpop.f32.mrb[0].mxu0
        %v1630 = vadd.f32 %v1341, %v1629
        %v1631 = vpop.f32.mrb[0].mxu0
        %1632 = vmatprep.mubr.bf16.mxu0 %v786
        %1633 = vmatmul.mubr.bf16.gmra.mrb[0].mxu0 %v785
        %v1634 = vpop.f32.mrb[0].mxu0
        %v1635 = vadd.f32 %v1346, %v1634
        %v1636 = vpop.f32.mrb[0].mxu0
        %v1637 = vpop.f32.mrb[0].mxu0
        %v1638 = vadd.f32 %v1349, %v1637
        %v1639 = vpop.f32.mrb[0].mxu0
        %1640 = vmatprep.mubr.bf16.mxu0 %v788
        %1641 = vmatmul.mubr.bf16.gmra.mrb[0].mxu0 %v787
        %v1642 = vpop.f32.mrb[0].mxu0
        %v1643 = vadd.f32 %v1354, %v1642
        %v1644 = vpop.f32.mrb[0].mxu0
        %v1645 = vpop.f32.mrb[0].mxu0
        %v1646 = vadd.f32 %v1357, %v1645
        %v1647 = vpop.f32.mrb[0].mxu0
        %1648 = vmatprep.mubr.bf16.mxu0 %v790
        %1649 = vmatmul.mubr.bf16.gmra.mrb[0].mxu0 %v789
        %v1650 = vpop.f32.mrb[0].mxu0
        %v1651 = vadd.f32 %v1362, %v1650
        %v1652 = vpop.f32.mrb[0].mxu0
        %v1653 = vpop.f32.mrb[0].mxu0
        %v1654 = vadd.f32 %v1365, %v1653
        %v1655 = vpop.f32.mrb[0].mxu0
        %1656 = vmatprep.mubr.bf16.mxu0 %v792
        %1657 = vmatmul.mubr.bf16.gmra.mrb[0].mxu0 %v791
        %v1658 = vpop.f32.mrb[0].mxu0
        %v1659 = vadd.f32 %v1370, %v1658
        %v1660 = vpop.f32.mrb[0].mxu0
        %v1661 = vpop.f32.mrb[0].mxu0
        %v1662 = vadd.f32 %v1373, %v1661
        %v1663 = vpop.f32.mrb[0].mxu0
        %1664 = vmatprep.mubr.bf16.mxu0 %v794
        %1665 = vmatmul.mubr.bf16.gmra.mrb[0].mxu0 %v793
        %v1666 = vpop.f32.mrb[0].mxu0
        %v1667 = vadd.f32 %v1378, %v1666
        %v1668 = vpop.f32.mrb[0].mxu0
        %v1669 = vpop.f32.mrb[0].mxu0
        %v1670 = vadd.f32 %v1381, %v1669
        %v1671 = vpop.f32.mrb[0].mxu0
        %1672 = vmatprep.mubr.bf16.mxu0 %v796
        %1673 = vmatmul.mubr.bf16.gmra.mrb[0].mxu0 %v795
        %v1674 = vpop.f32.mrb[0].mxu0
        %v1675 = vadd.f32 %v1386, %v1674
        %v1676 = vpop.f32.mrb[0].mxu0
        %v1677 = vpop.f32.mrb[0].mxu0
        %v1678 = vadd.f32 %v1389, %v1677
        %v1679 = vpop.f32.mrb[0].mxu0
        %1680 = vmatprep.mubr.bf16.mxu0 %v798
        %1681 = vmatmul.mubr.bf16.gmra.mrb[0].mxu0 %v797
        %v1682 = vpop.f32.mrb[0].mxu0
        %v1683 = vadd.f32 %v1394, %v1682
        %v1684 = vpop.f32.mrb[0].mxu0
        %v1685 = vpop.f32.mrb[0].mxu0
        %v1686 = vadd.f32 %v1397, %v1685
        %v1687 = vpop.f32.mrb[0].mxu0
        %1688 = vmatprep.mubr.bf16.mxu0 %v800
        %1689 = vmatmul.mubr.bf16.gmra.mrb[0].mxu0 %v799
        %v1690 = vpop.f32.mrb[0].mxu0
        %v1691 = vadd.f32 %v1402, %v1690
        %v1692 = vpop.f32.mrb[0].mxu0
        %v1693 = vpop.f32.mrb[0].mxu0
        %v1694 = vadd.f32 %v1405, %v1693
        %v1695 = vpop.f32.mrb[0].mxu0
        %1696 = vmatprep.mubr.bf16.mxu0 %v802
        %1697 = vmatmul.mubr.bf16.gmra.mrb[0].mxu0 %v801
        %v1698 = vpop.f32.mrb[0].mxu0
        %v1699 = vadd.f32 %v1410, %v1698
        %v1700 = vpop.f32.mrb[0].mxu0
        %v1701 = vpop.f32.mrb[0].mxu0
        %v1702 = vadd.f32 %v1413, %v1701
        %v1703 = vpop.f32.mrb[0].mxu0
        %1704 = vmatprep.mubr.bf16.mxu0 %v804
        %1705 = vmatmul.mubr.bf16.gmra.mrb[0].mxu0 %v803
        %v1706 = vpop.f32.mrb[0].mxu0
        %v1707 = vadd.f32 %v1418, %v1706
        %v1708 = vpop.f32.mrb[0].mxu0
        %v1709 = vpop.f32.mrb[0].mxu0
        %v1710 = vadd.f32 %v1421, %v1709
        %v1711 = vpop.f32.mrb[0].mxu0
        %1712 = vmatprep.mubr.bf16.mxu0 %v806
        %1713 = vmatmul.mubr.bf16.gmra.mrb[0].mxu0 %v805
        %v1714 = vpop.f32.mrb[0].mxu0
        %v1715 = vadd.f32 %v1426, %v1714
        %v1716 = vpop.f32.mrb[0].mxu0
        %v1717 = vpop.f32.mrb[0].mxu0
        %v1718 = vadd.f32 %v1429, %v1717
        %v1719 = vpop.f32.mrb[0].mxu0
        %1720 = vdwg.mxu0
        %v1721 = vmax.f32 %v1595, 0.0
        %v1722 = vmax.f32 %v1598, 0.0
        %v1723 = vmax.f32 %v1603, 0.0
        %v1724 = vmax.f32 %v1606, 0.0
        %v1725 = vmax.f32 %v1611, 0.0
        %v1726 = vmax.f32 %v1614, 0.0
        %v1727 = vmax.f32 %v1619, 0.0
        %v1728 = vmax.f32 %v1622, 0.0
        %v1729 = vmax.f32 %v1627, 0.0
        %v1730 = vmax.f32 %v1630, 0.0
        %v1731 = vmax.f32 %v1635, 0.0
        %v1732 = vmax.f32 %v1638, 0.0
        %v1733 = vmax.f32 %v1643, 0.0
        %v1734 = vmax.f32 %v1646, 0.0
        %v1735 = vmax.f32 %v1651, 0.0
        %v1736 = vmax.f32 %v1654, 0.0
        %v1737 = vmax.f32 %v1659, 0.0
        %v1738 = vmax.f32 %v1662, 0.0
        %v1739 = vmax.f32 %v1667, 0.0
        %v1740 = vmax.f32 %v1670, 0.0
        %v1741 = vmax.f32 %v1675, 0.0
        %v1742 = vmax.f32 %v1678, 0.0
        %v1743 = vmax.f32 %v1683, 0.0
        %v1744 = vmax.f32 %v1686, 0.0
        %v1745 = vmax.f32 %v1691, 0.0
        %v1746 = vmax.f32 %v1694, 0.0
        %v1747 = vmax.f32 %v1699, 0.0
        %v1748 = vmax.f32 %v1702, 0.0
        %v1749 = vmax.f32 %v1707, 0.0
        %v1750 = vmax.f32 %v1710, 0.0
        %v1751 = vmax.f32 %v1715, 0.0
        %v1752 = vmax.f32 %v1718, 0.0
        %v1753 = vld [vmem:[%s407] sm:$0xff]
        %v1754 = vld [vmem:[%s407 + $0x8] sm:$0xff]
        %v1755 = vld [vmem:[%s407 + $0x10] sm:$0xff]
        %v1756 = vld [vmem:[%s407 + $0x18] sm:$0xff]
        %v1757 = vld [vmem:[%s407 + $0x20] sm:$0xff]
        %v1758 = vld [vmem:[%s407 + $0x28] sm:$0xff]
        %v1759 = vld [vmem:[%s407 + $0x30] sm:$0xff]
        %v1760 = vld [vmem:[%s407 + $0x38] sm:$0xff]
        %v1761 = vld [vmem:[%s407 + $0x40] sm:$0xff]
        %v1762 = vld [vmem:[%s407 + $0x48] sm:$0xff]
        %v1763 = vld [vmem:[%s407 + $0x50] sm:$0xff]
        %v1764 = vld [vmem:[%s407 + $0x58] sm:$0xff]
        %v1765 = vld [vmem:[%s407 + $0x60] sm:$0xff]
        %v1766 = vld [vmem:[%s407 + $0x68] sm:$0xff]
        %v1767 = vld [vmem:[%s407 + $0x70] sm:$0xff]
        %v1768 = vld [vmem:[%s407 + $0x78] sm:$0xff]
        %v1769 = vld [vmem:[%s407 + $0x80] sm:$0xff]
        %v1770 = vld [vmem:[%s407 + $0x88] sm:$0xff]
        %v1771 = vld [vmem:[%s407 + $0x90] sm:$0xff]
        %v1772 = vld [vmem:[%s407 + $0x98] sm:$0xff]
        %v1773 = vld [vmem:[%s407 + $0xa0] sm:$0xff]
        %v1774 = vld [vmem:[%s407 + $0xa8] sm:$0xff]
        %v1775 = vld [vmem:[%s407 + $0xb0] sm:$0xff]
        %v1776 = vld [vmem:[%s407 + $0xb8] sm:$0xff]
        %v1777 = vld [vmem:[%s407 + $0xc0] sm:$0xff]
        %v1778 = vld [vmem:[%s407 + $0xc8] sm:$0xff]
        %v1779 = vld [vmem:[%s407 + $0xd0] sm:$0xff]
        %v1780 = vld [vmem:[%s407 + $0xd8] sm:$0xff]
        %v1781 = vld [vmem:[%s407 + $0xe0] sm:$0xff]
        %v1782 = vld [vmem:[%s407 + $0xe8] sm:$0xff]
        %v1783 = vld [vmem:[%s407 + $0xf0] sm:$0xff]
        %v1784 = vld [vmem:[%s407 + $0xf8] sm:$0xff]
        %v1785 = vpack.c.bf16 %v1722, %v1721
        %v1786 = vpack.c.bf16 %v1724, %v1723
        %v1787 = vpack.c.bf16 %v1726, %v1725
        %v1788 = vpack.c.bf16 %v1728, %v1727
        %v1789 = vpack.c.bf16 %v1730, %v1729
        %v1790 = vpack.c.bf16 %v1732, %v1731
        %v1791 = vpack.c.bf16 %v1734, %v1733
        %v1792 = vpack.c.bf16 %v1736, %v1735
        %v1793 = vpack.c.bf16 %v1738, %v1737
        %v1794 = vpack.c.bf16 %v1740, %v1739
        %v1795 = vpack.c.bf16 %v1742, %v1741
        %v1796 = vpack.c.bf16 %v1744, %v1743
        %v1797 = vpack.c.bf16 %v1746, %v1745
        %v1798 = vpack.c.bf16 %v1748, %v1747
        %v1799 = vpack.c.bf16 %v1750, %v1749
        %v1800 = vpack.c.bf16 %v1752, %v1751
        %1801 = vmatprep.subr.bf16.mxu0 0
        %1802 = vmatpush1.bf16.msra.mxu0 %v1785
        %1803 = vmatprep.subr.bf16.mxu0 0
        %1804 = vmatpush1.bf16.msra.mxu0 %v1786
        %1805 = vmatprep.subr.bf16.mxu0 0
        %1806 = vmatpush1.bf16.msra.mxu0 %v1787
        %1807 = vmatprep.subr.bf16.mxu0 0
        %1808 = vmatpush1.bf16.msra.mxu0 %v1788
        %1809 = vmatprep.subr.bf16.mxu0 0
        %1810 = vmatpush1.bf16.msra.mxu0 %v1789
        %1811 = vmatprep.subr.bf16.mxu0 0
        %1812 = vmatpush1.bf16.msra.mxu0 %v1790
        %1813 = vmatprep.subr.bf16.mxu0 0
        %1814 = vmatpush1.bf16.msra.mxu0 %v1791
        %1815 = vmatprep.subr.bf16.mxu0 0
        %1816 = vmatpush1.bf16.msra.mxu0 %v1792
        %1817 = vmatprep.subr.bf16.mxu0 0
        %1818 = vmatpush1.bf16.msra.mxu0 %v1793
        %1819 = vmatprep.subr.bf16.mxu0 0
        %1820 = vmatpush1.bf16.msra.mxu0 %v1794
        %1821 = vmatprep.subr.bf16.mxu0 0
        %1822 = vmatpush1.bf16.msra.mxu0 %v1795
        %1823 = vmatprep.subr.bf16.mxu0 0
        %1824 = vmatpush1.bf16.msra.mxu0 %v1796
        %1825 = vmatprep.subr.bf16.mxu0 0
        %1826 = vmatpush1.bf16.msra.mxu0 %v1797
        %1827 = vmatprep.subr.bf16.mxu0 0
        %1828 = vmatpush1.bf16.msra.mxu0 %v1798
        %1829 = vmatprep.subr.bf16.mxu0 0
        %1830 = vmatpush1.bf16.msra.mxu0 %v1799
        %1831 = vmatprep.subr.bf16.mxu0 0
        %1832 = vmatpush1.bf16.msra.mxu0 %v1800
        %1833 = vmatprep.mubr.bf16.mxu0 %v1041
        %1834 = vmatmul.mubr.bf16.gmra.mrb[0].mxu0 %v1040
        %v1835 = vpop.f32.mrb[0].mxu0
        %v1836 = vadd.f32 0.0, %v1835
        %v1837 = vpop.f32.mrb[0].mxu0
        %v1838 = vpop.f32.mrb[0].mxu0
        %v1839 = vadd.f32 0.0, %v1838
        %v1840 = vpop.f32.mrb[0].mxu0
        %1841 = vmatprep.mubr.bf16.mxu0 %v1043
        %1842 = vmatmul.mubr.bf16.gmra.mrb[0].mxu0 %v1042
        %v1843 = vpop.f32.mrb[0].mxu0
        %v1844 = vadd.f32 0.0, %v1843
        %v1845 = vpop.f32.mrb[0].mxu0
        %v1846 = vpop.f32.mrb[0].mxu0
        %v1847 = vadd.f32 0.0, %v1846
        %v1848 = vpop.f32.mrb[0].mxu0
        %1849 = vmatprep.mubr.bf16.mxu0 %v1045
        %1850 = vmatmul.mubr.bf16.gmra.mrb[0].mxu0 %v1044
        %v1851 = vpop.f32.mrb[0].mxu0
        %v1852 = vadd.f32 0.0, %v1851
        %v1853 = vpop.f32.mrb[0].mxu0
        %v1854 = vpop.f32.mrb[0].mxu0
        %v1855 = vadd.f32 0.0, %v1854
        %v1856 = vpop.f32.mrb[0].mxu0
        %1857 = vmatprep.mubr.bf16.mxu0 %v1047
        %1858 = vmatmul.mubr.bf16.gmra.mrb[0].mxu0 %v1046
        %v1859 = vpop.f32.mrb[0].mxu0
        %v1860 = vadd.f32 0.0, %v1859
        %v1861 = vpop.f32.mrb[0].mxu0
        %v1862 = vpop.f32.mrb[0].mxu0
        %v1863 = vadd.f32 0.0, %v1862
        %v1864 = vpop.f32.mrb[0].mxu0
        %1865 = vmatprep.mubr.bf16.mxu0 %v1049
        %1866 = vmatmul.mubr.bf16.gmra.mrb[0].mxu0 %v1048
        %v1867 = vpop.f32.mrb[0].mxu0
        %v1868 = vadd.f32 0.0, %v1867
        %v1869 = vpop.f32.mrb[0].mxu0
        %v1870 = vpop.f32.mrb[0].mxu0
        %v1871 = vadd.f32 0.0, %v1870
        %v1872 = vpop.f32.mrb[0].mxu0
        %1873 = vmatprep.mubr.bf16.mxu0 %v1051
        %1874 = vmatmul.mubr.bf16.gmra.mrb[0].mxu0 %v1050
        %v1875 = vpop.f32.mrb[0].mxu0
        %v1876 = vadd.f32 0.0, %v1875
        %v1877 = vpop.f32.mrb[0].mxu0
        %v1878 = vpop.f32.mrb[0].mxu0
        %v1879 = vadd.f32 0.0, %v1878
        %v1880 = vpop.f32.mrb[0].mxu0
        %1881 = vmatprep.mubr.bf16.mxu0 %v1053
        %1882 = vmatmul.mubr.bf16.gmra.mrb[0].mxu0 %v1052
        %v1883 = vpop.f32.mrb[0].mxu0
        %v1884 = vadd.f32 0.0, %v1883
        %v1885 = vpop.f32.mrb[0].mxu0
        %v1886 = vpop.f32.mrb[0].mxu0
        %v1887 = vadd.f32 0.0, %v1886
        %v1888 = vpop.f32.mrb[0].mxu0
        %1889 = vmatprep.mubr.bf16.mxu0 %v1055
        %1890 = vmatmul.mubr.bf16.gmra.mrb[0].mxu0 %v1054
        %v1891 = vpop.f32.mrb[0].mxu0
        %v1892 = vadd.f32 0.0, %v1891
        %v1893 = vpop.f32.mrb[0].mxu0
        %v1894 = vpop.f32.mrb[0].mxu0
        %v1895 = vadd.f32 0.0, %v1894
        %v1896 = vpop.f32.mrb[0].mxu0
        %1897 = vmatprep.mubr.bf16.mxu0 %v1057
        %1898 = vmatmul.mubr.bf16.gmra.mrb[0].mxu0 %v1056
        %v1899 = vpop.f32.mrb[0].mxu0
        %v1900 = vadd.f32 0.0, %v1899
        %v1901 = vpop.f32.mrb[0].mxu0
        %v1902 = vpop.f32.mrb[0].mxu0
        %v1903 = vadd.f32 0.0, %v1902
        %v1904 = vpop.f32.mrb[0].mxu0
        %1905 = vmatprep.mubr.bf16.mxu0 %v1059
        %1906 = vmatmul.mubr.bf16.gmra.mrb[0].mxu0 %v1058
        %v1907 = vpop.f32.mrb[0].mxu0
        %v1908 = vadd.f32 0.0, %v1907
        %v1909 = vpop.f32.mrb[0].mxu0
        %v1910 = vpop.f32.mrb[0].mxu0
        %v1911 = vadd.f32 0.0, %v1910
        %v1912 = vpop.f32.mrb[0].mxu0
        %1913 = vmatprep.mubr.bf16.mxu0 %v1061
        %1914 = vmatmul.mubr.bf16.gmra.mrb[0].mxu0 %v1060
        %v1915 = vpop.f32.mrb[0].mxu0
        %v1916 = vadd.f32 0.0, %v1915
        %v1917 = vpop.f32.mrb[0].mxu0
        %v1918 = vpop.f32.mrb[0].mxu0
        %v1919 = vadd.f32 0.0, %v1918
        %v1920 = vpop.f32.mrb[0].mxu0
        %1921 = vmatprep.mubr.bf16.mxu0 %v1063
        %1922 = vmatmul.mubr.bf16.gmra.mrb[0].mxu0 %v1062
        %v1923 = vpop.f32.mrb[0].mxu0
        %v1924 = vadd.f32 0.0, %v1923
        %v1925 = vpop.f32.mrb[0].mxu0
        %v1926 = vpop.f32.mrb[0].mxu0
        %v1927 = vadd.f32 0.0, %v1926
        %v1928 = vpop.f32.mrb[0].mxu0
        %1929 = vmatprep.mubr.bf16.mxu0 %v1065
        %1930 = vmatmul.mubr.bf16.gmra.mrb[0].mxu0 %v1064
        %v1931 = vpop.f32.mrb[0].mxu0
        %v1932 = vadd.f32 0.0, %v1931
        %v1933 = vpop.f32.mrb[0].mxu0
        %v1934 = vpop.f32.mrb[0].mxu0
        %v1935 = vadd.f32 0.0, %v1934
        %v1936 = vpop.f32.mrb[0].mxu0
        %1937 = vmatprep.mubr.bf16.mxu0 %v1067
        %1938 = vmatmul.mubr.bf16.gmra.mrb[0].mxu0 %v1066
        %v1939 = vpop.f32.mrb[0].mxu0
        %v1940 = vadd.f32 0.0, %v1939
        %v1941 = vpop.f32.mrb[0].mxu0
        %v1942 = vpop.f32.mrb[0].mxu0
        %v1943 = vadd.f32 0.0, %v1942
        %v1944 = vpop.f32.mrb[0].mxu0
        %1945 = vmatprep.mubr.bf16.mxu0 %v1069
        %1946 = vmatmul.mubr.bf16.gmra.mrb[0].mxu0 %v1068
        %v1947 = vpop.f32.mrb[0].mxu0
        %v1948 = vadd.f32 0.0, %v1947
        %v1949 = vpop.f32.mrb[0].mxu0
        %v1950 = vpop.f32.mrb[0].mxu0
        %v1951 = vadd.f32 0.0, %v1950
        %v1952 = vpop.f32.mrb[0].mxu0
        %1953 = vmatprep.mubr.bf16.mxu0 %v1071
        %1954 = vmatmul.mubr.bf16.gmra.mrb[0].mxu0 %v1070
        %v1955 = vpop.f32.mrb[0].mxu0
        %v1956 = vadd.f32 0.0, %v1955
        %v1957 = vpop.f32.mrb[0].mxu0
        %v1958 = vpop.f32.mrb[0].mxu0
        %v1959 = vadd.f32 0.0, %v1958
        %v1960 = vpop.f32.mrb[0].mxu0
        %1961 = vdwg.mxu0
        %v1962 = vadd.f32 %v1753, %v1836
        %v1963 = vadd.f32 %v1754, %v1839
        %v1964 = vadd.f32 %v1755, %v1844
        %v1965 = vadd.f32 %v1756, %v1847
        %v1966 = vadd.f32 %v1757, %v1852
        %v1967 = vadd.f32 %v1758, %v1855
        %v1968 = vadd.f32 %v1759, %v1860
        %v1969 = vadd.f32 %v1760, %v1863
        %v1970 = vadd.f32 %v1761, %v1868
        %v1971 = vadd.f32 %v1762, %v1871
        %v1972 = vadd.f32 %v1763, %v1876
        %v1973 = vadd.f32 %v1764, %v1879
        %v1974 = vadd.f32 %v1765, %v1884
        %v1975 = vadd.f32 %v1766, %v1887
        %v1976 = vadd.f32 %v1767, %v1892
        %v1977 = vadd.f32 %v1768, %v1895
        %v1978 = vadd.f32 %v1769, %v1900
        %v1979 = vadd.f32 %v1770, %v1903
        %v1980 = vadd.f32 %v1771, %v1908
        %v1981 = vadd.f32 %v1772, %v1911
        %v1982 = vadd.f32 %v1773, %v1916
        %v1983 = vadd.f32 %v1774, %v1919
        %v1984 = vadd.f32 %v1775, %v1924
        %v1985 = vadd.f32 %v1776, %v1927
        %v1986 = vadd.f32 %v1777, %v1932
        %v1987 = vadd.f32 %v1778, %v1935
        %v1988 = vadd.f32 %v1779, %v1940
        %v1989 = vadd.f32 %v1780, %v1943
        %v1990 = vadd.f32 %v1781, %v1948
        %v1991 = vadd.f32 %v1782, %v1951
        %v1992 = vadd.f32 %v1783, %v1956
        %v1993 = vadd.f32 %v1784, %v1959
        %1994 = vst [vmem:[%s407] sm:$0xff] %v1962
        %1995 = vst [vmem:[%s407 + $0x8] sm:$0xff] %v1963
        %1996 = vst [vmem:[%s407 + $0x10] sm:$0xff] %v1964
        %1997 = vst [vmem:[%s407 + $0x18] sm:$0xff] %v1965
        %1998 = vst [vmem:[%s407 + $0x20] sm:$0xff] %v1966
        %1999 = vst [vmem:[%s407 + $0x28] sm:$0xff] %v1967
        %2000 = vst [vmem:[%s407 + $0x30] sm:$0xff] %v1968
        %2001 = vst [vmem:[%s407 + $0x38] sm:$0xff] %v1969
        %2002 = vst [vmem:[%s407 + $0x40] sm:$0xff] %v1970
        %2003 = vst [vmem:[%s407 + $0x48] sm:$0xff] %v1971
        %2004 = vst [vmem:[%s407 + $0x50] sm:$0xff] %v1972
        %2005 = vst [vmem:[%s407 + $0x58] sm:$0xff] %v1973
        %2006 = vst [vmem:[%s407 + $0x60] sm:$0xff] %v1974
        %2007 = vst [vmem:[%s407 + $0x68] sm:$0xff] %v1975
        %2008 = vst [vmem:[%s407 + $0x70] sm:$0xff] %v1976
        %2009 = vst [vmem:[%s407 + $0x78] sm:$0xff] %v1977
        %2010 = vst [vmem:[%s407 + $0x80] sm:$0xff] %v1978
        %2011 = vst [vmem:[%s407 + $0x88] sm:$0xff] %v1979
        %2012 = vst [vmem:[%s407 + $0x90] sm:$0xff] %v1980
        %2013 = vst [vmem:[%s407 + $0x98] sm:$0xff] %v1981
        %2014 = vst [vmem:[%s407 + $0xa0] sm:$0xff] %v1982
        %2015 = vst [vmem:[%s407 + $0xa8] sm:$0xff] %v1983
        %2016 = vst [vmem:[%s407 + $0xb0] sm:$0xff] %v1984
        %2017 = vst [vmem:[%s407 + $0xb8] sm:$0xff] %v1985
        %2018 = vst [vmem:[%s407 + $0xc0] sm:$0xff] %v1986
        %2019 = vst [vmem:[%s407 + $0xc8] sm:$0xff] %v1987
        %2020 = vst [vmem:[%s407 + $0xd0] sm:$0xff] %v1988
        %2021 = vst [vmem:[%s407 + $0xd8] sm:$0xff] %v1989
        %2022 = vst [vmem:[%s407 + $0xe0] sm:$0xff] %v1990
        %2023 = vst [vmem:[%s407 + $0xe8] sm:$0xff] %v1991
        %2024 = vst [vmem:[%s407 + $0xf0] sm:$0xff] %v1992
        %2025 = vst [vmem:[%s407 + $0xf8] sm:$0xff] %v1993
        %s2026 = sand.u32 %s195, 1
        %s2027 = scalar_lea.sflag [#allocation4], %s2026
        %s2028 = sand.u32 %s195, 1
        %s2029 = smul.addr %s2028, 256
        %s2030 = scalar_lea.vmem [#allocation13], %s2029
        // Predicated region
        $region73: #{_lambda_.4} parent=43 // pred_check
          %p2031 = pneg %p205
        $region74: #{_lambda_.4} parent=43 // pred_check_branch
          %2033 = sbr.rel (%p2031) target = $region76
        $region75: #{_lambda_.4} parent=43 // pred_region
          %s2035 = ssub.s32 4096, 4096
          %2036 = vsyncadd %s2027, %s2035
          %s2037 = smul.addr %s32, 32
          %s2038 = smul.addr %s2037, 128
          %s2039 = scalar_lea.hbm %s6, %s2038
          %s2040 = sshll.u32 %s2030, 4
          %s2041 = int_to_ptr.vmem [resolvable:$true] %s2040
          %2046 = dma.vmem_to_hbm [thread:$0]  %s2041, 4096, %s2039, %s2027, 128, 128, 8
        $region76: #{_lambda_.4} parent=43 // pred_fallthru
          _
      $region44: #{_lambda_.4} parent=5 // pred_fallthru
        _
      %p2047 = scmp.le.s32.totalorder 2, %s23
      // Predicated region
      $region77: #{_lambda_.4} parent=5 // pred_check
        %p2048 = pneg %p2047
      $region78: #{_lambda_.4} parent=5 // pred_check_branch
        %2050 = sbr.rel (%p2048) target = $region80
      $region79: #{_lambda_.4} parent=5 // pred_region
        %s2051 = ssub.s32 %s23, 2
        // Predicated region
        $region81: #{_lambda_.4} parent=79 // pred_check
          %p2052 = pneg %p211
        $region82: #{_lambda_.4} parent=79 // pred_check_branch
          %2054 = sbr.rel (%p2052) target = $region84
        $region83: #{_lambda_.4} parent=79 // pred_region
          %s2055 = sand.u32 %s196, 1
          %s2056 = scalar_lea.sflag [#allocation4], %s2055
          %s2057 = sand.u32 %s196, 1
          %s2058 = smul.addr %s2057, 256
          %s2059 = scalar_lea.vmem [#allocation13], %s2058
          %2060 = dma.done %s2056, 4096
        $region84: #{_lambda_.4} parent=79 // pred_fallthru
          _
      $region80: #{_lambda_.4} parent=5 // pred_fallthru
        _
    $region6: #{_lambda_.4} parent=1 // loop_footer
      %s27 = sadd.s32 1, %s23
    $region7: #{_lambda_.4} parent=1 // loop_footer_branch
      %22 = sbr.rel target = $region3
    $region8: #{_lambda_.4} parent=1 // loop_exit
      _
    %2061 = vsyncpa [#allocation3], 1
    %s2062 = scalar_lea.sflag [#allocation3], 1
    %2063 = vsyncpa %s2062, 1
    %2064 = vsyncpa [#allocation6], 1
    %s2065 = scalar_lea.sflag [#allocation6], 1
    %2066 = vsyncpa %s2065, 1
    %2067 = vsyncpa [#allocation9], 1
    %2068 = vsyncpa [#allocation12], 1
    %2069 = vsyncpa [#allocation4], 1
    %s2070 = scalar_lea.sflag [#allocation4], 1
    %2071 = vsyncpa %s2070, 1

</llo_original>
